<compile_context>
chip_gen: v6e
topology: v6e:2x2x1
jax: 0.10.0
libtpu: 0.0.40
codegen_flags: <defaults>
</compile_context>

<pallas_src>
from functools import partial

import jax
import jax.numpy as jnp
from jax.experimental import pallas as pl
from jax.experimental.pallas import tpu as pltpu


# ----------------------------------------------------------------------------
# Fused kernel builder: embedded input -> n_layers bi-LSTM -> FC head.
# All activations stay resident in VMEM for the whole stack.
# ----------------------------------------------------------------------------
def _make_fused_kernel(seq_len, batch, emb_dim, hidden_dim, out_dim,
                       n_layers, bidirectional):
    H = hidden_dim
    n_dir = 2 if bidirectional else 1
    n_w_per_layer = 3 * n_dir  # (w_ih, w_hh, b) per direction

    def kernel(*refs):
        idx = 0
        x_ref = refs[idx]; idx += 1                      # (S*B, emb_dim)
        layer_refs = []
        for _ in range(n_layers):
            layer_refs.append(refs[idx:idx + n_w_per_layer])
            idx += n_w_per_layer
        fc_w_ref = refs[idx]; idx += 1                   # (n_dir*H, out_dim)
        fc_b_ref = refs[idx]; idx += 1                   # (1, out_dim)
        out_ref = refs[idx]; idx += 1                    # (B, out_dim)
        gx_f_sc = refs[idx]; idx += 1                    # (S*B, 4H)
        out_f_sc = refs[idx]; idx += 1                   # (S*B, H)
        if bidirectional:
            gx_b_sc = refs[idx]; idx += 1                # (S*B, 4H)
            out_b_sc = refs[idx]; idx += 1               # (S*B, H)

        h_f = c_f = h_b = c_b = None

        for l in range(n_layers):
            if bidirectional:
                (wih_f_ref, whh_f_ref, b_f_ref,
                 wih_b_ref, whh_b_ref, b_b_ref) = layer_refs[l]
            else:
                wih_f_ref, whh_f_ref, b_f_ref = layer_refs[l]

            # ---- Hoisted input projection: one big MXU matmul per direction,
            #      bias folded in.  (The per-step recurrence only sees h@W_hh.)
            if l == 0:
                x2d = x_ref[...]                                         # (S*B, E)
                gx_f = (jnp.dot(x2d, wih_f_ref[...],
                                preferred_element_type=jnp.float32)
                        + b_f_ref[...])
                if bidirectional:
                    gx_b = (jnp.dot(x2d, wih_b_ref[...],
                                    preferred_element_type=jnp.float32)
                            + b_b_ref[...])
            else:
                of2d = out_f_sc[...]                                     # (S*B, H)
                if bidirectional:
                    ob2d = out_b_sc[...]                                 # (S*B, H)
                    wih_f = wih_f_ref[...]                               # (2H, 4H)
                    gx_f = (jnp.dot(of2d, wih_f[0:H, :],
                                    preferred_element_type=jnp.float32)
                            + jnp.dot(ob2d, wih_f[H:2 * H, :],
                                      preferred_element_type=jnp.float32)
                            + b_f_ref[...])
                    wih_b = wih_b_ref[...]
                    gx_b = (jnp.dot(of2d, wih_b[0:H, :],
                                    preferred_element_type=jnp.float32)
                            + jnp.dot(ob2d, wih_b[H:2 * H, :],
                                      preferred_element_type=jnp.float32)
                            + b_b_ref[...])
                else:
                    gx_f = (jnp.dot(of2d, wih_f_ref[...],
                                    preferred_element_type=jnp.float32)
                            + b_f_ref[...])

            gx_f_sc[...] = gx_f
            if bidirectional:
                gx_b_sc[...] = gx_b

            # ---- Recurrence (fully unrolled; only h @ W_hh on the chain).
            whh_f = whh_f_ref[...]
            if bidirectional:
                whh_b = whh_b_ref[...]

            h_f = jnp.zeros((batch, H), jnp.float32)
            c_f = jnp.zeros((batch, H), jnp.float32)
            if bidirectional:
                h_b = jnp.zeros((batch, H), jnp.float32)
                c_b = jnp.zeros((batch, H), jnp.float32)

            is_last = (l == n_layers - 1)
            for t in range(seq_len):
                rf0 = t * batch                      # forward: time t
                g = (gx_f_sc[rf0:rf0 + batch, :]
                     + jnp.dot(h_f, whh_f, preferred_element_type=jnp.float32))
                i_g = jax.nn.sigmoid(g[:, 0 * H:1 * H])
                f_g = jax.nn.sigmoid(g[:, 1 * H:2 * H])
                g_g = jnp.tanh(g[:, 2 * H:3 * H])
                o_g = jax.nn.sigmoid(g[:, 3 * H:4 * H])
                c_f = f_g * c_f + i_g * g_g
                h_f = o_g * jnp.tanh(c_f)
                if not is_last:
                    out_f_sc[rf0:rf0 + batch, :] = h_f

                if bidirectional:
                    rb0 = (seq_len - 1 - t) * batch  # backward: time S-1-t
                    gb = (gx_b_sc[rb0:rb0 + batch, :]
                          + jnp.dot(h_b, whh_b, preferred_element_type=jnp.float32))
                    i_b = jax.nn.sigmoid(gb[:, 0 * H:1 * H])
                    f_b = jax.nn.sigmoid(gb[:, 1 * H:2 * H])
                    gg_b = jnp.tanh(gb[:, 2 * H:3 * H])
                    o_b = jax.nn.sigmoid(gb[:, 3 * H:4 * H])
                    c_b = f_b * c_b + i_b * gg_b
                    h_b = o_b * jnp.tanh(c_b)
                    if not is_last:
                        out_b_sc[rb0:rb0 + batch, :] = h_b

        # ---- Fused FC head on the last layer's final hidden states.
        # PyTorch: cat(hidden[-2] (= last-layer fwd final), hidden[-1] (= bwd final)).
        fc_w = fc_w_ref[...]
        if bidirectional:
            logits = (jnp.dot(h_f, fc_w[0:H, :], preferred_element_type=jnp.float32)
                      + jnp.dot(h_b, fc_w[H:2 * H, :], preferred_element_type=jnp.float32)
                      + fc_b_ref[...])
        else:
            logits = (jnp.dot(h_f, fc_w, preferred_element_type=jnp.float32)
                      + fc_b_ref[...])
        out_ref[...] = logits

    return kernel


# ----------------------------------------------------------------------------
# Parameter init (deterministic, synthetic weights).
# NOTE: uses a single bias per direction (== PyTorch b_ih + b_hh combined).
# ----------------------------------------------------------------------------
def init_params(key, vocab_size, embedding_dim, hidden_dim, output_dim,
                n_layers, bidirectional):
    keys = jax.random.split(key, 2 + n_layers)
    scale = 0.1
    params = {
        "embedding": scale * jax.random.normal(
            keys[0], (vocab_size, embedding_dim), jnp.float32),
        "lstm": [],
    }
    for l in range(n_layers):
        in_dim = embedding_dim if l == 0 else hidden_dim * (2 if bidirectional else 1)
        lk = jax.random.split(keys[2 + l], 6)
        layer_p = {
            "w_ih_f": scale * jax.random.normal(lk[0], (in_dim, 4 * hidden_dim), jnp.float32),
            "w_hh_f": scale * jax.random.normal(lk[1], (hidden_dim, 4 * hidden_dim), jnp.float32),
            "b_f": scale * jax.random.normal(lk[2], (1, 4 * hidden_dim), jnp.float32),
        }
        if bidirectional:
            layer_p.update({
                "w_ih_b": scale * jax.random.normal(lk[3], (in_dim, 4 * hidden_dim), jnp.float32),
                "w_hh_b": scale * jax.random.normal(lk[4], (hidden_dim, 4 * hidden_dim), jnp.float32),
                "b_b": scale * jax.random.normal(lk[5], (1, 4 * hidden_dim), jnp.float32),
            })
        params["lstm"].append(layer_p)
    fc_in = hidden_dim * 2 if bidirectional else hidden_dim
    fk = jax.random.split(keys[1], 2)
    params["fc_w"] = scale * jax.random.normal(fk[0], (fc_in, output_dim), jnp.float32)
    params["fc_b"] = scale * jax.random.normal(fk[1], (1, output_dim), jnp.float32)
    return params


# ----------------------------------------------------------------------------
# Forward pass: embedding gather in JAX (glue), everything else in one kernel.
# ----------------------------------------------------------------------------
@partial(jax.jit, static_argnums=(2, 3))
def sentiment_rnn_forward(text, params, n_layers, bidirectional):
    # Embedding lookup (gather glue); dropout = identity (eval).
    x = jnp.take(params["embedding"], text, axis=0)          # (S, B, E)
    S, B, E = x.shape
    H = params["lstm"][0]["w_hh_f"].shape[0]
    out_dim = params["fc_w"].shape[1]

    # Pad batch to a multiple of 8 for sublane alignment, flatten to (S*B, E)
    # so every in-kernel per-step slice is static and 8-row aligned.
    B_pad = max(8, ((B + 7) // 8) * 8)
    if B_pad != B:
        x = jnp.pad(x, ((0, 0), (0, B_pad - B), (0, 0)))
    x2d = x.reshape(S * B_pad, E)

    args = [x2d]
    for l in range(n_layers):
        p = params["lstm"][l]
        args += [p["w_ih_f"], p["w_hh_f"], p["b_f"]]
        if bidirectional:
            args += [p["w_ih_b"], p["w_hh_b"], p["b_b"]]
    args += [params["fc_w"], params["fc_b"]]

    scratch = [pltpu.VMEM((S * B_pad, 4 * H), jnp.float32),   # gx fwd
               pltpu.VMEM((S * B_pad, H), jnp.float32)]       # out seq fwd
    if bidirectional:
        scratch += [pltpu.VMEM((S * B_pad, 4 * H), jnp.float32),  # gx bwd
                    pltpu.VMEM((S * B_pad, H), jnp.float32)]      # out seq bwd

    kernel = _make_fused_kernel(S, B_pad, E, H, out_dim, n_layers, bidirectional)
    out = pl.pallas_call(
        kernel,
        out_shape=jax.ShapeDtypeStruct((B_pad, out_dim), jnp.float32),
        in_specs=[pl.BlockSpec(memory_space=pltpu.MemorySpace.VMEM)] * len(args),
        out_specs=pl.BlockSpec(memory_space=pltpu.MemorySpace.VMEM),
        scratch_shapes=scratch,
        compiler_params=pltpu.CompilerParams(vmem_limit_bytes=64 << 20),
    )(*args)
    return out[:B]


if __name__ == "__main__":
    vocab_size = 50
    embedding_dim = 32
    hidden_dim = 32
    output_dim = 1
    n_layers = 2
    bidirectional = True
    seq_len = 8
    batch = 2

    key = jax.random.PRNGKey(0)
    k_text, k_params = jax.random.split(key)
    text = jax.random.randint(k_text, (seq_len, batch), 0, vocab_size, dtype=jnp.int32)
    params = init_params(k_params, vocab_size, embedding_dim, hidden_dim,
                         output_dim, n_layers, bidirectional)

    out = sentiment_rnn_forward(text, params, n_layers, bidirectional)
    out = jax.block_until_ready(out)
    assert out.shape == (batch, output_dim)
    print("KERNEL_OK")
</pallas_src>

<mosaic_0001>
module attributes {stable_mosaic.version = 11 : i64} {
  func.func @kernel(%arg0: memref<64x32xf32, #tpu.memory_space<vmem>>, %arg1: memref<32x128xf32, #tpu.memory_space<vmem>>, %arg2: memref<32x128xf32, #tpu.memory_space<vmem>>, %arg3: memref<1x128xf32, #tpu.memory_space<vmem>>, %arg4: memref<32x128xf32, #tpu.memory_space<vmem>>, %arg5: memref<32x128xf32, #tpu.memory_space<vmem>>, %arg6: memref<1x128xf32, #tpu.memory_space<vmem>>, %arg7: memref<64x128xf32, #tpu.memory_space<vmem>>, %arg8: memref<32x128xf32, #tpu.memory_space<vmem>>, %arg9: memref<1x128xf32, #tpu.memory_space<vmem>>, %arg10: memref<64x128xf32, #tpu.memory_space<vmem>>, %arg11: memref<32x128xf32, #tpu.memory_space<vmem>>, %arg12: memref<1x128xf32, #tpu.memory_space<vmem>>, %arg13: memref<64x1xf32, #tpu.memory_space<vmem>>, %arg14: memref<1x1xf32, #tpu.memory_space<vmem>>, %arg15: memref<8x1xf32, #tpu.memory_space<vmem>>, %arg16: memref<64x128xf32, #tpu.memory_space<vmem>>, %arg17: memref<64x32xf32, #tpu.memory_space<vmem>>, %arg18: memref<64x128xf32, #tpu.memory_space<vmem>>, %arg19: memref<64x32xf32, #tpu.memory_space<vmem>>) attributes {dimension_semantics = [], scalar_prefetch = 0 : i64, scratch_operands = 4 : i64, tpu.core_type = #tpu.core_type<tc>} {
    %c0 = arith.constant 0 : index
    %c0_0 = arith.constant 0 : index
    %0 = vector.load %arg0[%c0, %c0_0] : memref<64x32xf32, #tpu.memory_space<vmem>>, vector<64x32xf32>
    %c0_1 = arith.constant 0 : index
    %c0_2 = arith.constant 0 : index
    %1 = vector.load %arg1[%c0_1, %c0_2] : memref<32x128xf32, #tpu.memory_space<vmem>>, vector<32x128xf32>
    %cst = arith.constant dense<0.000000e+00> : vector<64x128xf32>
    %2 = tpu.matmul %0, %1, %cst {dimension_numbers = #tpu.dot_dimension_numbers<[1], [0], [0], [1], [0, 0, 1, 1], [], []>} : vector<64x32xf32>, vector<32x128xf32>, vector<64x128xf32> -> vector<64x128xf32>
    %c0_3 = arith.constant 0 : index
    %c0_4 = arith.constant 0 : index
    %3 = vector.load %arg3[%c0_3, %c0_4] : memref<1x128xf32, #tpu.memory_space<vmem>>, vector<1x128xf32>
    %4 = vector.broadcast %3 : vector<1x128xf32> to vector<64x128xf32>
    %5 = arith.addf %2, %4 : vector<64x128xf32>
    %c0_5 = arith.constant 0 : index
    %c0_6 = arith.constant 0 : index
    %6 = vector.load %arg4[%c0_5, %c0_6] : memref<32x128xf32, #tpu.memory_space<vmem>>, vector<32x128xf32>
    %cst_7 = arith.constant dense<0.000000e+00> : vector<64x128xf32>
    %7 = tpu.matmul %0, %6, %cst_7 {dimension_numbers = #tpu.dot_dimension_numbers<[1], [0], [0], [1], [0, 0, 1, 1], [], []>} : vector<64x32xf32>, vector<32x128xf32>, vector<64x128xf32> -> vector<64x128xf32>
    %c0_8 = arith.constant 0 : index
    %c0_9 = arith.constant 0 : index
    %8 = vector.load %arg6[%c0_8, %c0_9] : memref<1x128xf32, #tpu.memory_space<vmem>>, vector<1x128xf32>
    %9 = vector.broadcast %8 : vector<1x128xf32> to vector<64x128xf32>
    %10 = arith.addf %7, %9 : vector<64x128xf32>
    %c0_10 = arith.constant 0 : index
    %c0_11 = arith.constant 0 : index
    %11 = vector.load %arg16[%c0_10, %c0_11] : memref<64x128xf32, #tpu.memory_space<vmem>>, vector<64x128xf32>
    tpu.vector_store %arg16[%c0_10, %c0_11], %5 {strides = array<i32>} : memref<64x128xf32, #tpu.memory_space<vmem>>, vector<64x128xf32>,
    %c0_12 = arith.constant 0 : index
    %c0_13 = arith.constant 0 : index
    %12 = vector.load %arg18[%c0_12, %c0_13] : memref<64x128xf32, #tpu.memory_space<vmem>>, vector<64x128xf32>
    tpu.vector_store %arg18[%c0_12, %c0_13], %10 {strides = array<i32>} : memref<64x128xf32, #tpu.memory_space<vmem>>, vector<64x128xf32>,
    %c0_14 = arith.constant 0 : index
    %c0_15 = arith.constant 0 : index
    %13 = vector.load %arg2[%c0_14, %c0_15] : memref<32x128xf32, #tpu.memory_space<vmem>>, vector<32x128xf32>
    %c0_16 = arith.constant 0 : index
    %c0_17 = arith.constant 0 : index
    %14 = vector.load %arg5[%c0_16, %c0_17] : memref<32x128xf32, #tpu.memory_space<vmem>>, vector<32x128xf32>
    %cst_18 = arith.constant 0.000000e+00 : f32
    %15 = vector.broadcast %cst_18 : f32 to vector<8x32xf32>
    %cst_19 = arith.constant 0.000000e+00 : f32
    %16 = vector.broadcast %cst_19 : f32 to vector<8x32xf32>
    %cst_20 = arith.constant 0.000000e+00 : f32
    %17 = vector.broadcast %cst_20 : f32 to vector<8x32xf32>
    %cst_21 = arith.constant 0.000000e+00 : f32
    %18 = vector.broadcast %cst_21 : f32 to vector<8x32xf32>
    %c0_22 = arith.constant 0 : index
    %c0_23 = arith.constant 0 : index
    %19 = vector.load %arg16[%c0_22, %c0_23] : memref<64x128xf32, #tpu.memory_space<vmem>>, vector<8x128xf32>
    %cst_24 = arith.constant dense<0.000000e+00> : vector<8x128xf32>
    %20 = tpu.matmul %15, %13, %cst_24 {dimension_numbers = #tpu.dot_dimension_numbers<[1], [0], [0], [1], [0, 0, 1, 1], [], []>} : vector<8x32xf32>, vector<32x128xf32>, vector<8x128xf32> -> vector<8x128xf32>
    %21 = arith.addf %19, %20 : vector<8x128xf32>
    %22 = vector.extract_strided_slice %21 {offsets = [0, 0], sizes = [8, 32], strides = [1, 1]} : vector<8x128xf32> to vector<8x32xf32>
    %23 = arith.negf %22 : vector<8x32xf32>
    %24 = math.exp %23 : vector<8x32xf32>
    %cst_25 = arith.constant 1.000000e+00 : f32
    %25 = vector.broadcast %cst_25 : f32 to vector<8x32xf32>
    %26 = arith.addf %25, %24 : vector<8x32xf32>
    %27 = arith.divf %25, %26 : vector<8x32xf32>
    %28 = vector.extract_strided_slice %21 {offsets = [0, 32], sizes = [8, 32], strides = [1, 1]} : vector<8x128xf32> to vector<8x32xf32>
    %29 = arith.negf %28 : vector<8x32xf32>
    %30 = math.exp %29 : vector<8x32xf32>
    %cst_26 = arith.constant 1.000000e+00 : f32
    %31 = vector.broadcast %cst_26 : f32 to vector<8x32xf32>
    %32 = arith.addf %31, %30 : vector<8x32xf32>
    %33 = arith.divf %31, %32 : vector<8x32xf32>
    %34 = vector.extract_strided_slice %21 {offsets = [0, 64], sizes = [8, 32], strides = [1, 1]} : vector<8x128xf32> to vector<8x32xf32>
    %35 = math.tanh %34 : vector<8x32xf32>
    %36 = vector.extract_strided_slice %21 {offsets = [0, 96], sizes = [8, 32], strides = [1, 1]} : vector<8x128xf32> to vector<8x32xf32>
    %37 = arith.negf %36 : vector<8x32xf32>
    %38 = math.exp %37 : vector<8x32xf32>
    %cst_27 = arith.constant 1.000000e+00 : f32
    %39 = vector.broadcast %cst_27 : f32 to vector<8x32xf32>
    %40 = arith.addf %39, %38 : vector<8x32xf32>
    %41 = arith.divf %39, %40 : vector<8x32xf32>
    %42 = arith.mulf %33, %16 : vector<8x32xf32>
    %43 = arith.mulf %27, %35 : vector<8x32xf32>
    %44 = arith.addf %42, %43 : vector<8x32xf32>
    %45 = math.tanh %44 : vector<8x32xf32>
    %46 = arith.mulf %41, %45 : vector<8x32xf32>
    %c0_28 = arith.constant 0 : index
    %c0_29 = arith.constant 0 : index
    %47 = vector.load %arg17[%c0_28, %c0_29] : memref<64x32xf32, #tpu.memory_space<vmem>>, vector<8x32xf32>
    tpu.vector_store %arg17[%c0_28, %c0_29], %46 {strides = array<i32>} : memref<64x32xf32, #tpu.memory_space<vmem>>, vector<8x32xf32>,
    %c56 = arith.constant 56 : index
    %c0_30 = arith.constant 0 : index
    %48 = vector.load %arg18[%c56, %c0_30] : memref<64x128xf32, #tpu.memory_space<vmem>>, vector<8x128xf32>
    %cst_31 = arith.constant dense<0.000000e+00> : vector<8x128xf32>
    %49 = tpu.matmul %17, %14, %cst_31 {dimension_numbers = #tpu.dot_dimension_numbers<[1], [0], [0], [1], [0, 0, 1, 1], [], []>} : vector<8x32xf32>, vector<32x128xf32>, vector<8x128xf32> -> vector<8x128xf32>
    %50 = arith.addf %48, %49 : vector<8x128xf32>
    %51 = vector.extract_strided_slice %50 {offsets = [0, 0], sizes = [8, 32], strides = [1, 1]} : vector<8x128xf32> to vector<8x32xf32>
    %52 = arith.negf %51 : vector<8x32xf32>
    %53 = math.exp %52 : vector<8x32xf32>
    %cst_32 = arith.constant 1.000000e+00 : f32
    %54 = vector.broadcast %cst_32 : f32 to vector<8x32xf32>
    %55 = arith.addf %54, %53 : vector<8x32xf32>
    %56 = arith.divf %54, %55 : vector<8x32xf32>
    %57 = vector.extract_strided_slice %50 {offsets = [0, 32], sizes = [8, 32], strides = [1, 1]} : vector<8x128xf32> to vector<8x32xf32>
    %58 = arith.negf %57 : vector<8x32xf32>
    %59 = math.exp %58 : vector<8x32xf32>
    %cst_33 = arith.constant 1.000000e+00 : f32
    %60 = vector.broadcast %cst_33 : f32 to vector<8x32xf32>
    %61 = arith.addf %60, %59 : vector<8x32xf32>
    %62 = arith.divf %60, %61 : vector<8x32xf32>
    %63 = vector.extract_strided_slice %50 {offsets = [0, 64], sizes = [8, 32], strides = [1, 1]} : vector<8x128xf32> to vector<8x32xf32>
    %64 = math.tanh %63 : vector<8x32xf32>
    %65 = vector.extract_strided_slice %50 {offsets = [0, 96], sizes = [8, 32], strides = [1, 1]} : vector<8x128xf32> to vector<8x32xf32>
    %66 = arith.negf %65 : vector<8x32xf32>
    %67 = math.exp %66 : vector<8x32xf32>
    %cst_34 = arith.constant 1.000000e+00 : f32
    %68 = vector.broadcast %cst_34 : f32 to vector<8x32xf32>
    %69 = arith.addf %68, %67 : vector<8x32xf32>
    %70 = arith.divf %68, %69 : vector<8x32xf32>
    %71 = arith.mulf %62, %18 : vector<8x32xf32>
    %72 = arith.mulf %56, %64 : vector<8x32xf32>
    %73 = arith.addf %71, %72 : vector<8x32xf32>
    %74 = math.tanh %73 : vector<8x32xf32>
    %75 = arith.mulf %70, %74 : vector<8x32xf32>
    %c56_35 = arith.constant 56 : index
    %c0_36 = arith.constant 0 : index
    %76 = vector.load %arg19[%c56_35, %c0_36] : memref<64x32xf32, #tpu.memory_space<vmem>>, vector<8x32xf32>
    tpu.vector_store %arg19[%c56_35, %c0_36], %75 {strides = array<i32>} : memref<64x32xf32, #tpu.memory_space<vmem>>, vector<8x32xf32>,
    %c8 = arith.constant 8 : index
    %c0_37 = arith.constant 0 : index
    %77 = vector.load %arg16[%c8, %c0_37] : memref<64x128xf32, #tpu.memory_space<vmem>>, vector<8x128xf32>
    %cst_38 = arith.constant dense<0.000000e+00> : vector<8x128xf32>
    %78 = tpu.matmul %46, %13, %cst_38 {dimension_numbers = #tpu.dot_dimension_numbers<[1], [0], [0], [1], [0, 0, 1, 1], [], []>} : vector<8x32xf32>, vector<32x128xf32>, vector<8x128xf32> -> vector<8x128xf32>
    %79 = arith.addf %77, %78 : vector<8x128xf32>
    %80 = vector.extract_strided_slice %79 {offsets = [0, 0], sizes = [8, 32], strides = [1, 1]} : vector<8x128xf32> to vector<8x32xf32>
    %81 = arith.negf %80 : vector<8x32xf32>
    %82 = math.exp %81 : vector<8x32xf32>
    %cst_39 = arith.constant 1.000000e+00 : f32
    %83 = vector.broadcast %cst_39 : f32 to vector<8x32xf32>
    %84 = arith.addf %83, %82 : vector<8x32xf32>
    %85 = arith.divf %83, %84 : vector<8x32xf32>
    %86 = vector.extract_strided_slice %79 {offsets = [0, 32], sizes = [8, 32], strides = [1, 1]} : vector<8x128xf32> to vector<8x32xf32>
    %87 = arith.negf %86 : vector<8x32xf32>
    %88 = math.exp %87 : vector<8x32xf32>
    %cst_40 = arith.constant 1.000000e+00 : f32
    %89 = vector.broadcast %cst_40 : f32 to vector<8x32xf32>
    %90 = arith.addf %89, %88 : vector<8x32xf32>
    %91 = arith.divf %89, %90 : vector<8x32xf32>
    %92 = vector.extract_strided_slice %79 {offsets = [0, 64], sizes = [8, 32], strides = [1, 1]} : vector<8x128xf32> to vector<8x32xf32>
    %93 = math.tanh %92 : vector<8x32xf32>
    %94 = vector.extract_strided_slice %79 {offsets = [0, 96], sizes = [8, 32], strides = [1, 1]} : vector<8x128xf32> to vector<8x32xf32>
    %95 = arith.negf %94 : vector<8x32xf32>
    %96 = math.exp %95 : vector<8x32xf32>
    %cst_41 = arith.constant 1.000000e+00 : f32
    %97 = vector.broadcast %cst_41 : f32 to vector<8x32xf32>
    %98 = arith.addf %97, %96 : vector<8x32xf32>
    %99 = arith.divf %97, %98 : vector<8x32xf32>
    %100 = arith.mulf %91, %44 : vector<8x32xf32>
    %101 = arith.mulf %85, %93 : vector<8x32xf32>
    %102 = arith.addf %100, %101 : vector<8x32xf32>
    %103 = math.tanh %102 : vector<8x32xf32>
    %104 = arith.mulf %99, %103 : vector<8x32xf32>
    %c8_42 = arith.constant 8 : index
    %c0_43 = arith.constant 0 : index
    %105 = vector.load %arg17[%c8_42, %c0_43] : memref<64x32xf32, #tpu.memory_space<vmem>>, vector<8x32xf32>
    tpu.vector_store %arg17[%c8_42, %c0_43], %104 {strides = array<i32>} : memref<64x32xf32, #tpu.memory_space<vmem>>, vector<8x32xf32>,
    %c48 = arith.constant 48 : index
    %c0_44 = arith.constant 0 : index
    %106 = vector.load %arg18[%c48, %c0_44] : memref<64x128xf32, #tpu.memory_space<vmem>>, vector<8x128xf32>
    %cst_45 = arith.constant dense<0.000000e+00> : vector<8x128xf32>
    %107 = tpu.matmul %75, %14, %cst_45 {dimension_numbers = #tpu.dot_dimension_numbers<[1], [0], [0], [1], [0, 0, 1, 1], [], []>} : vector<8x32xf32>, vector<32x128xf32>, vector<8x128xf32> -> vector<8x128xf32>
    %108 = arith.addf %106, %107 : vector<8x128xf32>
    %109 = vector.extract_strided_slice %108 {offsets = [0, 0], sizes = [8, 32], strides = [1, 1]} : vector<8x128xf32> to vector<8x32xf32>
    %110 = arith.negf %109 : vector<8x32xf32>
    %111 = math.exp %110 : vector<8x32xf32>
    %cst_46 = arith.constant 1.000000e+00 : f32
    %112 = vector.broadcast %cst_46 : f32 to vector<8x32xf32>
    %113 = arith.addf %112, %111 : vector<8x32xf32>
    %114 = arith.divf %112, %113 : vector<8x32xf32>
    %115 = vector.extract_strided_slice %108 {offsets = [0, 32], sizes = [8, 32], strides = [1, 1]} : vector<8x128xf32> to vector<8x32xf32>
    %116 = arith.negf %115 : vector<8x32xf32>
    %117 = math.exp %116 : vector<8x32xf32>
    %cst_47 = arith.constant 1.000000e+00 : f32
    %118 = vector.broadcast %cst_47 : f32 to vector<8x32xf32>
    %119 = arith.addf %118, %117 : vector<8x32xf32>
    %120 = arith.divf %118, %119 : vector<8x32xf32>
    %121 = vector.extract_strided_slice %108 {offsets = [0, 64], sizes = [8, 32], strides = [1, 1]} : vector<8x128xf32> to vector<8x32xf32>
    %122 = math.tanh %121 : vector<8x32xf32>
    %123 = vector.extract_strided_slice %108 {offsets = [0, 96], sizes = [8, 32], strides = [1, 1]} : vector<8x128xf32> to vector<8x32xf32>
    %124 = arith.negf %123 : vector<8x32xf32>
    %125 = math.exp %124 : vector<8x32xf32>
    %cst_48 = arith.constant 1.000000e+00 : f32
    %126 = vector.broadcast %cst_48 : f32 to vector<8x32xf32>
    %127 = arith.addf %126, %125 : vector<8x32xf32>
    %128 = arith.divf %126, %127 : vector<8x32xf32>
    %129 = arith.mulf %120, %73 : vector<8x32xf32>
    %130 = arith.mulf %114, %122 : vector<8x32xf32>
    %131 = arith.addf %129, %130 : vector<8x32xf32>
    %132 = math.tanh %131 : vector<8x32xf32>
    %133 = arith.mulf %128, %132 : vector<8x32xf32>
    %c48_49 = arith.constant 48 : index
    %c0_50 = arith.constant 0 : index
    %134 = vector.load %arg19[%c48_49, %c0_50] : memref<64x32xf32, #tpu.memory_space<vmem>>, vector<8x32xf32>
    tpu.vector_store %arg19[%c48_49, %c0_50], %133 {strides = array<i32>} : memref<64x32xf32, #tpu.memory_space<vmem>>, vector<8x32xf32>,
    %c16 = arith.constant 16 : index
    %c0_51 = arith.constant 0 : index
    %135 = vector.load %arg16[%c16, %c0_51] : memref<64x128xf32, #tpu.memory_space<vmem>>, vector<8x128xf32>
    %cst_52 = arith.constant dense<0.000000e+00> : vector<8x128xf32>
    %136 = tpu.matmul %104, %13, %cst_52 {dimension_numbers = #tpu.dot_dimension_numbers<[1], [0], [0], [1], [0, 0, 1, 1], [], []>} : vector<8x32xf32>, vector<32x128xf32>, vector<8x128xf32> -> vector<8x128xf32>
    %137 = arith.addf %135, %136 : vector<8x128xf32>
    %138 = vector.extract_strided_slice %137 {offsets = [0, 0], sizes = [8, 32], strides = [1, 1]} : vector<8x128xf32> to vector<8x32xf32>
    %139 = arith.negf %138 : vector<8x32xf32>
    %140 = math.exp %139 : vector<8x32xf32>
    %cst_53 = arith.constant 1.000000e+00 : f32
    %141 = vector.broadcast %cst_53 : f32 to vector<8x32xf32>
    %142 = arith.addf %141, %140 : vector<8x32xf32>
    %143 = arith.divf %141, %142 : vector<8x32xf32>
    %144 = vector.extract_strided_slice %137 {offsets = [0, 32], sizes = [8, 32], strides = [1, 1]} : vector<8x128xf32> to vector<8x32xf32>
    %145 = arith.negf %144 : vector<8x32xf32>
    %146 = math.exp %145 : vector<8x32xf32>
    %cst_54 = arith.constant 1.000000e+00 : f32
    %147 = vector.broadcast %cst_54 : f32 to vector<8x32xf32>
    %148 = arith.addf %147, %146 : vector<8x32xf32>
    %149 = arith.divf %147, %148 : vector<8x32xf32>
    %150 = vector.extract_strided_slice %137 {offsets = [0, 64], sizes = [8, 32], strides = [1, 1]} : vector<8x128xf32> to vector<8x32xf32>
    %151 = math.tanh %150 : vector<8x32xf32>
    %152 = vector.extract_strided_slice %137 {offsets = [0, 96], sizes = [8, 32], strides = [1, 1]} : vector<8x128xf32> to vector<8x32xf32>
    %153 = arith.negf %152 : vector<8x32xf32>
    %154 = math.exp %153 : vector<8x32xf32>
    %cst_55 = arith.constant 1.000000e+00 : f32
    %155 = vector.broadcast %cst_55 : f32 to vector<8x32xf32>
    %156 = arith.addf %155, %154 : vector<8x32xf32>
    %157 = arith.divf %155, %156 : vector<8x32xf32>
    %158 = arith.mulf %149, %102 : vector<8x32xf32>
    %159 = arith.mulf %143, %151 : vector<8x32xf32>
    %160 = arith.addf %158, %159 : vector<8x32xf32>
    %161 = math.tanh %160 : vector<8x32xf32>
    %162 = arith.mulf %157, %161 : vector<8x32xf32>
    %c16_56 = arith.constant 16 : index
    %c0_57 = arith.constant 0 : index
    %163 = vector.load %arg17[%c16_56, %c0_57] : memref<64x32xf32, #tpu.memory_space<vmem>>, vector<8x32xf32>
    tpu.vector_store %arg17[%c16_56, %c0_57], %162 {strides = array<i32>} : memref<64x32xf32, #tpu.memory_space<vmem>>, vector<8x32xf32>,
    %c40 = arith.constant 40 : index
    %c0_58 = arith.constant 0 : index
    %164 = vector.load %arg18[%c40, %c0_58] : memref<64x128xf32, #tpu.memory_space<vmem>>, vector<8x128xf32>
    %cst_59 = arith.constant dense<0.000000e+00> : vector<8x128xf32>
    %165 = tpu.matmul %133, %14, %cst_59 {dimension_numbers = #tpu.dot_dimension_numbers<[1], [0], [0], [1], [0, 0, 1, 1], [], []>} : vector<8x32xf32>, vector<32x128xf32>, vector<8x128xf32> -> vector<8x128xf32>
    %166 = arith.addf %164, %165 : vector<8x128xf32>
    %167 = vector.extract_strided_slice %166 {offsets = [0, 0], sizes = [8, 32], strides = [1, 1]} : vector<8x128xf32> to vector<8x32xf32>
    %168 = arith.negf %167 : vector<8x32xf32>
    %169 = math.exp %168 : vector<8x32xf32>
    %cst_60 = arith.constant 1.000000e+00 : f32
    %170 = vector.broadcast %cst_60 : f32 to vector<8x32xf32>
    %171 = arith.addf %170, %169 : vector<8x32xf32>
    %172 = arith.divf %170, %171 : vector<8x32xf32>
    %173 = vector.extract_strided_slice %166 {offsets = [0, 32], sizes = [8, 32], strides = [1, 1]} : vector<8x128xf32> to vector<8x32xf32>
    %174 = arith.negf %173 : vector<8x32xf32>
    %175 = math.exp %174 : vector<8x32xf32>
    %cst_61 = arith.constant 1.000000e+00 : f32
    %176 = vector.broadcast %cst_61 : f32 to vector<8x32xf32>
    %177 = arith.addf %176, %175 : vector<8x32xf32>
    %178 = arith.divf %176, %177 : vector<8x32xf32>
    %179 = vector.extract_strided_slice %166 {offsets = [0, 64], sizes = [8, 32], strides = [1, 1]} : vector<8x128xf32> to vector<8x32xf32>
    %180 = math.tanh %179 : vector<8x32xf32>
    %181 = vector.extract_strided_slice %166 {offsets = [0, 96], sizes = [8, 32], strides = [1, 1]} : vector<8x128xf32> to vector<8x32xf32>
    %182 = arith.negf %181 : vector<8x32xf32>
    %183 = math.exp %182 : vector<8x32xf32>
    %cst_62 = arith.constant 1.000000e+00 : f32
    %184 = vector.broadcast %cst_62 : f32 to vector<8x32xf32>
    %185 = arith.addf %184, %183 : vector<8x32xf32>
    %186 = arith.divf %184, %185 : vector<8x32xf32>
    %187 = arith.mulf %178, %131 : vector<8x32xf32>
    %188 = arith.mulf %172, %180 : vector<8x32xf32>
    %189 = arith.addf %187, %188 : vector<8x32xf32>
    %190 = math.tanh %189 : vector<8x32xf32>
    %191 = arith.mulf %186, %190 : vector<8x32xf32>
    %c40_63 = arith.constant 40 : index
    %c0_64 = arith.constant 0 : index
    %192 = vector.load %arg19[%c40_63, %c0_64] : memref<64x32xf32, #tpu.memory_space<vmem>>, vector<8x32xf32>
    tpu.vector_store %arg19[%c40_63, %c0_64], %191 {strides = array<i32>} : memref<64x32xf32, #tpu.memory_space<vmem>>, vector<8x32xf32>,
    %c24 = arith.constant 24 : index
    %c0_65 = arith.constant 0 : index
    %193 = vector.load %arg16[%c24, %c0_65] : memref<64x128xf32, #tpu.memory_space<vmem>>, vector<8x128xf32>
    %cst_66 = arith.constant dense<0.000000e+00> : vector<8x128xf32>
    %194 = tpu.matmul %162, %13, %cst_66 {dimension_numbers = #tpu.dot_dimension_numbers<[1], [0], [0], [1], [0, 0, 1, 1], [], []>} : vector<8x32xf32>, vector<32x128xf32>, vector<8x128xf32> -> vector<8x128xf32>
    %195 = arith.addf %193, %194 : vector<8x128xf32>
    %196 = vector.extract_strided_slice %195 {offsets = [0, 0], sizes = [8, 32], strides = [1, 1]} : vector<8x128xf32> to vector<8x32xf32>
    %197 = arith.negf %196 : vector<8x32xf32>
    %198 = math.exp %197 : vector<8x32xf32>
    %cst_67 = arith.constant 1.000000e+00 : f32
    %199 = vector.broadcast %cst_67 : f32 to vector<8x32xf32>
    %200 = arith.addf %199, %198 : vector<8x32xf32>
    %201 = arith.divf %199, %200 : vector<8x32xf32>
    %202 = vector.extract_strided_slice %195 {offsets = [0, 32], sizes = [8, 32], strides = [1, 1]} : vector<8x128xf32> to vector<8x32xf32>
    %203 = arith.negf %202 : vector<8x32xf32>
    %204 = math.exp %203 : vector<8x32xf32>
    %cst_68 = arith.constant 1.000000e+00 : f32
    %205 = vector.broadcast %cst_68 : f32 to vector<8x32xf32>
    %206 = arith.addf %205, %204 : vector<8x32xf32>
    %207 = arith.divf %205, %206 : vector<8x32xf32>
    %208 = vector.extract_strided_slice %195 {offsets = [0, 64], sizes = [8, 32], strides = [1, 1]} : vector<8x128xf32> to vector<8x32xf32>
    %209 = math.tanh %208 : vector<8x32xf32>
    %210 = vector.extract_strided_slice %195 {offsets = [0, 96], sizes = [8, 32], strides = [1, 1]} : vector<8x128xf32> to vector<8x32xf32>
    %211 = arith.negf %210 : vector<8x32xf32>
    %212 = math.exp %211 : vector<8x32xf32>
    %cst_69 = arith.constant 1.000000e+00 : f32
    %213 = vector.broadcast %cst_69 : f32 to vector<8x32xf32>
    %214 = arith.addf %213, %212 : vector<8x32xf32>
    %215 = arith.divf %213, %214 : vector<8x32xf32>
    %216 = arith.mulf %207, %160 : vector<8x32xf32>
    %217 = arith.mulf %201, %209 : vector<8x32xf32>
    %218 = arith.addf %216, %217 : vector<8x32xf32>
    %219 = math.tanh %218 : vector<8x32xf32>
    %220 = arith.mulf %215, %219 : vector<8x32xf32>
    %c24_70 = arith.constant 24 : index
    %c0_71 = arith.constant 0 : index
    %221 = vector.load %arg17[%c24_70, %c0_71] : memref<64x32xf32, #tpu.memory_space<vmem>>, vector<8x32xf32>
    tpu.vector_store %arg17[%c24_70, %c0_71], %220 {strides = array<i32>} : memref<64x32xf32, #tpu.memory_space<vmem>>, vector<8x32xf32>,
    %c32 = arith.constant 32 : index
    %c0_72 = arith.constant 0 : index
    %222 = vector.load %arg18[%c32, %c0_72] : memref<64x128xf32, #tpu.memory_space<vmem>>, vector<8x128xf32>
    %cst_73 = arith.constant dense<0.000000e+00> : vector<8x128xf32>
    %223 = tpu.matmul %191, %14, %cst_73 {dimension_numbers = #tpu.dot_dimension_numbers<[1], [0], [0], [1], [0, 0, 1, 1], [], []>} : vector<8x32xf32>, vector<32x128xf32>, vector<8x128xf32> -> vector<8x128xf32>
    %224 = arith.addf %222, %223 : vector<8x128xf32>
    %225 = vector.extract_strided_slice %224 {offsets = [0, 0], sizes = [8, 32], strides = [1, 1]} : vector<8x128xf32> to vector<8x32xf32>
    %226 = arith.negf %225 : vector<8x32xf32>
    %227 = math.exp %226 : vector<8x32xf32>
    %cst_74 = arith.constant 1.000000e+00 : f32
    %228 = vector.broadcast %cst_74 : f32 to vector<8x32xf32>
    %229 = arith.addf %228, %227 : vector<8x32xf32>
    %230 = arith.divf %228, %229 : vector<8x32xf32>
    %231 = vector.extract_strided_slice %224 {offsets = [0, 32], sizes = [8, 32], strides = [1, 1]} : vector<8x128xf32> to vector<8x32xf32>
    %232 = arith.negf %231 : vector<8x32xf32>
    %233 = math.exp %232 : vector<8x32xf32>
    %cst_75 = arith.constant 1.000000e+00 : f32
    %234 = vector.broadcast %cst_75 : f32 to vector<8x32xf32>
    %235 = arith.addf %234, %233 : vector<8x32xf32>
    %236 = arith.divf %234, %235 : vector<8x32xf32>
    %237 = vector.extract_strided_slice %224 {offsets = [0, 64], sizes = [8, 32], strides = [1, 1]} : vector<8x128xf32> to vector<8x32xf32>
    %238 = math.tanh %237 : vector<8x32xf32>
    %239 = vector.extract_strided_slice %224 {offsets = [0, 96], sizes = [8, 32], strides = [1, 1]} : vector<8x128xf32> to vector<8x32xf32>
    %240 = arith.negf %239 : vector<8x32xf32>
    %241 = math.exp %240 : vector<8x32xf32>
    %cst_76 = arith.constant 1.000000e+00 : f32
    %242 = vector.broadcast %cst_76 : f32 to vector<8x32xf32>
    %243 = arith.addf %242, %241 : vector<8x32xf32>
    %244 = arith.divf %242, %243 : vector<8x32xf32>
    %245 = arith.mulf %236, %189 : vector<8x32xf32>
    %246 = arith.mulf %230, %238 : vector<8x32xf32>
    %247 = arith.addf %245, %246 : vector<8x32xf32>
    %248 = math.tanh %247 : vector<8x32xf32>
    %249 = arith.mulf %244, %248 : vector<8x32xf32>
    %c32_77 = arith.constant 32 : index
    %c0_78 = arith.constant 0 : index
    %250 = vector.load %arg19[%c32_77, %c0_78] : memref<64x32xf32, #tpu.memory_space<vmem>>, vector<8x32xf32>
    tpu.vector_store %arg19[%c32_77, %c0_78], %249 {strides = array<i32>} : memref<64x32xf32, #tpu.memory_space<vmem>>, vector<8x32xf32>,
    %c32_79 = arith.constant 32 : index
    %c0_80 = arith.constant 0 : index
    %251 = vector.load %arg16[%c32_79, %c0_80] : memref<64x128xf32, #tpu.memory_space<vmem>>, vector<8x128xf32>
    %cst_81 = arith.constant dense<0.000000e+00> : vector<8x128xf32>
    %252 = tpu.matmul %220, %13, %cst_81 {dimension_numbers = #tpu.dot_dimension_numbers<[1], [0], [0], [1], [0, 0, 1, 1], [], []>} : vector<8x32xf32>, vector<32x128xf32>, vector<8x128xf32> -> vector<8x128xf32>
    %253 = arith.addf %251, %252 : vector<8x128xf32>
    %254 = vector.extract_strided_slice %253 {offsets = [0, 0], sizes = [8, 32], strides = [1, 1]} : vector<8x128xf32> to vector<8x32xf32>
    %255 = arith.negf %254 : vector<8x32xf32>
    %256 = math.exp %255 : vector<8x32xf32>
    %cst_82 = arith.constant 1.000000e+00 : f32
    %257 = vector.broadcast %cst_82 : f32 to vector<8x32xf32>
    %258 = arith.addf %257, %256 : vector<8x32xf32>
    %259 = arith.divf %257, %258 : vector<8x32xf32>
    %260 = vector.extract_strided_slice %253 {offsets = [0, 32], sizes = [8, 32], strides = [1, 1]} : vector<8x128xf32> to vector<8x32xf32>
    %261 = arith.negf %260 : vector<8x32xf32>
    %262 = math.exp %261 : vector<8x32xf32>
    %cst_83 = arith.constant 1.000000e+00 : f32
    %263 = vector.broadcast %cst_83 : f32 to vector<8x32xf32>
    %264 = arith.addf %263, %262 : vector<8x32xf32>
    %265 = arith.divf %263, %264 : vector<8x32xf32>
    %266 = vector.extract_strided_slice %253 {offsets = [0, 64], sizes = [8, 32], strides = [1, 1]} : vector<8x128xf32> to vector<8x32xf32>
    %267 = math.tanh %266 : vector<8x32xf32>
    %268 = vector.extract_strided_slice %253 {offsets = [0, 96], sizes = [8, 32], strides = [1, 1]} : vector<8x128xf32> to vector<8x32xf32>
    %269 = arith.negf %268 : vector<8x32xf32>
    %270 = math.exp %269 : vector<8x32xf32>
    %cst_84 = arith.constant 1.000000e+00 : f32
    %271 = vector.broadcast %cst_84 : f32 to vector<8x32xf32>
    %272 = arith.addf %271, %270 : vector<8x32xf32>
    %273 = arith.divf %271, %272 : vector<8x32xf32>
    %274 = arith.mulf %265, %218 : vector<8x32xf32>
    %275 = arith.mulf %259, %267 : vector<8x32xf32>
    %276 = arith.addf %274, %275 : vector<8x32xf32>
    %277 = math.tanh %276 : vector<8x32xf32>
    %278 = arith.mulf %273, %277 : vector<8x32xf32>
    %c32_85 = arith.constant 32 : index
    %c0_86 = arith.constant 0 : index
    %279 = vector.load %arg17[%c32_85, %c0_86] : memref<64x32xf32, #tpu.memory_space<vmem>>, vector<8x32xf32>
    tpu.vector_store %arg17[%c32_85, %c0_86], %278 {strides = array<i32>} : memref<64x32xf32, #tpu.memory_space<vmem>>, vector<8x32xf32>,
    %c24_87 = arith.constant 24 : index
    %c0_88 = arith.constant 0 : index
    %280 = vector.load %arg18[%c24_87, %c0_88] : memref<64x128xf32, #tpu.memory_space<vmem>>, vector<8x128xf32>
    %cst_89 = arith.constant dense<0.000000e+00> : vector<8x128xf32>
    %281 = tpu.matmul %249, %14, %cst_89 {dimension_numbers = #tpu.dot_dimension_numbers<[1], [0], [0], [1], [0, 0, 1, 1], [], []>} : vector<8x32xf32>, vector<32x128xf32>, vector<8x128xf32> -> vector<8x128xf32>
    %282 = arith.addf %280, %281 : vector<8x128xf32>
    %283 = vector.extract_strided_slice %282 {offsets = [0, 0], sizes = [8, 32], strides = [1, 1]} : vector<8x128xf32> to vector<8x32xf32>
    %284 = arith.negf %283 : vector<8x32xf32>
    %285 = math.exp %284 : vector<8x32xf32>
    %cst_90 = arith.constant 1.000000e+00 : f32
    %286 = vector.broadcast %cst_90 : f32 to vector<8x32xf32>
    %287 = arith.addf %286, %285 : vector<8x32xf32>
    %288 = arith.divf %286, %287 : vector<8x32xf32>
    %289 = vector.extract_strided_slice %282 {offsets = [0, 32], sizes = [8, 32], strides = [1, 1]} : vector<8x128xf32> to vector<8x32xf32>
    %290 = arith.negf %289 : vector<8x32xf32>
    %291 = math.exp %290 : vector<8x32xf32>
    %cst_91 = arith.constant 1.000000e+00 : f32
    %292 = vector.broadcast %cst_91 : f32 to vector<8x32xf32>
    %293 = arith.addf %292, %291 : vector<8x32xf32>
    %294 = arith.divf %292, %293 : vector<8x32xf32>
    %295 = vector.extract_strided_slice %282 {offsets = [0, 64], sizes = [8, 32], strides = [1, 1]} : vector<8x128xf32> to vector<8x32xf32>
    %296 = math.tanh %295 : vector<8x32xf32>
    %297 = vector.extract_strided_slice %282 {offsets = [0, 96], sizes = [8, 32], strides = [1, 1]} : vector<8x128xf32> to vector<8x32xf32>
    %298 = arith.negf %297 : vector<8x32xf32>
    %299 = math.exp %298 : vector<8x32xf32>
    %cst_92 = arith.constant 1.000000e+00 : f32
    %300 = vector.broadcast %cst_92 : f32 to vector<8x32xf32>
    %301 = arith.addf %300, %299 : vector<8x32xf32>
    %302 = arith.divf %300, %301 : vector<8x32xf32>
    %303 = arith.mulf %294, %247 : vector<8x32xf32>
    %304 = arith.mulf %288, %296 : vector<8x32xf32>
    %305 = arith.addf %303, %304 : vector<8x32xf32>
    %306 = math.tanh %305 : vector<8x32xf32>
    %307 = arith.mulf %302, %306 : vector<8x32xf32>
    %c24_93 = arith.constant 24 : index
    %c0_94 = arith.constant 0 : index
    %308 = vector.load %arg19[%c24_93, %c0_94] : memref<64x32xf32, #tpu.memory_space<vmem>>, vector<8x32xf32>
    tpu.vector_store %arg19[%c24_93, %c0_94], %307 {strides = array<i32>} : memref<64x32xf32, #tpu.memory_space<vmem>>, vector<8x32xf32>,
    %c40_95 = arith.constant 40 : index
    %c0_96 = arith.constant 0 : index
    %309 = vector.load %arg16[%c40_95, %c0_96] : memref<64x128xf32, #tpu.memory_space<vmem>>, vector<8x128xf32>
    %cst_97 = arith.constant dense<0.000000e+00> : vector<8x128xf32>
    %310 = tpu.matmul %278, %13, %cst_97 {dimension_numbers = #tpu.dot_dimension_numbers<[1], [0], [0], [1], [0, 0, 1, 1], [], []>} : vector<8x32xf32>, vector<32x128xf32>, vector<8x128xf32> -> vector<8x128xf32>
    %311 = arith.addf %309, %310 : vector<8x128xf32>
    %312 = vector.extract_strided_slice %311 {offsets = [0, 0], sizes = [8, 32], strides = [1, 1]} : vector<8x128xf32> to vector<8x32xf32>
    %313 = arith.negf %312 : vector<8x32xf32>
    %314 = math.exp %313 : vector<8x32xf32>
    %cst_98 = arith.constant 1.000000e+00 : f32
    %315 = vector.broadcast %cst_98 : f32 to vector<8x32xf32>
    %316 = arith.addf %315, %314 : vector<8x32xf32>
    %317 = arith.divf %315, %316 : vector<8x32xf32>
    %318 = vector.extract_strided_slice %311 {offsets = [0, 32], sizes = [8, 32], strides = [1, 1]} : vector<8x128xf32> to vector<8x32xf32>
    %319 = arith.negf %318 : vector<8x32xf32>
    %320 = math.exp %319 : vector<8x32xf32>
    %cst_99 = arith.constant 1.000000e+00 : f32
    %321 = vector.broadcast %cst_99 : f32 to vector<8x32xf32>
    %322 = arith.addf %321, %320 : vector<8x32xf32>
    %323 = arith.divf %321, %322 : vector<8x32xf32>
    %324 = vector.extract_strided_slice %311 {offsets = [0, 64], sizes = [8, 32], strides = [1, 1]} : vector<8x128xf32> to vector<8x32xf32>
    %325 = math.tanh %324 : vector<8x32xf32>
    %326 = vector.extract_strided_slice %311 {offsets = [0, 96], sizes = [8, 32], strides = [1, 1]} : vector<8x128xf32> to vector<8x32xf32>
    %327 = arith.negf %326 : vector<8x32xf32>
    %328 = math.exp %327 : vector<8x32xf32>
    %cst_100 = arith.constant 1.000000e+00 : f32
    %329 = vector.broadcast %cst_100 : f32 to vector<8x32xf32>
    %330 = arith.addf %329, %328 : vector<8x32xf32>
    %331 = arith.divf %329, %330 : vector<8x32xf32>
    %332 = arith.mulf %323, %276 : vector<8x32xf32>
    %333 = arith.mulf %317, %325 : vector<8x32xf32>
    %334 = arith.addf %332, %333 : vector<8x32xf32>
    %335 = math.tanh %334 : vector<8x32xf32>
    %336 = arith.mulf %331, %335 : vector<8x32xf32>
    %c40_101 = arith.constant 40 : index
    %c0_102 = arith.constant 0 : index
    %337 = vector.load %arg17[%c40_101, %c0_102] : memref<64x32xf32, #tpu.memory_space<vmem>>, vector<8x32xf32>
    tpu.vector_store %arg17[%c40_101, %c0_102], %336 {strides = array<i32>} : memref<64x32xf32, #tpu.memory_space<vmem>>, vector<8x32xf32>,
    %c16_103 = arith.constant 16 : index
    %c0_104 = arith.constant 0 : index
    %338 = vector.load %arg18[%c16_103, %c0_104] : memref<64x128xf32, #tpu.memory_space<vmem>>, vector<8x128xf32>
    %cst_105 = arith.constant dense<0.000000e+00> : vector<8x128xf32>
    %339 = tpu.matmul %307, %14, %cst_105 {dimension_numbers = #tpu.dot_dimension_numbers<[1], [0], [0], [1], [0, 0, 1, 1], [], []>} : vector<8x32xf32>, vector<32x128xf32>, vector<8x128xf32> -> vector<8x128xf32>
    %340 = arith.addf %338, %339 : vector<8x128xf32>
    %341 = vector.extract_strided_slice %340 {offsets = [0, 0], sizes = [8, 32], strides = [1, 1]} : vector<8x128xf32> to vector<8x32xf32>
    %342 = arith.negf %341 : vector<8x32xf32>
    %343 = math.exp %342 : vector<8x32xf32>
    %cst_106 = arith.constant 1.000000e+00 : f32
    %344 = vector.broadcast %cst_106 : f32 to vector<8x32xf32>
    %345 = arith.addf %344, %343 : vector<8x32xf32>
    %346 = arith.divf %344, %345 : vector<8x32xf32>
    %347 = vector.extract_strided_slice %340 {offsets = [0, 32], sizes = [8, 32], strides = [1, 1]} : vector<8x128xf32> to vector<8x32xf32>
    %348 = arith.negf %347 : vector<8x32xf32>
    %349 = math.exp %348 : vector<8x32xf32>
    %cst_107 = arith.constant 1.000000e+00 : f32
    %350 = vector.broadcast %cst_107 : f32 to vector<8x32xf32>
    %351 = arith.addf %350, %349 : vector<8x32xf32>
    %352 = arith.divf %350, %351 : vector<8x32xf32>
    %353 = vector.extract_strided_slice %340 {offsets = [0, 64], sizes = [8, 32], strides = [1, 1]} : vector<8x128xf32> to vector<8x32xf32>
    %354 = math.tanh %353 : vector<8x32xf32>
    %355 = vector.extract_strided_slice %340 {offsets = [0, 96], sizes = [8, 32], strides = [1, 1]} : vector<8x128xf32> to vector<8x32xf32>
    %356 = arith.negf %355 : vector<8x32xf32>
    %357 = math.exp %356 : vector<8x32xf32>
    %cst_108 = arith.constant 1.000000e+00 : f32
    %358 = vector.broadcast %cst_108 : f32 to vector<8x32xf32>
    %359 = arith.addf %358, %357 : vector<8x32xf32>
    %360 = arith.divf %358, %359 : vector<8x32xf32>
    %361 = arith.mulf %352, %305 : vector<8x32xf32>
    %362 = arith.mulf %346, %354 : vector<8x32xf32>
    %363 = arith.addf %361, %362 : vector<8x32xf32>
    %364 = math.tanh %363 : vector<8x32xf32>
    %365 = arith.mulf %360, %364 : vector<8x32xf32>
    %c16_109 = arith.constant 16 : index
    %c0_110 = arith.constant 0 : index
    %366 = vector.load %arg19[%c16_109, %c0_110] : memref<64x32xf32, #tpu.memory_space<vmem>>, vector<8x32xf32>
    tpu.vector_store %arg19[%c16_109, %c0_110], %365 {strides = array<i32>} : memref<64x32xf32, #tpu.memory_space<vmem>>, vector<8x32xf32>,
    %c48_111 = arith.constant 48 : index
    %c0_112 = arith.constant 0 : index
    %367 = vector.load %arg16[%c48_111, %c0_112] : memref<64x128xf32, #tpu.memory_space<vmem>>, vector<8x128xf32>
    %cst_113 = arith.constant dense<0.000000e+00> : vector<8x128xf32>
    %368 = tpu.matmul %336, %13, %cst_113 {dimension_numbers = #tpu.dot_dimension_numbers<[1], [0], [0], [1], [0, 0, 1, 1], [], []>} : vector<8x32xf32>, vector<32x128xf32>, vector<8x128xf32> -> vector<8x128xf32>
    %369 = arith.addf %367, %368 : vector<8x128xf32>
    %370 = vector.extract_strided_slice %369 {offsets = [0, 0], sizes = [8, 32], strides = [1, 1]} : vector<8x128xf32> to vector<8x32xf32>
    %371 = arith.negf %370 : vector<8x32xf32>
    %372 = math.exp %371 : vector<8x32xf32>
    %cst_114 = arith.constant 1.000000e+00 : f32
    %373 = vector.broadcast %cst_114 : f32 to vector<8x32xf32>
    %374 = arith.addf %373, %372 : vector<8x32xf32>
    %375 = arith.divf %373, %374 : vector<8x32xf32>
    %376 = vector.extract_strided_slice %369 {offsets = [0, 32], sizes = [8, 32], strides = [1, 1]} : vector<8x128xf32> to vector<8x32xf32>
    %377 = arith.negf %376 : vector<8x32xf32>
    %378 = math.exp %377 : vector<8x32xf32>
    %cst_115 = arith.constant 1.000000e+00 : f32
    %379 = vector.broadcast %cst_115 : f32 to vector<8x32xf32>
    %380 = arith.addf %379, %378 : vector<8x32xf32>
    %381 = arith.divf %379, %380 : vector<8x32xf32>
    %382 = vector.extract_strided_slice %369 {offsets = [0, 64], sizes = [8, 32], strides = [1, 1]} : vector<8x128xf32> to vector<8x32xf32>
    %383 = math.tanh %382 : vector<8x32xf32>
    %384 = vector.extract_strided_slice %369 {offsets = [0, 96], sizes = [8, 32], strides = [1, 1]} : vector<8x128xf32> to vector<8x32xf32>
    %385 = arith.negf %384 : vector<8x32xf32>
    %386 = math.exp %385 : vector<8x32xf32>
    %cst_116 = arith.constant 1.000000e+00 : f32
    %387 = vector.broadcast %cst_116 : f32 to vector<8x32xf32>
    %388 = arith.addf %387, %386 : vector<8x32xf32>
    %389 = arith.divf %387, %388 : vector<8x32xf32>
    %390 = arith.mulf %381, %334 : vector<8x32xf32>
    %391 = arith.mulf %375, %383 : vector<8x32xf32>
    %392 = arith.addf %390, %391 : vector<8x32xf32>
    %393 = math.tanh %392 : vector<8x32xf32>
    %394 = arith.mulf %389, %393 : vector<8x32xf32>
    %c48_117 = arith.constant 48 : index
    %c0_118 = arith.constant 0 : index
    %395 = vector.load %arg17[%c48_117, %c0_118] : memref<64x32xf32, #tpu.memory_space<vmem>>, vector<8x32xf32>
    tpu.vector_store %arg17[%c48_117, %c0_118], %394 {strides = array<i32>} : memref<64x32xf32, #tpu.memory_space<vmem>>, vector<8x32xf32>,
    %c8_119 = arith.constant 8 : index
    %c0_120 = arith.constant 0 : index
    %396 = vector.load %arg18[%c8_119, %c0_120] : memref<64x128xf32, #tpu.memory_space<vmem>>, vector<8x128xf32>
    %cst_121 = arith.constant dense<0.000000e+00> : vector<8x128xf32>
    %397 = tpu.matmul %365, %14, %cst_121 {dimension_numbers = #tpu.dot_dimension_numbers<[1], [0], [0], [1], [0, 0, 1, 1], [], []>} : vector<8x32xf32>, vector<32x128xf32>, vector<8x128xf32> -> vector<8x128xf32>
    %398 = arith.addf %396, %397 : vector<8x128xf32>
    %399 = vector.extract_strided_slice %398 {offsets = [0, 0], sizes = [8, 32], strides = [1, 1]} : vector<8x128xf32> to vector<8x32xf32>
    %400 = arith.negf %399 : vector<8x32xf32>
    %401 = math.exp %400 : vector<8x32xf32>
    %cst_122 = arith.constant 1.000000e+00 : f32
    %402 = vector.broadcast %cst_122 : f32 to vector<8x32xf32>
    %403 = arith.addf %402, %401 : vector<8x32xf32>
    %404 = arith.divf %402, %403 : vector<8x32xf32>
    %405 = vector.extract_strided_slice %398 {offsets = [0, 32], sizes = [8, 32], strides = [1, 1]} : vector<8x128xf32> to vector<8x32xf32>
    %406 = arith.negf %405 : vector<8x32xf32>
    %407 = math.exp %406 : vector<8x32xf32>
    %cst_123 = arith.constant 1.000000e+00 : f32
    %408 = vector.broadcast %cst_123 : f32 to vector<8x32xf32>
    %409 = arith.addf %408, %407 : vector<8x32xf32>
    %410 = arith.divf %408, %409 : vector<8x32xf32>
    %411 = vector.extract_strided_slice %398 {offsets = [0, 64], sizes = [8, 32], strides = [1, 1]} : vector<8x128xf32> to vector<8x32xf32>
    %412 = math.tanh %411 : vector<8x32xf32>
    %413 = vector.extract_strided_slice %398 {offsets = [0, 96], sizes = [8, 32], strides = [1, 1]} : vector<8x128xf32> to vector<8x32xf32>
    %414 = arith.negf %413 : vector<8x32xf32>
    %415 = math.exp %414 : vector<8x32xf32>
    %cst_124 = arith.constant 1.000000e+00 : f32
    %416 = vector.broadcast %cst_124 : f32 to vector<8x32xf32>
    %417 = arith.addf %416, %415 : vector<8x32xf32>
    %418 = arith.divf %416, %417 : vector<8x32xf32>
    %419 = arith.mulf %410, %363 : vector<8x32xf32>
    %420 = arith.mulf %404, %412 : vector<8x32xf32>
    %421 = arith.addf %419, %420 : vector<8x32xf32>
    %422 = math.tanh %421 : vector<8x32xf32>
    %423 = arith.mulf %418, %422 : vector<8x32xf32>
    %c8_125 = arith.constant 8 : index
    %c0_126 = arith.constant 0 : index
    %424 = vector.load %arg19[%c8_125, %c0_126] : memref<64x32xf32, #tpu.memory_space<vmem>>, vector<8x32xf32>
    tpu.vector_store %arg19[%c8_125, %c0_126], %423 {strides = array<i32>} : memref<64x32xf32, #tpu.memory_space<vmem>>, vector<8x32xf32>,
    %c56_127 = arith.constant 56 : index
    %c0_128 = arith.constant 0 : index
    %425 = vector.load %arg16[%c56_127, %c0_128] : memref<64x128xf32, #tpu.memory_space<vmem>>, vector<8x128xf32>
    %cst_129 = arith.constant dense<0.000000e+00> : vector<8x128xf32>
    %426 = tpu.matmul %394, %13, %cst_129 {dimension_numbers = #tpu.dot_dimension_numbers<[1], [0], [0], [1], [0, 0, 1, 1], [], []>} : vector<8x32xf32>, vector<32x128xf32>, vector<8x128xf32> -> vector<8x128xf32>
    %427 = arith.addf %425, %426 : vector<8x128xf32>
    %428 = vector.extract_strided_slice %427 {offsets = [0, 0], sizes = [8, 32], strides = [1, 1]} : vector<8x128xf32> to vector<8x32xf32>
    %429 = arith.negf %428 : vector<8x32xf32>
    %430 = math.exp %429 : vector<8x32xf32>
    %cst_130 = arith.constant 1.000000e+00 : f32
    %431 = vector.broadcast %cst_130 : f32 to vector<8x32xf32>
    %432 = arith.addf %431, %430 : vector<8x32xf32>
    %433 = arith.divf %431, %432 : vector<8x32xf32>
    %434 = vector.extract_strided_slice %427 {offsets = [0, 32], sizes = [8, 32], strides = [1, 1]} : vector<8x128xf32> to vector<8x32xf32>
    %435 = arith.negf %434 : vector<8x32xf32>
    %436 = math.exp %435 : vector<8x32xf32>
    %cst_131 = arith.constant 1.000000e+00 : f32
    %437 = vector.broadcast %cst_131 : f32 to vector<8x32xf32>
    %438 = arith.addf %437, %436 : vector<8x32xf32>
    %439 = arith.divf %437, %438 : vector<8x32xf32>
    %440 = vector.extract_strided_slice %427 {offsets = [0, 64], sizes = [8, 32], strides = [1, 1]} : vector<8x128xf32> to vector<8x32xf32>
    %441 = math.tanh %440 : vector<8x32xf32>
    %442 = vector.extract_strided_slice %427 {offsets = [0, 96], sizes = [8, 32], strides = [1, 1]} : vector<8x128xf32> to vector<8x32xf32>
    %443 = arith.negf %442 : vector<8x32xf32>
    %444 = math.exp %443 : vector<8x32xf32>
    %cst_132 = arith.constant 1.000000e+00 : f32
    %445 = vector.broadcast %cst_132 : f32 to vector<8x32xf32>
    %446 = arith.addf %445, %444 : vector<8x32xf32>
    %447 = arith.divf %445, %446 : vector<8x32xf32>
    %448 = arith.mulf %439, %392 : vector<8x32xf32>
    %449 = arith.mulf %433, %441 : vector<8x32xf32>
    %450 = arith.addf %448, %449 : vector<8x32xf32>
    %451 = math.tanh %450 : vector<8x32xf32>
    %452 = arith.mulf %447, %451 : vector<8x32xf32>
    %c56_133 = arith.constant 56 : index
    %c0_134 = arith.constant 0 : index
    %453 = vector.load %arg17[%c56_133, %c0_134] : memref<64x32xf32, #tpu.memory_space<vmem>>, vector<8x32xf32>
    tpu.vector_store %arg17[%c56_133, %c0_134], %452 {strides = array<i32>} : memref<64x32xf32, #tpu.memory_space<vmem>>, vector<8x32xf32>,
    %c0_135 = arith.constant 0 : index
    %c0_136 = arith.constant 0 : index
    %454 = vector.load %arg18[%c0_135, %c0_136] : memref<64x128xf32, #tpu.memory_space<vmem>>, vector<8x128xf32>
    %cst_137 = arith.constant dense<0.000000e+00> : vector<8x128xf32>
    %455 = tpu.matmul %423, %14, %cst_137 {dimension_numbers = #tpu.dot_dimension_numbers<[1], [0], [0], [1], [0, 0, 1, 1], [], []>} : vector<8x32xf32>, vector<32x128xf32>, vector<8x128xf32> -> vector<8x128xf32>
    %456 = arith.addf %454, %455 : vector<8x128xf32>
    %457 = vector.extract_strided_slice %456 {offsets = [0, 0], sizes = [8, 32], strides = [1, 1]} : vector<8x128xf32> to vector<8x32xf32>
    %458 = arith.negf %457 : vector<8x32xf32>
    %459 = math.exp %458 : vector<8x32xf32>
    %cst_138 = arith.constant 1.000000e+00 : f32
    %460 = vector.broadcast %cst_138 : f32 to vector<8x32xf32>
    %461 = arith.addf %460, %459 : vector<8x32xf32>
    %462 = arith.divf %460, %461 : vector<8x32xf32>
    %463 = vector.extract_strided_slice %456 {offsets = [0, 32], sizes = [8, 32], strides = [1, 1]} : vector<8x128xf32> to vector<8x32xf32>
    %464 = arith.negf %463 : vector<8x32xf32>
    %465 = math.exp %464 : vector<8x32xf32>
    %cst_139 = arith.constant 1.000000e+00 : f32
    %466 = vector.broadcast %cst_139 : f32 to vector<8x32xf32>
    %467 = arith.addf %466, %465 : vector<8x32xf32>
    %468 = arith.divf %466, %467 : vector<8x32xf32>
    %469 = vector.extract_strided_slice %456 {offsets = [0, 64], sizes = [8, 32], strides = [1, 1]} : vector<8x128xf32> to vector<8x32xf32>
    %470 = math.tanh %469 : vector<8x32xf32>
    %471 = vector.extract_strided_slice %456 {offsets = [0, 96], sizes = [8, 32], strides = [1, 1]} : vector<8x128xf32> to vector<8x32xf32>
    %472 = arith.negf %471 : vector<8x32xf32>
    %473 = math.exp %472 : vector<8x32xf32>
    %cst_140 = arith.constant 1.000000e+00 : f32
    %474 = vector.broadcast %cst_140 : f32 to vector<8x32xf32>
    %475 = arith.addf %474, %473 : vector<8x32xf32>
    %476 = arith.divf %474, %475 : vector<8x32xf32>
    %477 = arith.mulf %468, %421 : vector<8x32xf32>
    %478 = arith.mulf %462, %470 : vector<8x32xf32>
    %479 = arith.addf %477, %478 : vector<8x32xf32>
    %480 = math.tanh %479 : vector<8x32xf32>
    %481 = arith.mulf %476, %480 : vector<8x32xf32>
    %c0_141 = arith.constant 0 : index
    %c0_142 = arith.constant 0 : index
    %482 = vector.load %arg19[%c0_141, %c0_142] : memref<64x32xf32, #tpu.memory_space<vmem>>, vector<8x32xf32>
    tpu.vector_store %arg19[%c0_141, %c0_142], %481 {strides = array<i32>} : memref<64x32xf32, #tpu.memory_space<vmem>>, vector<8x32xf32>,
    %c0_143 = arith.constant 0 : index
    %c0_144 = arith.constant 0 : index
    %483 = vector.load %arg17[%c0_143, %c0_144] : memref<64x32xf32, #tpu.memory_space<vmem>>, vector<64x32xf32>
    %c0_145 = arith.constant 0 : index
    %c0_146 = arith.constant 0 : index
    %484 = vector.load %arg19[%c0_145, %c0_146] : memref<64x32xf32, #tpu.memory_space<vmem>>, vector<64x32xf32>
    %c0_147 = arith.constant 0 : index
    %c0_148 = arith.constant 0 : index
    %485 = vector.load %arg7[%c0_147, %c0_148] : memref<64x128xf32, #tpu.memory_space<vmem>>, vector<64x128xf32>
    %486 = vector.extract_strided_slice %485 {offsets = [0, 0], sizes = [32, 128], strides = [1, 1]} : vector<64x128xf32> to vector<32x128xf32>
    %cst_149 = arith.constant dense<0.000000e+00> : vector<64x128xf32>
    %487 = tpu.matmul %483, %486, %cst_149 {dimension_numbers = #tpu.dot_dimension_numbers<[1], [0], [0], [1], [0, 0, 1, 1], [], []>} : vector<64x32xf32>, vector<32x128xf32>, vector<64x128xf32> -> vector<64x128xf32>
    %488 = vector.extract_strided_slice %485 {offsets = [32, 0], sizes = [32, 128], strides = [1, 1]} : vector<64x128xf32> to vector<32x128xf32>
    %cst_150 = arith.constant dense<0.000000e+00> : vector<64x128xf32>
    %489 = tpu.matmul %484, %488, %cst_150 {dimension_numbers = #tpu.dot_dimension_numbers<[1], [0], [0], [1], [0, 0, 1, 1], [], []>} : vector<64x32xf32>, vector<32x128xf32>, vector<64x128xf32> -> vector<64x128xf32>
    %490 = arith.addf %487, %489 : vector<64x128xf32>
    %c0_151 = arith.constant 0 : index
    %c0_152 = arith.constant 0 : index
    %491 = vector.load %arg9[%c0_151, %c0_152] : memref<1x128xf32, #tpu.memory_space<vmem>>, vector<1x128xf32>
    %492 = vector.broadcast %491 : vector<1x128xf32> to vector<64x128xf32>
    %493 = arith.addf %490, %492 : vector<64x128xf32>
    %c0_153 = arith.constant 0 : index
    %c0_154 = arith.constant 0 : index
    %494 = vector.load %arg10[%c0_153, %c0_154] : memref<64x128xf32, #tpu.memory_space<vmem>>, vector<64x128xf32>
    %495 = vector.extract_strided_slice %494 {offsets = [0, 0], sizes = [32, 128], strides = [1, 1]} : vector<64x128xf32> to vector<32x128xf32>
    %cst_155 = arith.constant dense<0.000000e+00> : vector<64x128xf32>
    %496 = tpu.matmul %483, %495, %cst_155 {dimension_numbers = #tpu.dot_dimension_numbers<[1], [0], [0], [1], [0, 0, 1, 1], [], []>} : vector<64x32xf32>, vector<32x128xf32>, vector<64x128xf32> -> vector<64x128xf32>
    %497 = vector.extract_strided_slice %494 {offsets = [32, 0], sizes = [32, 128], strides = [1, 1]} : vector<64x128xf32> to vector<32x128xf32>
    %cst_156 = arith.constant dense<0.000000e+00> : vector<64x128xf32>
    %498 = tpu.matmul %484, %497, %cst_156 {dimension_numbers = #tpu.dot_dimension_numbers<[1], [0], [0], [1], [0, 0, 1, 1], [], []>} : vector<64x32xf32>, vector<32x128xf32>, vector<64x128xf32> -> vector<64x128xf32>
    %499 = arith.addf %496, %498 : vector<64x128xf32>
    %c0_157 = arith.constant 0 : index
    %c0_158 = arith.constant 0 : index
    %500 = vector.load %arg12[%c0_157, %c0_158] : memref<1x128xf32, #tpu.memory_space<vmem>>, vector<1x128xf32>
    %501 = vector.broadcast %500 : vector<1x128xf32> to vector<64x128xf32>
    %502 = arith.addf %499, %501 : vector<64x128xf32>
    %c0_159 = arith.constant 0 : index
    %c0_160 = arith.constant 0 : index
    %503 = vector.load %arg16[%c0_159, %c0_160] : memref<64x128xf32, #tpu.memory_space<vmem>>, vector<64x128xf32>
    tpu.vector_store %arg16[%c0_159, %c0_160], %493 {strides = array<i32>} : memref<64x128xf32, #tpu.memory_space<vmem>>, vector<64x128xf32>,
    %c0_161 = arith.constant 0 : index
    %c0_162 = arith.constant 0 : index
    %504 = vector.load %arg18[%c0_161, %c0_162] : memref<64x128xf32, #tpu.memory_space<vmem>>, vector<64x128xf32>
    tpu.vector_store %arg18[%c0_161, %c0_162], %502 {strides = array<i32>} : memref<64x128xf32, #tpu.memory_space<vmem>>, vector<64x128xf32>,
    %c0_163 = arith.constant 0 : index
    %c0_164 = arith.constant 0 : index
    %505 = vector.load %arg8[%c0_163, %c0_164] : memref<32x128xf32, #tpu.memory_space<vmem>>, vector<32x128xf32>
    %c0_165 = arith.constant 0 : index
    %c0_166 = arith.constant 0 : index
    %506 = vector.load %arg11[%c0_165, %c0_166] : memref<32x128xf32, #tpu.memory_space<vmem>>, vector<32x128xf32>
    %cst_167 = arith.constant 0.000000e+00 : f32
    %507 = vector.broadcast %cst_167 : f32 to vector<8x32xf32>
    %cst_168 = arith.constant 0.000000e+00 : f32
    %508 = vector.broadcast %cst_168 : f32 to vector<8x32xf32>
    %cst_169 = arith.constant 0.000000e+00 : f32
    %509 = vector.broadcast %cst_169 : f32 to vector<8x32xf32>
    %cst_170 = arith.constant 0.000000e+00 : f32
    %510 = vector.broadcast %cst_170 : f32 to vector<8x32xf32>
    %c0_171 = arith.constant 0 : index
    %c0_172 = arith.constant 0 : index
    %511 = vector.load %arg16[%c0_171, %c0_172] : memref<64x128xf32, #tpu.memory_space<vmem>>, vector<8x128xf32>
    %cst_173 = arith.constant dense<0.000000e+00> : vector<8x128xf32>
    %512 = tpu.matmul %507, %505, %cst_173 {dimension_numbers = #tpu.dot_dimension_numbers<[1], [0], [0], [1], [0, 0, 1, 1], [], []>} : vector<8x32xf32>, vector<32x128xf32>, vector<8x128xf32> -> vector<8x128xf32>
    %513 = arith.addf %511, %512 : vector<8x128xf32>
    %514 = vector.extract_strided_slice %513 {offsets = [0, 0], sizes = [8, 32], strides = [1, 1]} : vector<8x128xf32> to vector<8x32xf32>
    %515 = arith.negf %514 : vector<8x32xf32>
    %516 = math.exp %515 : vector<8x32xf32>
    %cst_174 = arith.constant 1.000000e+00 : f32
    %517 = vector.broadcast %cst_174 : f32 to vector<8x32xf32>
    %518 = arith.addf %517, %516 : vector<8x32xf32>
    %519 = arith.divf %517, %518 : vector<8x32xf32>
    %520 = vector.extract_strided_slice %513 {offsets = [0, 32], sizes = [8, 32], strides = [1, 1]} : vector<8x128xf32> to vector<8x32xf32>
    %521 = arith.negf %520 : vector<8x32xf32>
    %522 = math.exp %521 : vector<8x32xf32>
    %cst_175 = arith.constant 1.000000e+00 : f32
    %523 = vector.broadcast %cst_175 : f32 to vector<8x32xf32>
    %524 = arith.addf %523, %522 : vector<8x32xf32>
    %525 = arith.divf %523, %524 : vector<8x32xf32>
    %526 = vector.extract_strided_slice %513 {offsets = [0, 64], sizes = [8, 32], strides = [1, 1]} : vector<8x128xf32> to vector<8x32xf32>
    %527 = math.tanh %526 : vector<8x32xf32>
    %528 = vector.extract_strided_slice %513 {offsets = [0, 96], sizes = [8, 32], strides = [1, 1]} : vector<8x128xf32> to vector<8x32xf32>
    %529 = arith.negf %528 : vector<8x32xf32>
    %530 = math.exp %529 : vector<8x32xf32>
    %cst_176 = arith.constant 1.000000e+00 : f32
    %531 = vector.broadcast %cst_176 : f32 to vector<8x32xf32>
    %532 = arith.addf %531, %530 : vector<8x32xf32>
    %533 = arith.divf %531, %532 : vector<8x32xf32>
    %534 = arith.mulf %525, %508 : vector<8x32xf32>
    %535 = arith.mulf %519, %527 : vector<8x32xf32>
    %536 = arith.addf %534, %535 : vector<8x32xf32>
    %537 = math.tanh %536 : vector<8x32xf32>
    %538 = arith.mulf %533, %537 : vector<8x32xf32>
    %c56_177 = arith.constant 56 : index
    %c0_178 = arith.constant 0 : index
    %539 = vector.load %arg18[%c56_177, %c0_178] : memref<64x128xf32, #tpu.memory_space<vmem>>, vector<8x128xf32>
    %cst_179 = arith.constant dense<0.000000e+00> : vector<8x128xf32>
    %540 = tpu.matmul %509, %506, %cst_179 {dimension_numbers = #tpu.dot_dimension_numbers<[1], [0], [0], [1], [0, 0, 1, 1], [], []>} : vector<8x32xf32>, vector<32x128xf32>, vector<8x128xf32> -> vector<8x128xf32>
    %541 = arith.addf %539, %540 : vector<8x128xf32>
    %542 = vector.extract_strided_slice %541 {offsets = [0, 0], sizes = [8, 32], strides = [1, 1]} : vector<8x128xf32> to vector<8x32xf32>
    %543 = arith.negf %542 : vector<8x32xf32>
    %544 = math.exp %543 : vector<8x32xf32>
    %cst_180 = arith.constant 1.000000e+00 : f32
    %545 = vector.broadcast %cst_180 : f32 to vector<8x32xf32>
    %546 = arith.addf %545, %544 : vector<8x32xf32>
    %547 = arith.divf %545, %546 : vector<8x32xf32>
    %548 = vector.extract_strided_slice %541 {offsets = [0, 32], sizes = [8, 32], strides = [1, 1]} : vector<8x128xf32> to vector<8x32xf32>
    %549 = arith.negf %548 : vector<8x32xf32>
    %550 = math.exp %549 : vector<8x32xf32>
    %cst_181 = arith.constant 1.000000e+00 : f32
    %551 = vector.broadcast %cst_181 : f32 to vector<8x32xf32>
    %552 = arith.addf %551, %550 : vector<8x32xf32>
    %553 = arith.divf %551, %552 : vector<8x32xf32>
    %554 = vector.extract_strided_slice %541 {offsets = [0, 64], sizes = [8, 32], strides = [1, 1]} : vector<8x128xf32> to vector<8x32xf32>
    %555 = math.tanh %554 : vector<8x32xf32>
    %556 = vector.extract_strided_slice %541 {offsets = [0, 96], sizes = [8, 32], strides = [1, 1]} : vector<8x128xf32> to vector<8x32xf32>
    %557 = arith.negf %556 : vector<8x32xf32>
    %558 = math.exp %557 : vector<8x32xf32>
    %cst_182 = arith.constant 1.000000e+00 : f32
    %559 = vector.broadcast %cst_182 : f32 to vector<8x32xf32>
    %560 = arith.addf %559, %558 : vector<8x32xf32>
    %561 = arith.divf %559, %560 : vector<8x32xf32>
    %562 = arith.mulf %553, %510 : vector<8x32xf32>
    %563 = arith.mulf %547, %555 : vector<8x32xf32>
    %564 = arith.addf %562, %563 : vector<8x32xf32>
    %565 = math.tanh %564 : vector<8x32xf32>
    %566 = arith.mulf %561, %565 : vector<8x32xf32>
    %c8_183 = arith.constant 8 : index
    %c0_184 = arith.constant 0 : index
    %567 = vector.load %arg16[%c8_183, %c0_184] : memref<64x128xf32, #tpu.memory_space<vmem>>, vector<8x128xf32>
    %cst_185 = arith.constant dense<0.000000e+00> : vector<8x128xf32>
    %568 = tpu.matmul %538, %505, %cst_185 {dimension_numbers = #tpu.dot_dimension_numbers<[1], [0], [0], [1], [0, 0, 1, 1], [], []>} : vector<8x32xf32>, vector<32x128xf32>, vector<8x128xf32> -> vector<8x128xf32>
    %569 = arith.addf %567, %568 : vector<8x128xf32>
    %570 = vector.extract_strided_slice %569 {offsets = [0, 0], sizes = [8, 32], strides = [1, 1]} : vector<8x128xf32> to vector<8x32xf32>
    %571 = arith.negf %570 : vector<8x32xf32>
    %572 = math.exp %571 : vector<8x32xf32>
    %cst_186 = arith.constant 1.000000e+00 : f32
    %573 = vector.broadcast %cst_186 : f32 to vector<8x32xf32>
    %574 = arith.addf %573, %572 : vector<8x32xf32>
    %575 = arith.divf %573, %574 : vector<8x32xf32>
    %576 = vector.extract_strided_slice %569 {offsets = [0, 32], sizes = [8, 32], strides = [1, 1]} : vector<8x128xf32> to vector<8x32xf32>
    %577 = arith.negf %576 : vector<8x32xf32>
    %578 = math.exp %577 : vector<8x32xf32>
    %cst_187 = arith.constant 1.000000e+00 : f32
    %579 = vector.broadcast %cst_187 : f32 to vector<8x32xf32>
    %580 = arith.addf %579, %578 : vector<8x32xf32>
    %581 = arith.divf %579, %580 : vector<8x32xf32>
    %582 = vector.extract_strided_slice %569 {offsets = [0, 64], sizes = [8, 32], strides = [1, 1]} : vector<8x128xf32> to vector<8x32xf32>
    %583 = math.tanh %582 : vector<8x32xf32>
    %584 = vector.extract_strided_slice %569 {offsets = [0, 96], sizes = [8, 32], strides = [1, 1]} : vector<8x128xf32> to vector<8x32xf32>
    %585 = arith.negf %584 : vector<8x32xf32>
    %586 = math.exp %585 : vector<8x32xf32>
    %cst_188 = arith.constant 1.000000e+00 : f32
    %587 = vector.broadcast %cst_188 : f32 to vector<8x32xf32>
    %588 = arith.addf %587, %586 : vector<8x32xf32>
    %589 = arith.divf %587, %588 : vector<8x32xf32>
    %590 = arith.mulf %581, %536 : vector<8x32xf32>
    %591 = arith.mulf %575, %583 : vector<8x32xf32>
    %592 = arith.addf %590, %591 : vector<8x32xf32>
    %593 = math.tanh %592 : vector<8x32xf32>
    %594 = arith.mulf %589, %593 : vector<8x32xf32>
    %c48_189 = arith.constant 48 : index
    %c0_190 = arith.constant 0 : index
    %595 = vector.load %arg18[%c48_189, %c0_190] : memref<64x128xf32, #tpu.memory_space<vmem>>, vector<8x128xf32>
    %cst_191 = arith.constant dense<0.000000e+00> : vector<8x128xf32>
    %596 = tpu.matmul %566, %506, %cst_191 {dimension_numbers = #tpu.dot_dimension_numbers<[1], [0], [0], [1], [0, 0, 1, 1], [], []>} : vector<8x32xf32>, vector<32x128xf32>, vector<8x128xf32> -> vector<8x128xf32>
    %597 = arith.addf %595, %596 : vector<8x128xf32>
    %598 = vector.extract_strided_slice %597 {offsets = [0, 0], sizes = [8, 32], strides = [1, 1]} : vector<8x128xf32> to vector<8x32xf32>
    %599 = arith.negf %598 : vector<8x32xf32>
    %600 = math.exp %599 : vector<8x32xf32>
    %cst_192 = arith.constant 1.000000e+00 : f32
    %601 = vector.broadcast %cst_192 : f32 to vector<8x32xf32>
    %602 = arith.addf %601, %600 : vector<8x32xf32>
    %603 = arith.divf %601, %602 : vector<8x32xf32>
    %604 = vector.extract_strided_slice %597 {offsets = [0, 32], sizes = [8, 32], strides = [1, 1]} : vector<8x128xf32> to vector<8x32xf32>
    %605 = arith.negf %604 : vector<8x32xf32>
    %606 = math.exp %605 : vector<8x32xf32>
    %cst_193 = arith.constant 1.000000e+00 : f32
    %607 = vector.broadcast %cst_193 : f32 to vector<8x32xf32>
    %608 = arith.addf %607, %606 : vector<8x32xf32>
    %609 = arith.divf %607, %608 : vector<8x32xf32>
    %610 = vector.extract_strided_slice %597 {offsets = [0, 64], sizes = [8, 32], strides = [1, 1]} : vector<8x128xf32> to vector<8x32xf32>
    %611 = math.tanh %610 : vector<8x32xf32>
    %612 = vector.extract_strided_slice %597 {offsets = [0, 96], sizes = [8, 32], strides = [1, 1]} : vector<8x128xf32> to vector<8x32xf32>
    %613 = arith.negf %612 : vector<8x32xf32>
    %614 = math.exp %613 : vector<8x32xf32>
    %cst_194 = arith.constant 1.000000e+00 : f32
    %615 = vector.broadcast %cst_194 : f32 to vector<8x32xf32>
    %616 = arith.addf %615, %614 : vector<8x32xf32>
    %617 = arith.divf %615, %616 : vector<8x32xf32>
    %618 = arith.mulf %609, %564 : vector<8x32xf32>
    %619 = arith.mulf %603, %611 : vector<8x32xf32>
    %620 = arith.addf %618, %619 : vector<8x32xf32>
    %621 = math.tanh %620 : vector<8x32xf32>
    %622 = arith.mulf %617, %621 : vector<8x32xf32>
    %c16_195 = arith.constant 16 : index
    %c0_196 = arith.constant 0 : index
    %623 = vector.load %arg16[%c16_195, %c0_196] : memref<64x128xf32, #tpu.memory_space<vmem>>, vector<8x128xf32>
    %cst_197 = arith.constant dense<0.000000e+00> : vector<8x128xf32>
    %624 = tpu.matmul %594, %505, %cst_197 {dimension_numbers = #tpu.dot_dimension_numbers<[1], [0], [0], [1], [0, 0, 1, 1], [], []>} : vector<8x32xf32>, vector<32x128xf32>, vector<8x128xf32> -> vector<8x128xf32>
    %625 = arith.addf %623, %624 : vector<8x128xf32>
    %626 = vector.extract_strided_slice %625 {offsets = [0, 0], sizes = [8, 32], strides = [1, 1]} : vector<8x128xf32> to vector<8x32xf32>
    %627 = arith.negf %626 : vector<8x32xf32>
    %628 = math.exp %627 : vector<8x32xf32>
    %cst_198 = arith.constant 1.000000e+00 : f32
    %629 = vector.broadcast %cst_198 : f32 to vector<8x32xf32>
    %630 = arith.addf %629, %628 : vector<8x32xf32>
    %631 = arith.divf %629, %630 : vector<8x32xf32>
    %632 = vector.extract_strided_slice %625 {offsets = [0, 32], sizes = [8, 32], strides = [1, 1]} : vector<8x128xf32> to vector<8x32xf32>
    %633 = arith.negf %632 : vector<8x32xf32>
    %634 = math.exp %633 : vector<8x32xf32>
    %cst_199 = arith.constant 1.000000e+00 : f32
    %635 = vector.broadcast %cst_199 : f32 to vector<8x32xf32>
    %636 = arith.addf %635, %634 : vector<8x32xf32>
    %637 = arith.divf %635, %636 : vector<8x32xf32>
    %638 = vector.extract_strided_slice %625 {offsets = [0, 64], sizes = [8, 32], strides = [1, 1]} : vector<8x128xf32> to vector<8x32xf32>
    %639 = math.tanh %638 : vector<8x32xf32>
    %640 = vector.extract_strided_slice %625 {offsets = [0, 96], sizes = [8, 32], strides = [1, 1]} : vector<8x128xf32> to vector<8x32xf32>
    %641 = arith.negf %640 : vector<8x32xf32>
    %642 = math.exp %641 : vector<8x32xf32>
    %cst_200 = arith.constant 1.000000e+00 : f32
    %643 = vector.broadcast %cst_200 : f32 to vector<8x32xf32>
    %644 = arith.addf %643, %642 : vector<8x32xf32>
    %645 = arith.divf %643, %644 : vector<8x32xf32>
    %646 = arith.mulf %637, %592 : vector<8x32xf32>
    %647 = arith.mulf %631, %639 : vector<8x32xf32>
    %648 = arith.addf %646, %647 : vector<8x32xf32>
    %649 = math.tanh %648 : vector<8x32xf32>
    %650 = arith.mulf %645, %649 : vector<8x32xf32>
    %c40_201 = arith.constant 40 : index
    %c0_202 = arith.constant 0 : index
    %651 = vector.load %arg18[%c40_201, %c0_202] : memref<64x128xf32, #tpu.memory_space<vmem>>, vector<8x128xf32>
    %cst_203 = arith.constant dense<0.000000e+00> : vector<8x128xf32>
    %652 = tpu.matmul %622, %506, %cst_203 {dimension_numbers = #tpu.dot_dimension_numbers<[1], [0], [0], [1], [0, 0, 1, 1], [], []>} : vector<8x32xf32>, vector<32x128xf32>, vector<8x128xf32> -> vector<8x128xf32>
    %653 = arith.addf %651, %652 : vector<8x128xf32>
    %654 = vector.extract_strided_slice %653 {offsets = [0, 0], sizes = [8, 32], strides = [1, 1]} : vector<8x128xf32> to vector<8x32xf32>
    %655 = arith.negf %654 : vector<8x32xf32>
    %656 = math.exp %655 : vector<8x32xf32>
    %cst_204 = arith.constant 1.000000e+00 : f32
    %657 = vector.broadcast %cst_204 : f32 to vector<8x32xf32>
    %658 = arith.addf %657, %656 : vector<8x32xf32>
    %659 = arith.divf %657, %658 : vector<8x32xf32>
    %660 = vector.extract_strided_slice %653 {offsets = [0, 32], sizes = [8, 32], strides = [1, 1]} : vector<8x128xf32> to vector<8x32xf32>
    %661 = arith.negf %660 : vector<8x32xf32>
    %662 = math.exp %661 : vector<8x32xf32>
    %cst_205 = arith.constant 1.000000e+00 : f32
    %663 = vector.broadcast %cst_205 : f32 to vector<8x32xf32>
    %664 = arith.addf %663, %662 : vector<8x32xf32>
    %665 = arith.divf %663, %664 : vector<8x32xf32>
    %666 = vector.extract_strided_slice %653 {offsets = [0, 64], sizes = [8, 32], strides = [1, 1]} : vector<8x128xf32> to vector<8x32xf32>
    %667 = math.tanh %666 : vector<8x32xf32>
    %668 = vector.extract_strided_slice %653 {offsets = [0, 96], sizes = [8, 32], strides = [1, 1]} : vector<8x128xf32> to vector<8x32xf32>
    %669 = arith.negf %668 : vector<8x32xf32>
    %670 = math.exp %669 : vector<8x32xf32>
    %cst_206 = arith.constant 1.000000e+00 : f32
    %671 = vector.broadcast %cst_206 : f32 to vector<8x32xf32>
    %672 = arith.addf %671, %670 : vector<8x32xf32>
    %673 = arith.divf %671, %672 : vector<8x32xf32>
    %674 = arith.mulf %665, %620 : vector<8x32xf32>
    %675 = arith.mulf %659, %667 : vector<8x32xf32>
    %676 = arith.addf %674, %675 : vector<8x32xf32>
    %677 = math.tanh %676 : vector<8x32xf32>
    %678 = arith.mulf %673, %677 : vector<8x32xf32>
    %c24_207 = arith.constant 24 : index
    %c0_208 = arith.constant 0 : index
    %679 = vector.load %arg16[%c24_207, %c0_208] : memref<64x128xf32, #tpu.memory_space<vmem>>, vector<8x128xf32>
    %cst_209 = arith.constant dense<0.000000e+00> : vector<8x128xf32>
    %680 = tpu.matmul %650, %505, %cst_209 {dimension_numbers = #tpu.dot_dimension_numbers<[1], [0], [0], [1], [0, 0, 1, 1], [], []>} : vector<8x32xf32>, vector<32x128xf32>, vector<8x128xf32> -> vector<8x128xf32>
    %681 = arith.addf %679, %680 : vector<8x128xf32>
    %682 = vector.extract_strided_slice %681 {offsets = [0, 0], sizes = [8, 32], strides = [1, 1]} : vector<8x128xf32> to vector<8x32xf32>
    %683 = arith.negf %682 : vector<8x32xf32>
    %684 = math.exp %683 : vector<8x32xf32>
    %cst_210 = arith.constant 1.000000e+00 : f32
    %685 = vector.broadcast %cst_210 : f32 to vector<8x32xf32>
    %686 = arith.addf %685, %684 : vector<8x32xf32>
    %687 = arith.divf %685, %686 : vector<8x32xf32>
    %688 = vector.extract_strided_slice %681 {offsets = [0, 32], sizes = [8, 32], strides = [1, 1]} : vector<8x128xf32> to vector<8x32xf32>
    %689 = arith.negf %688 : vector<8x32xf32>
    %690 = math.exp %689 : vector<8x32xf32>
    %cst_211 = arith.constant 1.000000e+00 : f32
    %691 = vector.broadcast %cst_211 : f32 to vector<8x32xf32>
    %692 = arith.addf %691, %690 : vector<8x32xf32>
    %693 = arith.divf %691, %692 : vector<8x32xf32>
    %694 = vector.extract_strided_slice %681 {offsets = [0, 64], sizes = [8, 32], strides = [1, 1]} : vector<8x128xf32> to vector<8x32xf32>
    %695 = math.tanh %694 : vector<8x32xf32>
    %696 = vector.extract_strided_slice %681 {offsets = [0, 96], sizes = [8, 32], strides = [1, 1]} : vector<8x128xf32> to vector<8x32xf32>
    %697 = arith.negf %696 : vector<8x32xf32>
    %698 = math.exp %697 : vector<8x32xf32>
    %cst_212 = arith.constant 1.000000e+00 : f32
    %699 = vector.broadcast %cst_212 : f32 to vector<8x32xf32>
    %700 = arith.addf %699, %698 : vector<8x32xf32>
    %701 = arith.divf %699, %700 : vector<8x32xf32>
    %702 = arith.mulf %693, %648 : vector<8x32xf32>
    %703 = arith.mulf %687, %695 : vector<8x32xf32>
    %704 = arith.addf %702, %703 : vector<8x32xf32>
    %705 = math.tanh %704 : vector<8x32xf32>
    %706 = arith.mulf %701, %705 : vector<8x32xf32>
    %c32_213 = arith.constant 32 : index
    %c0_214 = arith.constant 0 : index
    %707 = vector.load %arg18[%c32_213, %c0_214] : memref<64x128xf32, #tpu.memory_space<vmem>>, vector<8x128xf32>
    %cst_215 = arith.constant dense<0.000000e+00> : vector<8x128xf32>
    %708 = tpu.matmul %678, %506, %cst_215 {dimension_numbers = #tpu.dot_dimension_numbers<[1], [0], [0], [1], [0, 0, 1, 1], [], []>} : vector<8x32xf32>, vector<32x128xf32>, vector<8x128xf32> -> vector<8x128xf32>
    %709 = arith.addf %707, %708 : vector<8x128xf32>
    %710 = vector.extract_strided_slice %709 {offsets = [0, 0], sizes = [8, 32], strides = [1, 1]} : vector<8x128xf32> to vector<8x32xf32>
    %711 = arith.negf %710 : vector<8x32xf32>
    %712 = math.exp %711 : vector<8x32xf32>
    %cst_216 = arith.constant 1.000000e+00 : f32
    %713 = vector.broadcast %cst_216 : f32 to vector<8x32xf32>
    %714 = arith.addf %713, %712 : vector<8x32xf32>
    %715 = arith.divf %713, %714 : vector<8x32xf32>
    %716 = vector.extract_strided_slice %709 {offsets = [0, 32], sizes = [8, 32], strides = [1, 1]} : vector<8x128xf32> to vector<8x32xf32>
    %717 = arith.negf %716 : vector<8x32xf32>
    %718 = math.exp %717 : vector<8x32xf32>
    %cst_217 = arith.constant 1.000000e+00 : f32
    %719 = vector.broadcast %cst_217 : f32 to vector<8x32xf32>
    %720 = arith.addf %719, %718 : vector<8x32xf32>
    %721 = arith.divf %719, %720 : vector<8x32xf32>
    %722 = vector.extract_strided_slice %709 {offsets = [0, 64], sizes = [8, 32], strides = [1, 1]} : vector<8x128xf32> to vector<8x32xf32>
    %723 = math.tanh %722 : vector<8x32xf32>
    %724 = vector.extract_strided_slice %709 {offsets = [0, 96], sizes = [8, 32], strides = [1, 1]} : vector<8x128xf32> to vector<8x32xf32>
    %725 = arith.negf %724 : vector<8x32xf32>
    %726 = math.exp %725 : vector<8x32xf32>
    %cst_218 = arith.constant 1.000000e+00 : f32
    %727 = vector.broadcast %cst_218 : f32 to vector<8x32xf32>
    %728 = arith.addf %727, %726 : vector<8x32xf32>
    %729 = arith.divf %727, %728 : vector<8x32xf32>
    %730 = arith.mulf %721, %676 : vector<8x32xf32>
    %731 = arith.mulf %715, %723 : vector<8x32xf32>
    %732 = arith.addf %730, %731 : vector<8x32xf32>
    %733 = math.tanh %732 : vector<8x32xf32>
    %734 = arith.mulf %729, %733 : vector<8x32xf32>
    %c32_219 = arith.constant 32 : index
    %c0_220 = arith.constant 0 : index
    %735 = vector.load %arg16[%c32_219, %c0_220] : memref<64x128xf32, #tpu.memory_space<vmem>>, vector<8x128xf32>
    %cst_221 = arith.constant dense<0.000000e+00> : vector<8x128xf32>
    %736 = tpu.matmul %706, %505, %cst_221 {dimension_numbers = #tpu.dot_dimension_numbers<[1], [0], [0], [1], [0, 0, 1, 1], [], []>} : vector<8x32xf32>, vector<32x128xf32>, vector<8x128xf32> -> vector<8x128xf32>
    %737 = arith.addf %735, %736 : vector<8x128xf32>
    %738 = vector.extract_strided_slice %737 {offsets = [0, 0], sizes = [8, 32], strides = [1, 1]} : vector<8x128xf32> to vector<8x32xf32>
    %739 = arith.negf %738 : vector<8x32xf32>
    %740 = math.exp %739 : vector<8x32xf32>
    %cst_222 = arith.constant 1.000000e+00 : f32
    %741 = vector.broadcast %cst_222 : f32 to vector<8x32xf32>
    %742 = arith.addf %741, %740 : vector<8x32xf32>
    %743 = arith.divf %741, %742 : vector<8x32xf32>
    %744 = vector.extract_strided_slice %737 {offsets = [0, 32], sizes = [8, 32], strides = [1, 1]} : vector<8x128xf32> to vector<8x32xf32>
    %745 = arith.negf %744 : vector<8x32xf32>
    %746 = math.exp %745 : vector<8x32xf32>
    %cst_223 = arith.constant 1.000000e+00 : f32
    %747 = vector.broadcast %cst_223 : f32 to vector<8x32xf32>
    %748 = arith.addf %747, %746 : vector<8x32xf32>
    %749 = arith.divf %747, %748 : vector<8x32xf32>
    %750 = vector.extract_strided_slice %737 {offsets = [0, 64], sizes = [8, 32], strides = [1, 1]} : vector<8x128xf32> to vector<8x32xf32>
    %751 = math.tanh %750 : vector<8x32xf32>
    %752 = vector.extract_strided_slice %737 {offsets = [0, 96], sizes = [8, 32], strides = [1, 1]} : vector<8x128xf32> to vector<8x32xf32>
    %753 = arith.negf %752 : vector<8x32xf32>
    %754 = math.exp %753 : vector<8x32xf32>
    %cst_224 = arith.constant 1.000000e+00 : f32
    %755 = vector.broadcast %cst_224 : f32 to vector<8x32xf32>
    %756 = arith.addf %755, %754 : vector<8x32xf32>
    %757 = arith.divf %755, %756 : vector<8x32xf32>
    %758 = arith.mulf %749, %704 : vector<8x32xf32>
    %759 = arith.mulf %743, %751 : vector<8x32xf32>
    %760 = arith.addf %758, %759 : vector<8x32xf32>
    %761 = math.tanh %760 : vector<8x32xf32>
    %762 = arith.mulf %757, %761 : vector<8x32xf32>
    %c24_225 = arith.constant 24 : index
    %c0_226 = arith.constant 0 : index
    %763 = vector.load %arg18[%c24_225, %c0_226] : memref<64x128xf32, #tpu.memory_space<vmem>>, vector<8x128xf32>
    %cst_227 = arith.constant dense<0.000000e+00> : vector<8x128xf32>
    %764 = tpu.matmul %734, %506, %cst_227 {dimension_numbers = #tpu.dot_dimension_numbers<[1], [0], [0], [1], [0, 0, 1, 1], [], []>} : vector<8x32xf32>, vector<32x128xf32>, vector<8x128xf32> -> vector<8x128xf32>
    %765 = arith.addf %763, %764 : vector<8x128xf32>
    %766 = vector.extract_strided_slice %765 {offsets = [0, 0], sizes = [8, 32], strides = [1, 1]} : vector<8x128xf32> to vector<8x32xf32>
    %767 = arith.negf %766 : vector<8x32xf32>
    %768 = math.exp %767 : vector<8x32xf32>
    %cst_228 = arith.constant 1.000000e+00 : f32
    %769 = vector.broadcast %cst_228 : f32 to vector<8x32xf32>
    %770 = arith.addf %769, %768 : vector<8x32xf32>
    %771 = arith.divf %769, %770 : vector<8x32xf32>
    %772 = vector.extract_strided_slice %765 {offsets = [0, 32], sizes = [8, 32], strides = [1, 1]} : vector<8x128xf32> to vector<8x32xf32>
    %773 = arith.negf %772 : vector<8x32xf32>
    %774 = math.exp %773 : vector<8x32xf32>
    %cst_229 = arith.constant 1.000000e+00 : f32
    %775 = vector.broadcast %cst_229 : f32 to vector<8x32xf32>
    %776 = arith.addf %775, %774 : vector<8x32xf32>
    %777 = arith.divf %775, %776 : vector<8x32xf32>
    %778 = vector.extract_strided_slice %765 {offsets = [0, 64], sizes = [8, 32], strides = [1, 1]} : vector<8x128xf32> to vector<8x32xf32>
    %779 = math.tanh %778 : vector<8x32xf32>
    %780 = vector.extract_strided_slice %765 {offsets = [0, 96], sizes = [8, 32], strides = [1, 1]} : vector<8x128xf32> to vector<8x32xf32>
    %781 = arith.negf %780 : vector<8x32xf32>
    %782 = math.exp %781 : vector<8x32xf32>
    %cst_230 = arith.constant 1.000000e+00 : f32
    %783 = vector.broadcast %cst_230 : f32 to vector<8x32xf32>
    %784 = arith.addf %783, %782 : vector<8x32xf32>
    %785 = arith.divf %783, %784 : vector<8x32xf32>
    %786 = arith.mulf %777, %732 : vector<8x32xf32>
    %787 = arith.mulf %771, %779 : vector<8x32xf32>
    %788 = arith.addf %786, %787 : vector<8x32xf32>
    %789 = math.tanh %788 : vector<8x32xf32>
    %790 = arith.mulf %785, %789 : vector<8x32xf32>
    %c40_231 = arith.constant 40 : index
    %c0_232 = arith.constant 0 : index
    %791 = vector.load %arg16[%c40_231, %c0_232] : memref<64x128xf32, #tpu.memory_space<vmem>>, vector<8x128xf32>
    %cst_233 = arith.constant dense<0.000000e+00> : vector<8x128xf32>
    %792 = tpu.matmul %762, %505, %cst_233 {dimension_numbers = #tpu.dot_dimension_numbers<[1], [0], [0], [1], [0, 0, 1, 1], [], []>} : vector<8x32xf32>, vector<32x128xf32>, vector<8x128xf32> -> vector<8x128xf32>
    %793 = arith.addf %791, %792 : vector<8x128xf32>
    %794 = vector.extract_strided_slice %793 {offsets = [0, 0], sizes = [8, 32], strides = [1, 1]} : vector<8x128xf32> to vector<8x32xf32>
    %795 = arith.negf %794 : vector<8x32xf32>
    %796 = math.exp %795 : vector<8x32xf32>
    %cst_234 = arith.constant 1.000000e+00 : f32
    %797 = vector.broadcast %cst_234 : f32 to vector<8x32xf32>
    %798 = arith.addf %797, %796 : vector<8x32xf32>
    %799 = arith.divf %797, %798 : vector<8x32xf32>
    %800 = vector.extract_strided_slice %793 {offsets = [0, 32], sizes = [8, 32], strides = [1, 1]} : vector<8x128xf32> to vector<8x32xf32>
    %801 = arith.negf %800 : vector<8x32xf32>
    %802 = math.exp %801 : vector<8x32xf32>
    %cst_235 = arith.constant 1.000000e+00 : f32
    %803 = vector.broadcast %cst_235 : f32 to vector<8x32xf32>
    %804 = arith.addf %803, %802 : vector<8x32xf32>
    %805 = arith.divf %803, %804 : vector<8x32xf32>
    %806 = vector.extract_strided_slice %793 {offsets = [0, 64], sizes = [8, 32], strides = [1, 1]} : vector<8x128xf32> to vector<8x32xf32>
    %807 = math.tanh %806 : vector<8x32xf32>
    %808 = vector.extract_strided_slice %793 {offsets = [0, 96], sizes = [8, 32], strides = [1, 1]} : vector<8x128xf32> to vector<8x32xf32>
    %809 = arith.negf %808 : vector<8x32xf32>
    %810 = math.exp %809 : vector<8x32xf32>
    %cst_236 = arith.constant 1.000000e+00 : f32
    %811 = vector.broadcast %cst_236 : f32 to vector<8x32xf32>
    %812 = arith.addf %811, %810 : vector<8x32xf32>
    %813 = arith.divf %811, %812 : vector<8x32xf32>
    %814 = arith.mulf %805, %760 : vector<8x32xf32>
    %815 = arith.mulf %799, %807 : vector<8x32xf32>
    %816 = arith.addf %814, %815 : vector<8x32xf32>
    %817 = math.tanh %816 : vector<8x32xf32>
    %818 = arith.mulf %813, %817 : vector<8x32xf32>
    %c16_237 = arith.constant 16 : index
    %c0_238 = arith.constant 0 : index
    %819 = vector.load %arg18[%c16_237, %c0_238] : memref<64x128xf32, #tpu.memory_space<vmem>>, vector<8x128xf32>
    %cst_239 = arith.constant dense<0.000000e+00> : vector<8x128xf32>
    %820 = tpu.matmul %790, %506, %cst_239 {dimension_numbers = #tpu.dot_dimension_numbers<[1], [0], [0], [1], [0, 0, 1, 1], [], []>} : vector<8x32xf32>, vector<32x128xf32>, vector<8x128xf32> -> vector<8x128xf32>
    %821 = arith.addf %819, %820 : vector<8x128xf32>
    %822 = vector.extract_strided_slice %821 {offsets = [0, 0], sizes = [8, 32], strides = [1, 1]} : vector<8x128xf32> to vector<8x32xf32>
    %823 = arith.negf %822 : vector<8x32xf32>
    %824 = math.exp %823 : vector<8x32xf32>
    %cst_240 = arith.constant 1.000000e+00 : f32
    %825 = vector.broadcast %cst_240 : f32 to vector<8x32xf32>
    %826 = arith.addf %825, %824 : vector<8x32xf32>
    %827 = arith.divf %825, %826 : vector<8x32xf32>
    %828 = vector.extract_strided_slice %821 {offsets = [0, 32], sizes = [8, 32], strides = [1, 1]} : vector<8x128xf32> to vector<8x32xf32>
    %829 = arith.negf %828 : vector<8x32xf32>
    %830 = math.exp %829 : vector<8x32xf32>
    %cst_241 = arith.constant 1.000000e+00 : f32
    %831 = vector.broadcast %cst_241 : f32 to vector<8x32xf32>
    %832 = arith.addf %831, %830 : vector<8x32xf32>
    %833 = arith.divf %831, %832 : vector<8x32xf32>
    %834 = vector.extract_strided_slice %821 {offsets = [0, 64], sizes = [8, 32], strides = [1, 1]} : vector<8x128xf32> to vector<8x32xf32>
    %835 = math.tanh %834 : vector<8x32xf32>
    %836 = vector.extract_strided_slice %821 {offsets = [0, 96], sizes = [8, 32], strides = [1, 1]} : vector<8x128xf32> to vector<8x32xf32>
    %837 = arith.negf %836 : vector<8x32xf32>
    %838 = math.exp %837 : vector<8x32xf32>
    %cst_242 = arith.constant 1.000000e+00 : f32
    %839 = vector.broadcast %cst_242 : f32 to vector<8x32xf32>
    %840 = arith.addf %839, %838 : vector<8x32xf32>
    %841 = arith.divf %839, %840 : vector<8x32xf32>
    %842 = arith.mulf %833, %788 : vector<8x32xf32>
    %843 = arith.mulf %827, %835 : vector<8x32xf32>
    %844 = arith.addf %842, %843 : vector<8x32xf32>
    %845 = math.tanh %844 : vector<8x32xf32>
    %846 = arith.mulf %841, %845 : vector<8x32xf32>
    %c48_243 = arith.constant 48 : index
    %c0_244 = arith.constant 0 : index
    %847 = vector.load %arg16[%c48_243, %c0_244] : memref<64x128xf32, #tpu.memory_space<vmem>>, vector<8x128xf32>
    %cst_245 = arith.constant dense<0.000000e+00> : vector<8x128xf32>
    %848 = tpu.matmul %818, %505, %cst_245 {dimension_numbers = #tpu.dot_dimension_numbers<[1], [0], [0], [1], [0, 0, 1, 1], [], []>} : vector<8x32xf32>, vector<32x128xf32>, vector<8x128xf32> -> vector<8x128xf32>
    %849 = arith.addf %847, %848 : vector<8x128xf32>
    %850 = vector.extract_strided_slice %849 {offsets = [0, 0], sizes = [8, 32], strides = [1, 1]} : vector<8x128xf32> to vector<8x32xf32>
    %851 = arith.negf %850 : vector<8x32xf32>
    %852 = math.exp %851 : vector<8x32xf32>
    %cst_246 = arith.constant 1.000000e+00 : f32
    %853 = vector.broadcast %cst_246 : f32 to vector<8x32xf32>
    %854 = arith.addf %853, %852 : vector<8x32xf32>
    %855 = arith.divf %853, %854 : vector<8x32xf32>
    %856 = vector.extract_strided_slice %849 {offsets = [0, 32], sizes = [8, 32], strides = [1, 1]} : vector<8x128xf32> to vector<8x32xf32>
    %857 = arith.negf %856 : vector<8x32xf32>
    %858 = math.exp %857 : vector<8x32xf32>
    %cst_247 = arith.constant 1.000000e+00 : f32
    %859 = vector.broadcast %cst_247 : f32 to vector<8x32xf32>
    %860 = arith.addf %859, %858 : vector<8x32xf32>
    %861 = arith.divf %859, %860 : vector<8x32xf32>
    %862 = vector.extract_strided_slice %849 {offsets = [0, 64], sizes = [8, 32], strides = [1, 1]} : vector<8x128xf32> to vector<8x32xf32>
    %863 = math.tanh %862 : vector<8x32xf32>
    %864 = vector.extract_strided_slice %849 {offsets = [0, 96], sizes = [8, 32], strides = [1, 1]} : vector<8x128xf32> to vector<8x32xf32>
    %865 = arith.negf %864 : vector<8x32xf32>
    %866 = math.exp %865 : vector<8x32xf32>
    %cst_248 = arith.constant 1.000000e+00 : f32
    %867 = vector.broadcast %cst_248 : f32 to vector<8x32xf32>
    %868 = arith.addf %867, %866 : vector<8x32xf32>
    %869 = arith.divf %867, %868 : vector<8x32xf32>
    %870 = arith.mulf %861, %816 : vector<8x32xf32>
    %871 = arith.mulf %855, %863 : vector<8x32xf32>
    %872 = arith.addf %870, %871 : vector<8x32xf32>
    %873 = math.tanh %872 : vector<8x32xf32>
    %874 = arith.mulf %869, %873 : vector<8x32xf32>
    %c8_249 = arith.constant 8 : index
    %c0_250 = arith.constant 0 : index
    %875 = vector.load %arg18[%c8_249, %c0_250] : memref<64x128xf32, #tpu.memory_space<vmem>>, vector<8x128xf32>
    %cst_251 = arith.constant dense<0.000000e+00> : vector<8x128xf32>
    %876 = tpu.matmul %846, %506, %cst_251 {dimension_numbers = #tpu.dot_dimension_numbers<[1], [0], [0], [1], [0, 0, 1, 1], [], []>} : vector<8x32xf32>, vector<32x128xf32>, vector<8x128xf32> -> vector<8x128xf32>
    %877 = arith.addf %875, %876 : vector<8x128xf32>
    %878 = vector.extract_strided_slice %877 {offsets = [0, 0], sizes = [8, 32], strides = [1, 1]} : vector<8x128xf32> to vector<8x32xf32>
    %879 = arith.negf %878 : vector<8x32xf32>
    %880 = math.exp %879 : vector<8x32xf32>
    %cst_252 = arith.constant 1.000000e+00 : f32
    %881 = vector.broadcast %cst_252 : f32 to vector<8x32xf32>
    %882 = arith.addf %881, %880 : vector<8x32xf32>
    %883 = arith.divf %881, %882 : vector<8x32xf32>
    %884 = vector.extract_strided_slice %877 {offsets = [0, 32], sizes = [8, 32], strides = [1, 1]} : vector<8x128xf32> to vector<8x32xf32>
    %885 = arith.negf %884 : vector<8x32xf32>
    %886 = math.exp %885 : vector<8x32xf32>
    %cst_253 = arith.constant 1.000000e+00 : f32
    %887 = vector.broadcast %cst_253 : f32 to vector<8x32xf32>
    %888 = arith.addf %887, %886 : vector<8x32xf32>
    %889 = arith.divf %887, %888 : vector<8x32xf32>
    %890 = vector.extract_strided_slice %877 {offsets = [0, 64], sizes = [8, 32], strides = [1, 1]} : vector<8x128xf32> to vector<8x32xf32>
    %891 = math.tanh %890 : vector<8x32xf32>
    %892 = vector.extract_strided_slice %877 {offsets = [0, 96], sizes = [8, 32], strides = [1, 1]} : vector<8x128xf32> to vector<8x32xf32>
    %893 = arith.negf %892 : vector<8x32xf32>
    %894 = math.exp %893 : vector<8x32xf32>
    %cst_254 = arith.constant 1.000000e+00 : f32
    %895 = vector.broadcast %cst_254 : f32 to vector<8x32xf32>
    %896 = arith.addf %895, %894 : vector<8x32xf32>
    %897 = arith.divf %895, %896 : vector<8x32xf32>
    %898 = arith.mulf %889, %844 : vector<8x32xf32>
    %899 = arith.mulf %883, %891 : vector<8x32xf32>
    %900 = arith.addf %898, %899 : vector<8x32xf32>
    %901 = math.tanh %900 : vector<8x32xf32>
    %902 = arith.mulf %897, %901 : vector<8x32xf32>
    %c56_255 = arith.constant 56 : index
    %c0_256 = arith.constant 0 : index
    %903 = vector.load %arg16[%c56_255, %c0_256] : memref<64x128xf32, #tpu.memory_space<vmem>>, vector<8x128xf32>
    %cst_257 = arith.constant dense<0.000000e+00> : vector<8x128xf32>
    %904 = tpu.matmul %874, %505, %cst_257 {dimension_numbers = #tpu.dot_dimension_numbers<[1], [0], [0], [1], [0, 0, 1, 1], [], []>} : vector<8x32xf32>, vector<32x128xf32>, vector<8x128xf32> -> vector<8x128xf32>
    %905 = arith.addf %903, %904 : vector<8x128xf32>
    %906 = vector.extract_strided_slice %905 {offsets = [0, 0], sizes = [8, 32], strides = [1, 1]} : vector<8x128xf32> to vector<8x32xf32>
    %907 = arith.negf %906 : vector<8x32xf32>
    %908 = math.exp %907 : vector<8x32xf32>
    %cst_258 = arith.constant 1.000000e+00 : f32
    %909 = vector.broadcast %cst_258 : f32 to vector<8x32xf32>
    %910 = arith.addf %909, %908 : vector<8x32xf32>
    %911 = arith.divf %909, %910 : vector<8x32xf32>
    %912 = vector.extract_strided_slice %905 {offsets = [0, 32], sizes = [8, 32], strides = [1, 1]} : vector<8x128xf32> to vector<8x32xf32>
    %913 = arith.negf %912 : vector<8x32xf32>
    %914 = math.exp %913 : vector<8x32xf32>
    %cst_259 = arith.constant 1.000000e+00 : f32
    %915 = vector.broadcast %cst_259 : f32 to vector<8x32xf32>
    %916 = arith.addf %915, %914 : vector<8x32xf32>
    %917 = arith.divf %915, %916 : vector<8x32xf32>
    %918 = vector.extract_strided_slice %905 {offsets = [0, 64], sizes = [8, 32], strides = [1, 1]} : vector<8x128xf32> to vector<8x32xf32>
    %919 = math.tanh %918 : vector<8x32xf32>
    %920 = vector.extract_strided_slice %905 {offsets = [0, 96], sizes = [8, 32], strides = [1, 1]} : vector<8x128xf32> to vector<8x32xf32>
    %921 = arith.negf %920 : vector<8x32xf32>
    %922 = math.exp %921 : vector<8x32xf32>
    %cst_260 = arith.constant 1.000000e+00 : f32
    %923 = vector.broadcast %cst_260 : f32 to vector<8x32xf32>
    %924 = arith.addf %923, %922 : vector<8x32xf32>
    %925 = arith.divf %923, %924 : vector<8x32xf32>
    %926 = arith.mulf %917, %872 : vector<8x32xf32>
    %927 = arith.mulf %911, %919 : vector<8x32xf32>
    %928 = arith.addf %926, %927 : vector<8x32xf32>
    %929 = math.tanh %928 : vector<8x32xf32>
    %930 = arith.mulf %925, %929 : vector<8x32xf32>
    %c0_261 = arith.constant 0 : index
    %c0_262 = arith.constant 0 : index
    %931 = vector.load %arg18[%c0_261, %c0_262] : memref<64x128xf32, #tpu.memory_space<vmem>>, vector<8x128xf32>
    %cst_263 = arith.constant dense<0.000000e+00> : vector<8x128xf32>
    %932 = tpu.matmul %902, %506, %cst_263 {dimension_numbers = #tpu.dot_dimension_numbers<[1], [0], [0], [1], [0, 0, 1, 1], [], []>} : vector<8x32xf32>, vector<32x128xf32>, vector<8x128xf32> -> vector<8x128xf32>
    %933 = arith.addf %931, %932 : vector<8x128xf32>
    %934 = vector.extract_strided_slice %933 {offsets = [0, 0], sizes = [8, 32], strides = [1, 1]} : vector<8x128xf32> to vector<8x32xf32>
    %935 = arith.negf %934 : vector<8x32xf32>
    %936 = math.exp %935 : vector<8x32xf32>
    %cst_264 = arith.constant 1.000000e+00 : f32
    %937 = vector.broadcast %cst_264 : f32 to vector<8x32xf32>
    %938 = arith.addf %937, %936 : vector<8x32xf32>
    %939 = arith.divf %937, %938 : vector<8x32xf32>
    %940 = vector.extract_strided_slice %933 {offsets = [0, 32], sizes = [8, 32], strides = [1, 1]} : vector<8x128xf32> to vector<8x32xf32>
    %941 = arith.negf %940 : vector<8x32xf32>
    %942 = math.exp %941 : vector<8x32xf32>
    %cst_265 = arith.constant 1.000000e+00 : f32
    %943 = vector.broadcast %cst_265 : f32 to vector<8x32xf32>
    %944 = arith.addf %943, %942 : vector<8x32xf32>
    %945 = arith.divf %943, %944 : vector<8x32xf32>
    %946 = vector.extract_strided_slice %933 {offsets = [0, 64], sizes = [8, 32], strides = [1, 1]} : vector<8x128xf32> to vector<8x32xf32>
    %947 = math.tanh %946 : vector<8x32xf32>
    %948 = vector.extract_strided_slice %933 {offsets = [0, 96], sizes = [8, 32], strides = [1, 1]} : vector<8x128xf32> to vector<8x32xf32>
    %949 = arith.negf %948 : vector<8x32xf32>
    %950 = math.exp %949 : vector<8x32xf32>
    %cst_266 = arith.constant 1.000000e+00 : f32
    %951 = vector.broadcast %cst_266 : f32 to vector<8x32xf32>
    %952 = arith.addf %951, %950 : vector<8x32xf32>
    %953 = arith.divf %951, %952 : vector<8x32xf32>
    %954 = arith.mulf %945, %900 : vector<8x32xf32>
    %955 = arith.mulf %939, %947 : vector<8x32xf32>
    %956 = arith.addf %954, %955 : vector<8x32xf32>
    %957 = math.tanh %956 : vector<8x32xf32>
    %958 = arith.mulf %953, %957 : vector<8x32xf32>
    %c0_267 = arith.constant 0 : index
    %c0_268 = arith.constant 0 : index
    %959 = vector.load %arg13[%c0_267, %c0_268] : memref<64x1xf32, #tpu.memory_space<vmem>>, vector<64x1xf32>
    %960 = vector.extract_strided_slice %959 {offsets = [0, 0], sizes = [32, 1], strides = [1, 1]} : vector<64x1xf32> to vector<32x1xf32>
    %cst_269 = arith.constant dense<0.000000e+00> : vector<8x1xf32>
    %961 = tpu.matmul %930, %960, %cst_269 {dimension_numbers = #tpu.dot_dimension_numbers<[1], [0], [0], [1], [0, 0, 1, 1], [], []>} : vector<8x32xf32>, vector<32x1xf32>, vector<8x1xf32> -> vector<8x1xf32>
    %962 = vector.extract_strided_slice %959 {offsets = [32, 0], sizes = [32, 1], strides = [1, 1]} : vector<64x1xf32> to vector<32x1xf32>
    %cst_270 = arith.constant dense<0.000000e+00> : vector<8x1xf32>
    %963 = tpu.matmul %958, %962, %cst_270 {dimension_numbers = #tpu.dot_dimension_numbers<[1], [0], [0], [1], [0, 0, 1, 1], [], []>} : vector<8x32xf32>, vector<32x1xf32>, vector<8x1xf32> -> vector<8x1xf32>
    %964 = arith.addf %961, %963 : vector<8x1xf32>
    %c0_271 = arith.constant 0 : index
    %c0_272 = arith.constant 0 : index
    %965 = vector.load %arg14[%c0_271, %c0_272] : memref<1x1xf32, #tpu.memory_space<vmem>>, vector<1x1xf32>
    %966 = vector.broadcast %965 : vector<1x1xf32> to vector<8x1xf32>
    %967 = arith.addf %964, %966 : vector<8x1xf32>
    %c0_273 = arith.constant 0 : index
    %c0_274 = arith.constant 0 : index
    %968 = vector.load %arg15[%c0_273, %c0_274] : memref<8x1xf32, #tpu.memory_space<vmem>>, vector<8x1xf32>
    tpu.vector_store %arg15[%c0_273, %c0_274], %967 {strides = array<i32>} : memref<8x1xf32, #tpu.memory_space<vmem>>, vector<8x1xf32>,
    return
  }
}

</mosaic_0001>

<llo_original>
// kernel: sentiment_rnn_forward.1
$region0: #{sentiment_rnn_forward.1}
  #allocation0 [shape = 'u32[]', space=smem, size = 0x4, offset = 0x4, fixed_abs, tag = 'smem constant byte address 0x4 - core index']
  #allocation1 [shape = 'u32[144,128]{1,0:T(1,128)}', space=vmem, size = 0x12000, scoped, tag = 'internal scratch']
  #allocation2 [shape = 'f32[64,128]{1,0:T(8,128)}', space=vmem, size = 0x8000, scoped, tag = 'scratch operand']
  #allocation3 [shape = 'f32[64,32]{1,0:T(8,128)}', space=vmem, size = 0x8000, scoped, tag = 'scratch operand']
  #allocation4 [shape = 'f32[64,128]{1,0:T(8,128)}', space=vmem, size = 0x8000, scoped, tag = 'scratch operand']
  #allocation5 [shape = 'f32[64,32]{1,0:T(8,128)}', space=vmem, size = 0x8000, scoped, tag = 'scratch operand']
  #allocation6 [shape = 'f32[1,1]{1,0:T(1,128)S(1)}', space=vmem, size = 0x200, scoped, tag = 'scoped memory for sentiment_rnn_forward.1']
  %s0 = inlined_call_operand.vmem [shape: f32[64,32], index: 0, kind: input, shape index: {}]
  %s1 = inlined_call_operand.vmem [shape: f32[32,128], index: 1, kind: input, shape index: {}]
  %s2 = inlined_call_operand.vmem [shape: f32[32,128], index: 2, kind: input, shape index: {}]
  %s3 = inlined_call_operand.vmem [shape: f32[1,128], index: 3, kind: input, shape index: {}]
  %s4 = inlined_call_operand.vmem [shape: f32[32,128], index: 4, kind: input, shape index: {}]
  %s5 = inlined_call_operand.vmem [shape: f32[32,128], index: 5, kind: input, shape index: {}]
  %s6 = inlined_call_operand.vmem [shape: f32[1,128], index: 6, kind: input, shape index: {}]
  %s7 = inlined_call_operand.vmem [shape: f32[64,128], index: 7, kind: input, shape index: {}]
  %s8 = inlined_call_operand.vmem [shape: f32[32,128], index: 8, kind: input, shape index: {}]
  %s9 = inlined_call_operand.vmem [shape: f32[1,128], index: 9, kind: input, shape index: {}]
  %s10 = inlined_call_operand.vmem [shape: f32[64,128], index: 10, kind: input, shape index: {}]
  %s11 = inlined_call_operand.vmem [shape: f32[32,128], index: 11, kind: input, shape index: {}]
  %s12 = inlined_call_operand.vmem [shape: f32[1,128], index: 12, kind: input, shape index: {}]
  %s13 = inlined_call_operand.vmem [shape: f32[64,1], index: 13, kind: input, shape index: {}]
  %s14 = inlined_call_operand.<no memory space> [shape: f32[1,1], index: 14, kind: input, shape index: {}]
  %s15 = inlined_call_operand.vmem [shape: f32[8,1], index: 15, kind: output, shape index: {}]
  %s16 = sld [smem:[#allocation0]]
  $region70: #{sentiment_rnn_forward.1} parent=0
    _
  %s18 = ssub.s32 1, %s16
  %s19 = scalar_select 0, %s18, %s16
  %v20 = vstv %s14
  %21 = vst [vmem:[#allocation6] sm:$0x1] %v20
  // Predicated region
  $region2: #{sentiment_rnn_forward.1} parent=0 // pred_check
    _
  $region3: #{sentiment_rnn_forward.1} parent=0 // pred_check_branch
    %23 = sbr.rel (0) target = $region5
  $region4: #{sentiment_rnn_forward.1} parent=0 // pred_region
    _
  $region5: #{sentiment_rnn_forward.1} parent=0 // pred_fallthru
    _
  // Predicated region
  $region6: #{sentiment_rnn_forward.1} parent=0 // pred_check
    _
  $region7: #{sentiment_rnn_forward.1} parent=0 // pred_check_branch
    %25 = sbr.rel (0) target = $region9
  $region8: #{sentiment_rnn_forward.1} parent=0 // pred_region
    _
  $region9: #{sentiment_rnn_forward.1} parent=0 // pred_fallthru
    _
  // Predicated region
  $region10: #{sentiment_rnn_forward.1} parent=0 // pred_check
    _
  $region11: #{sentiment_rnn_forward.1} parent=0 // pred_check_branch
    %27 = sbr.rel (0) target = $region13
  $region12: #{sentiment_rnn_forward.1} parent=0 // pred_region
    _
  $region13: #{sentiment_rnn_forward.1} parent=0 // pred_fallthru
    _
  // Predicated region
  $region14: #{sentiment_rnn_forward.1} parent=0 // pred_check
    _
  $region15: #{sentiment_rnn_forward.1} parent=0 // pred_check_branch
    %29 = sbr.rel (0) target = $region17
  $region16: #{sentiment_rnn_forward.1} parent=0 // pred_region
    _
  $region17: #{sentiment_rnn_forward.1} parent=0 // pred_fallthru
    _
  // Predicated region
  $region18: #{sentiment_rnn_forward.1} parent=0 // pred_check
    _
  $region19: #{sentiment_rnn_forward.1} parent=0 // pred_check_branch
    %31 = sbr.rel (0) target = $region21
  $region20: #{sentiment_rnn_forward.1} parent=0 // pred_region
    _
  $region21: #{sentiment_rnn_forward.1} parent=0 // pred_fallthru
    _
  // Predicated region
  $region22: #{sentiment_rnn_forward.1} parent=0 // pred_check
    _
  $region23: #{sentiment_rnn_forward.1} parent=0 // pred_check_branch
    %33 = sbr.rel (0) target = $region25
  $region24: #{sentiment_rnn_forward.1} parent=0 // pred_region
    _
  $region25: #{sentiment_rnn_forward.1} parent=0 // pred_fallthru
    _
  // Predicated region
  $region26: #{sentiment_rnn_forward.1} parent=0 // pred_check
    _
  $region27: #{sentiment_rnn_forward.1} parent=0 // pred_check_branch
    %35 = sbr.rel (0) target = $region29
  $region28: #{sentiment_rnn_forward.1} parent=0 // pred_region
    _
  $region29: #{sentiment_rnn_forward.1} parent=0 // pred_fallthru
    _
  // Predicated region
  $region30: #{sentiment_rnn_forward.1} parent=0 // pred_check
    _
  $region31: #{sentiment_rnn_forward.1} parent=0 // pred_check_branch
    %37 = sbr.rel (0) target = $region33
  $region32: #{sentiment_rnn_forward.1} parent=0 // pred_region
    _
  $region33: #{sentiment_rnn_forward.1} parent=0 // pred_fallthru
    _
  // Predicated region
  $region34: #{sentiment_rnn_forward.1} parent=0 // pred_check
    _
  $region35: #{sentiment_rnn_forward.1} parent=0 // pred_check_branch
    %39 = sbr.rel (0) target = $region37
  $region36: #{sentiment_rnn_forward.1} parent=0 // pred_region
    _
  $region37: #{sentiment_rnn_forward.1} parent=0 // pred_fallthru
    _
  // Predicated region
  $region38: #{sentiment_rnn_forward.1} parent=0 // pred_check
    _
  $region39: #{sentiment_rnn_forward.1} parent=0 // pred_check_branch
    %41 = sbr.rel (0) target = $region41
  $region40: #{sentiment_rnn_forward.1} parent=0 // pred_region
    _
  $region41: #{sentiment_rnn_forward.1} parent=0 // pred_fallthru
    _
  // Predicated region
  $region42: #{sentiment_rnn_forward.1} parent=0 // pred_check
    _
  $region43: #{sentiment_rnn_forward.1} parent=0 // pred_check_branch
    %43 = sbr.rel (0) target = $region45
  $region44: #{sentiment_rnn_forward.1} parent=0 // pred_region
    _
  $region45: #{sentiment_rnn_forward.1} parent=0 // pred_fallthru
    _
  // Predicated region
  $region46: #{sentiment_rnn_forward.1} parent=0 // pred_check
    _
  $region47: #{sentiment_rnn_forward.1} parent=0 // pred_check_branch
    %45 = sbr.rel (0) target = $region49
  $region48: #{sentiment_rnn_forward.1} parent=0 // pred_region
    _
  $region49: #{sentiment_rnn_forward.1} parent=0 // pred_fallthru
    _
  // Predicated region
  $region50: #{sentiment_rnn_forward.1} parent=0 // pred_check
    _
  $region51: #{sentiment_rnn_forward.1} parent=0 // pred_check_branch
    %47 = sbr.rel (0) target = $region53
  $region52: #{sentiment_rnn_forward.1} parent=0 // pred_region
    _
  $region53: #{sentiment_rnn_forward.1} parent=0 // pred_fallthru
    _
  // Predicated region
  $region54: #{sentiment_rnn_forward.1} parent=0 // pred_check
    _
  $region55: #{sentiment_rnn_forward.1} parent=0 // pred_check_branch
    %49 = sbr.rel (0) target = $region57
  $region56: #{sentiment_rnn_forward.1} parent=0 // pred_region
    _
  $region57: #{sentiment_rnn_forward.1} parent=0 // pred_fallthru
    _
  // Predicated region
  $region58: #{sentiment_rnn_forward.1} parent=0 // pred_check
    _
  $region59: #{sentiment_rnn_forward.1} parent=0 // pred_check_branch
    %51 = sbr.rel (0) target = $region61
  $region60: #{sentiment_rnn_forward.1} parent=0 // pred_region
    _
  $region61: #{sentiment_rnn_forward.1} parent=0 // pred_fallthru
    _
  %v52 = vld [vmem:[%s0] sm:$0xff]
  %v53 = vld [vmem:[%s0 + $0x8] sm:$0xff]
  %v54 = vld [vmem:[%s0 + $0x10] sm:$0xff]
  %v55 = vld [vmem:[%s0 + $0x18] sm:$0xff]
  %v56 = vld [vmem:[%s0 + $0x20] sm:$0xff]
  %v57 = vld [vmem:[%s0 + $0x28] sm:$0xff]
  %v58 = vld [vmem:[%s0 + $0x30] sm:$0xff]
  %v59 = vld [vmem:[%s0 + $0x38] sm:$0xff]
  %v60 = vld [vmem:[%s1] sm:$0xff]
  %v61 = vld [vmem:[%s1 + $0x8] sm:$0xff]
  %v62 = vld [vmem:[%s1 + $0x10] sm:$0xff]
  %v63 = vld [vmem:[%s1 + $0x18] sm:$0xff]
  %v64 = vld [vmem:[%s3] sm:$0x1]
  %v66 = vlaneseq
  %v67 = vshrl.u32 %v66, 7
  %v68 = vsub.s32 0, %v67
  %v69 = vrot.slane %v64, %v68
  %vm71 = vcmask 261120
  %v73 = vsel %vm71, %v52, 0
  %v76 = vsel %vm71, %v53, 0
  %v79 = vsel %vm71, %v54, 0
  %v82 = vsel %vm71, %v55, 0
  %v85 = vsel %vm71, %v56, 0
  %v88 = vsel %vm71, %v57, 0
  %v91 = vsel %vm71, %v58, 0
  %v94 = vsel %vm71, %v59, 0
  %96 = vmatprep.subr.mxu0 0.0
  %97 = vmatpush1.msra.mxu0 0.0
  %98 = vmatprep.subr.mxu0 0.0
  %99 = vmatpush1.msra.mxu0 0.0
  %100 = vmatprep.subr.mxu0 0.0
  %101 = vmatpush1.msra.mxu0 0.0
  %102 = vmatprep.subr.mxu0 0.0
  %103 = vmatpush1.msra.mxu0 0.0
  %104 = vmatprep.subr.mxu0 0.0
  %105 = vmatpush1.msra.mxu0 0.0
  %106 = vmatprep.subr.mxu0 0.0
  %107 = vmatpush1.msra.mxu0 0.0
  %108 = vmatprep.subr.mxu0 0.0
  %109 = vmatpush1.msra.mxu0 0.0
  %110 = vmatprep.subr.mxu0 0.0
  %111 = vmatpush1.msra.mxu0 0.0
  %112 = vmatprep.subr.mxu0 0.0
  %113 = vmatpush1.msra.mxu0 0.0
  %114 = vmatprep.subr.mxu0 0.0
  %115 = vmatpush1.msra.mxu0 0.0
  %116 = vmatprep.subr.mxu0 0.0
  %117 = vmatpush1.msra.mxu0 0.0
  %118 = vmatprep.subr.mxu0 0.0
  %119 = vmatpush1.msra.mxu0 0.0
  %120 = vmatprep.subr.mxu0 0.0
  %121 = vmatpush1.msra.mxu0 %v63
  %122 = vmatprep.subr.mxu0 0.0
  %123 = vmatpush1.msra.mxu0 %v62
  %124 = vmatprep.subr.mxu0 0.0
  %125 = vmatpush1.msra.mxu0 %v61
  %126 = vmatprep.subr.mxu0 0.0
  %127 = vmatpush1.msra.mxu0 %v60
  %128 = vmatprep.subr.mxu0 0.0
  %129 = vmatpush2.msra.mxu0 0.0
  %130 = vmatprep.subr.mxu0 0.0
  %131 = vmatpush2.msra.mxu0 0.0
  %132 = vmatprep.subr.mxu0 0.0
  %133 = vmatpush2.msra.mxu0 0.0
  %134 = vmatprep.subr.mxu0 0.0
  %135 = vmatpush2.msra.mxu0 0.0
  %136 = vmatprep.subr.mxu0 0.0
  %137 = vmatpush2.msra.mxu0 0.0
  %138 = vmatprep.subr.mxu0 0.0
  %139 = vmatpush2.msra.mxu0 0.0
  %140 = vmatprep.subr.mxu0 0.0
  %141 = vmatpush2.msra.mxu0 0.0
  %142 = vmatprep.subr.mxu0 0.0
  %143 = vmatpush2.msra.mxu0 0.0
  %144 = vmatprep.subr.mxu0 0.0
  %145 = vmatpush2.msra.mxu0 0.0
  %146 = vmatprep.subr.mxu0 0.0
  %147 = vmatpush2.msra.mxu0 0.0
  %148 = vmatprep.subr.mxu0 0.0
  %149 = vmatpush2.msra.mxu0 0.0
  %150 = vmatprep.subr.mxu0 0.0
  %151 = vmatpush2.msra.mxu0 0.0
  %152 = vmatprep.subr.mxu0 0.0
  %153 = vmatpush2.msra.mxu0 0.0
  %154 = vmatprep.subr.mxu0 0.0
  %155 = vmatpush2.msra.mxu0 0.0
  %156 = vmatprep.subr.mxu0 0.0
  %157 = vmatpush2.msra.mxu0 0.0
  %158 = vmatprep.subr.mxu0 0.0
  %159 = vmatpush2.msra.mxu0 0.0
  %160 = vmatprep.mubr.f32.mxu0 0.0
  %161 = vmatmul.mubr.f32.gmra.mxu0 %v73
  %v162 = vpop.f32.mrf.mxu0
  %v163 = vadd.f32 %v69, %v162
  %v164 = vpop.f32.mrf.mxu0
  %165 = vmatprep.mubr.f32.mxu0 0.0
  %166 = vmatmul.mubr.f32.gmra.mxu0 %v76
  %v167 = vpop.f32.mrf.mxu0
  %v168 = vadd.f32 %v69, %v167
  %v169 = vpop.f32.mrf.mxu0
  %170 = vmatprep.mubr.f32.mxu0 0.0
  %171 = vmatmul.mubr.f32.gmra.mxu0 %v79
  %v172 = vpop.f32.mrf.mxu0
  %v173 = vadd.f32 %v69, %v172
  %v174 = vpop.f32.mrf.mxu0
  %175 = vmatprep.mubr.f32.mxu0 0.0
  %176 = vmatmul.mubr.f32.gmra.mxu0 %v82
  %v177 = vpop.f32.mrf.mxu0
  %v178 = vadd.f32 %v69, %v177
  %v179 = vpop.f32.mrf.mxu0
  %180 = vmatprep.mubr.f32.mxu0 0.0
  %181 = vmatmul.mubr.f32.gmra.mxu0 %v85
  %v182 = vpop.f32.mrf.mxu0
  %v183 = vadd.f32 %v69, %v182
  %v184 = vpop.f32.mrf.mxu0
  %185 = vmatprep.mubr.f32.mxu0 0.0
  %186 = vmatmul.mubr.f32.gmra.mxu0 %v88
  %v187 = vpop.f32.mrf.mxu0
  %v188 = vadd.f32 %v69, %v187
  %v189 = vpop.f32.mrf.mxu0
  %190 = vmatprep.mubr.f32.mxu0 0.0
  %191 = vmatmul.mubr.f32.gmra.mxu0 %v91
  %v192 = vpop.f32.mrf.mxu0
  %v193 = vadd.f32 %v69, %v192
  %v194 = vpop.f32.mrf.mxu0
  %195 = vmatprep.mubr.f32.mxu0 0.0
  %196 = vmatmul.mubr.f32.gmra.mxu0 %v94
  %v197 = vpop.f32.mrf.mxu0
  %v198 = vadd.f32 %v69, %v197
  %v199 = vpop.f32.mrf.mxu0
  %200 = vdwg.mxu0
  %v201 = vld [vmem:[%s4] sm:$0xff]
  %v202 = vld [vmem:[%s4 + $0x8] sm:$0xff]
  %v203 = vld [vmem:[%s4 + $0x10] sm:$0xff]
  %v204 = vld [vmem:[%s4 + $0x18] sm:$0xff]
  %v205 = vld [vmem:[%s6] sm:$0x1]
  %v207 = vlaneseq
  %v208 = vshrl.u32 %v207, 7
  %v209 = vsub.s32 0, %v208
  %v210 = vrot.slane %v205, %v209
  %212 = vmatprep.subr.mxu0 0.0
  %213 = vmatpush1.msra.mxu0 0.0
  %214 = vmatprep.subr.mxu0 0.0
  %215 = vmatpush1.msra.mxu0 0.0
  %216 = vmatprep.subr.mxu0 0.0
  %217 = vmatpush1.msra.mxu0 0.0
  %218 = vmatprep.subr.mxu0 0.0
  %219 = vmatpush1.msra.mxu0 0.0
  %220 = vmatprep.subr.mxu0 0.0
  %221 = vmatpush1.msra.mxu0 0.0
  %222 = vmatprep.subr.mxu0 0.0
  %223 = vmatpush1.msra.mxu0 0.0
  %224 = vmatprep.subr.mxu0 0.0
  %225 = vmatpush1.msra.mxu0 0.0
  %226 = vmatprep.subr.mxu0 0.0
  %227 = vmatpush1.msra.mxu0 0.0
  %228 = vmatprep.subr.mxu0 0.0
  %229 = vmatpush1.msra.mxu0 0.0
  %230 = vmatprep.subr.mxu0 0.0
  %231 = vmatpush1.msra.mxu0 0.0
  %232 = vmatprep.subr.mxu0 0.0
  %233 = vmatpush1.msra.mxu0 0.0
  %234 = vmatprep.subr.mxu0 0.0
  %235 = vmatpush1.msra.mxu0 0.0
  %236 = vmatprep.subr.mxu0 0.0
  %237 = vmatpush1.msra.mxu0 %v204
  %238 = vmatprep.subr.mxu0 0.0
  %239 = vmatpush1.msra.mxu0 %v203
  %240 = vmatprep.subr.mxu0 0.0
  %241 = vmatpush1.msra.mxu0 %v202
  %242 = vmatprep.subr.mxu0 0.0
  %243 = vmatpush1.msra.mxu0 %v201
  %244 = vmatprep.subr.mxu0 0.0
  %245 = vmatpush2.msra.mxu0 0.0
  %246 = vmatprep.subr.mxu0 0.0
  %247 = vmatpush2.msra.mxu0 0.0
  %248 = vmatprep.subr.mxu0 0.0
  %249 = vmatpush2.msra.mxu0 0.0
  %250 = vmatprep.subr.mxu0 0.0
  %251 = vmatpush2.msra.mxu0 0.0
  %252 = vmatprep.subr.mxu0 0.0
  %253 = vmatpush2.msra.mxu0 0.0
  %254 = vmatprep.subr.mxu0 0.0
  %255 = vmatpush2.msra.mxu0 0.0
  %256 = vmatprep.subr.mxu0 0.0
  %257 = vmatpush2.msra.mxu0 0.0
  %258 = vmatprep.subr.mxu0 0.0
  %259 = vmatpush2.msra.mxu0 0.0
  %260 = vmatprep.subr.mxu0 0.0
  %261 = vmatpush2.msra.mxu0 0.0
  %262 = vmatprep.subr.mxu0 0.0
  %263 = vmatpush2.msra.mxu0 0.0
  %264 = vmatprep.subr.mxu0 0.0
  %265 = vmatpush2.msra.mxu0 0.0
  %266 = vmatprep.subr.mxu0 0.0
  %267 = vmatpush2.msra.mxu0 0.0
  %268 = vmatprep.subr.mxu0 0.0
  %269 = vmatpush2.msra.mxu0 0.0
  %270 = vmatprep.subr.mxu0 0.0
  %271 = vmatpush2.msra.mxu0 0.0
  %272 = vmatprep.subr.mxu0 0.0
  %273 = vmatpush2.msra.mxu0 0.0
  %274 = vmatprep.subr.mxu0 0.0
  %275 = vmatpush2.msra.mxu0 0.0
  %276 = vmatprep.mubr.f32.mxu0 0.0
  %277 = vmatmul.mubr.f32.gmra.mxu0 %v73
  %v278 = vpop.f32.mrf.mxu0
  %v279 = vadd.f32 %v210, %v278
  %v280 = vpop.f32.mrf.mxu0
  %281 = vmatprep.mubr.f32.mxu0 0.0
  %282 = vmatmul.mubr.f32.gmra.mxu0 %v76
  %v283 = vpop.f32.mrf.mxu0
  %v284 = vadd.f32 %v210, %v283
  %v285 = vpop.f32.mrf.mxu0
  %286 = vmatprep.mubr.f32.mxu0 0.0
  %287 = vmatmul.mubr.f32.gmra.mxu0 %v79
  %v288 = vpop.f32.mrf.mxu0
  %v289 = vadd.f32 %v210, %v288
  %v290 = vpop.f32.mrf.mxu0
  %291 = vmatprep.mubr.f32.mxu0 0.0
  %292 = vmatmul.mubr.f32.gmra.mxu0 %v82
  %v293 = vpop.f32.mrf.mxu0
  %v294 = vadd.f32 %v210, %v293
  %v295 = vpop.f32.mrf.mxu0
  %296 = vmatprep.mubr.f32.mxu0 0.0
  %297 = vmatmul.mubr.f32.gmra.mxu0 %v85
  %v298 = vpop.f32.mrf.mxu0
  %v299 = vadd.f32 %v210, %v298
  %v300 = vpop.f32.mrf.mxu0
  %301 = vmatprep.mubr.f32.mxu0 0.0
  %302 = vmatmul.mubr.f32.gmra.mxu0 %v88
  %v303 = vpop.f32.mrf.mxu0
  %v304 = vadd.f32 %v210, %v303
  %v305 = vpop.f32.mrf.mxu0
  %306 = vmatprep.mubr.f32.mxu0 0.0
  %307 = vmatmul.mubr.f32.gmra.mxu0 %v91
  %v308 = vpop.f32.mrf.mxu0
  %v309 = vadd.f32 %v210, %v308
  %v310 = vpop.f32.mrf.mxu0
  %311 = vmatprep.mubr.f32.mxu0 0.0
  %312 = vmatmul.mubr.f32.gmra.mxu0 %v94
  %v313 = vpop.f32.mrf.mxu0
  %v314 = vadd.f32 %v210, %v313
  %v315 = vpop.f32.mrf.mxu0
  %316 = vdwg.mxu0
  %317 = vst [vmem:[#allocation2] sm:$0xff] %v163
  %318 = vst [vmem:[#allocation2 + $0x8] sm:$0xff] %v168
  %319 = vst [vmem:[#allocation2 + $0x10] sm:$0xff] %v173
  %320 = vst [vmem:[#allocation2 + $0x18] sm:$0xff] %v178
  %321 = vst [vmem:[#allocation2 + $0x20] sm:$0xff] %v183
  %322 = vst [vmem:[#allocation2 + $0x28] sm:$0xff] %v188
  %323 = vst [vmem:[#allocation2 + $0x30] sm:$0xff] %v193
  %324 = vst [vmem:[#allocation2 + $0x38] sm:$0xff] %v198
  %325 = vst [vmem:[#allocation4] sm:$0xff] %v279
  %326 = vst [vmem:[#allocation4 + $0x8] sm:$0xff] %v284
  %327 = vst [vmem:[#allocation4 + $0x10] sm:$0xff] %v289
  %328 = vst [vmem:[#allocation4 + $0x18] sm:$0xff] %v294
  %329 = vst [vmem:[#allocation4 + $0x20] sm:$0xff] %v299
  %330 = vst [vmem:[#allocation4 + $0x28] sm:$0xff] %v304
  %331 = vst [vmem:[#allocation4 + $0x30] sm:$0xff] %v309
  %332 = vst [vmem:[#allocation4 + $0x38] sm:$0xff] %v314
  %v333 = vld [vmem:[%s2] sm:$0xff]
  %v334 = vld [vmem:[%s2 + $0x8] sm:$0xff]
  %v335 = vld [vmem:[%s2 + $0x10] sm:$0xff]
  %v336 = vld [vmem:[%s2 + $0x18] sm:$0xff]
  %v337 = vld [vmem:[%s5] sm:$0xff]
  %v338 = vld [vmem:[%s5 + $0x8] sm:$0xff]
  %v339 = vld [vmem:[%s5 + $0x10] sm:$0xff]
  %v340 = vld [vmem:[%s5 + $0x18] sm:$0xff]
  %v341 = vld [vmem:[#allocation2] sm:$0xff]
  %v343 = vsel %vm71, 0.0, 0
  %345 = vmatprep.subr.mxu0 0.0
  %346 = vmatpush1.msra.mxu0 0.0
  %347 = vmatprep.subr.mxu0 0.0
  %348 = vmatpush1.msra.mxu0 0.0
  %349 = vmatprep.subr.mxu0 0.0
  %350 = vmatpush1.msra.mxu0 0.0
  %351 = vmatprep.subr.mxu0 0.0
  %352 = vmatpush1.msra.mxu0 0.0
  %353 = vmatprep.subr.mxu0 0.0
  %354 = vmatpush1.msra.mxu0 0.0
  %355 = vmatprep.subr.mxu0 0.0
  %356 = vmatpush1.msra.mxu0 0.0
  %357 = vmatprep.subr.mxu0 0.0
  %358 = vmatpush1.msra.mxu0 0.0
  %359 = vmatprep.subr.mxu0 0.0
  %360 = vmatpush1.msra.mxu0 0.0
  %361 = vmatprep.subr.mxu0 0.0
  %362 = vmatpush1.msra.mxu0 0.0
  %363 = vmatprep.subr.mxu0 0.0
  %364 = vmatpush1.msra.mxu0 0.0
  %365 = vmatprep.subr.mxu0 0.0
  %366 = vmatpush1.msra.mxu0 0.0
  %367 = vmatprep.subr.mxu0 0.0
  %368 = vmatpush1.msra.mxu0 0.0
  %369 = vmatprep.subr.mxu0 0.0
  %370 = vmatpush1.msra.mxu0 %v336
  %371 = vmatprep.subr.mxu0 0.0
  %372 = vmatpush1.msra.mxu0 %v335
  %373 = vmatprep.subr.mxu0 0.0
  %374 = vmatpush1.msra.mxu0 %v334
  %375 = vmatprep.subr.mxu0 0.0
  %376 = vmatpush1.msra.mxu0 %v333
  %377 = vmatprep.subr.mxu0 0.0
  %378 = vmatpush2.msra.mxu0 0.0
  %379 = vmatprep.subr.mxu0 0.0
  %380 = vmatpush2.msra.mxu0 0.0
  %381 = vmatprep.subr.mxu0 0.0
  %382 = vmatpush2.msra.mxu0 0.0
  %383 = vmatprep.subr.mxu0 0.0
  %384 = vmatpush2.msra.mxu0 0.0
  %385 = vmatprep.subr.mxu0 0.0
  %386 = vmatpush2.msra.mxu0 0.0
  %387 = vmatprep.subr.mxu0 0.0
  %388 = vmatpush2.msra.mxu0 0.0
  %389 = vmatprep.subr.mxu0 0.0
  %390 = vmatpush2.msra.mxu0 0.0
  %391 = vmatprep.subr.mxu0 0.0
  %392 = vmatpush2.msra.mxu0 0.0
  %393 = vmatprep.subr.mxu0 0.0
  %394 = vmatpush2.msra.mxu0 0.0
  %395 = vmatprep.subr.mxu0 0.0
  %396 = vmatpush2.msra.mxu0 0.0
  %397 = vmatprep.subr.mxu0 0.0
  %398 = vmatpush2.msra.mxu0 0.0
  %399 = vmatprep.subr.mxu0 0.0
  %400 = vmatpush2.msra.mxu0 0.0
  %401 = vmatprep.subr.mxu0 0.0
  %402 = vmatpush2.msra.mxu0 0.0
  %403 = vmatprep.subr.mxu0 0.0
  %404 = vmatpush2.msra.mxu0 0.0
  %405 = vmatprep.subr.mxu0 0.0
  %406 = vmatpush2.msra.mxu0 0.0
  %407 = vmatprep.subr.mxu0 0.0
  %408 = vmatpush2.msra.mxu0 0.0
  %409 = vmatprep.mubr.f32.mxu0 0.0
  %410 = vmatmul.mubr.f32.gmra.mxu0 %v343
  %v411 = vpop.f32.mrf.mxu0
  %v412 = vadd.f32 0.0, %v411
  %v413 = vpop.f32.mrf.mxu0
  %414 = vdwg.mxu0
  %v415 = vadd.f32 %v341, %v412
  %v416 = vxor.u32 %v415, 2147483648
  %v417 = vmul.f32 %v416, 1.442695
  %v418 = vpow.pop %v417
  %v419 = vadd.f32 %v418, 1.0
  %v420 = vrcp.pop %v419
  %v421 = vmul.f32 1.0, %v420
  %v422 = vtanh.pop %v415
  %v423 = vmul.f32 %v421, 0.0
  %425 = vrot.lane.b32.xlu0 %v422, 64
  %v426 = vpop.permute.xlu0 %425
  %v428 = vmul.f32 %v421, %v426
  %430 = vrot.lane.b32.xlu0 %v428, 32
  %v431 = vpop.permute.xlu0 %430
  %v433 = vadd.f32 %v423, %v431
  %v434 = vtanh.pop %v433
  %436 = vrot.lane.b32.xlu0 %v434, 64
  %v437 = vpop.permute.xlu0 %436
  %v439 = vmul.f32 %v421, %v437
  %441 = vrot.lane.b32.xlu0 %v439, 32
  %v442 = vpop.permute.xlu0 %441
  %444 = vst.msk [vmem:[#allocation3] sm:$0xff] %vm71, %v442
  %v445 = vld [vmem:[#allocation4 + $0x38] sm:$0xff]
  %446 = vmatprep.subr.mxu0 0.0
  %447 = vmatpush1.msra.mxu0 0.0
  %448 = vmatprep.subr.mxu0 0.0
  %449 = vmatpush1.msra.mxu0 0.0
  %450 = vmatprep.subr.mxu0 0.0
  %451 = vmatpush1.msra.mxu0 0.0
  %452 = vmatprep.subr.mxu0 0.0
  %453 = vmatpush1.msra.mxu0 0.0
  %454 = vmatprep.subr.mxu0 0.0
  %455 = vmatpush1.msra.mxu0 0.0
  %456 = vmatprep.subr.mxu0 0.0
  %457 = vmatpush1.msra.mxu0 0.0
  %458 = vmatprep.subr.mxu0 0.0
  %459 = vmatpush1.msra.mxu0 0.0
  %460 = vmatprep.subr.mxu0 0.0
  %461 = vmatpush1.msra.mxu0 0.0
  %462 = vmatprep.subr.mxu0 0.0
  %463 = vmatpush1.msra.mxu0 0.0
  %464 = vmatprep.subr.mxu0 0.0
  %465 = vmatpush1.msra.mxu0 0.0
  %466 = vmatprep.subr.mxu0 0.0
  %467 = vmatpush1.msra.mxu0 0.0
  %468 = vmatprep.subr.mxu0 0.0
  %469 = vmatpush1.msra.mxu0 0.0
  %470 = vmatprep.subr.mxu0 0.0
  %471 = vmatpush1.msra.mxu0 %v340
  %472 = vmatprep.subr.mxu0 0.0
  %473 = vmatpush1.msra.mxu0 %v339
  %474 = vmatprep.subr.mxu0 0.0
  %475 = vmatpush1.msra.mxu0 %v338
  %476 = vmatprep.subr.mxu0 0.0
  %477 = vmatpush1.msra.mxu0 %v337
  %478 = vmatprep.subr.mxu0 0.0
  %479 = vmatpush2.msra.mxu0 0.0
  %480 = vmatprep.subr.mxu0 0.0
  %481 = vmatpush2.msra.mxu0 0.0
  %482 = vmatprep.subr.mxu0 0.0
  %483 = vmatpush2.msra.mxu0 0.0
  %484 = vmatprep.subr.mxu0 0.0
  %485 = vmatpush2.msra.mxu0 0.0
  %486 = vmatprep.subr.mxu0 0.0
  %487 = vmatpush2.msra.mxu0 0.0
  %488 = vmatprep.subr.mxu0 0.0
  %489 = vmatpush2.msra.mxu0 0.0
  %490 = vmatprep.subr.mxu0 0.0
  %491 = vmatpush2.msra.mxu0 0.0
  %492 = vmatprep.subr.mxu0 0.0
  %493 = vmatpush2.msra.mxu0 0.0
  %494 = vmatprep.subr.mxu0 0.0
  %495 = vmatpush2.msra.mxu0 0.0
  %496 = vmatprep.subr.mxu0 0.0
  %497 = vmatpush2.msra.mxu0 0.0
  %498 = vmatprep.subr.mxu0 0.0
  %499 = vmatpush2.msra.mxu0 0.0
  %500 = vmatprep.subr.mxu0 0.0
  %501 = vmatpush2.msra.mxu0 0.0
  %502 = vmatprep.subr.mxu0 0.0
  %503 = vmatpush2.msra.mxu0 0.0
  %504 = vmatprep.subr.mxu0 0.0
  %505 = vmatpush2.msra.mxu0 0.0
  %506 = vmatprep.subr.mxu0 0.0
  %507 = vmatpush2.msra.mxu0 0.0
  %508 = vmatprep.subr.mxu0 0.0
  %509 = vmatpush2.msra.mxu0 0.0
  %510 = vmatprep.mubr.f32.mxu0 0.0
  %511 = vmatmul.mubr.f32.gmra.mxu0 %v343
  %v512 = vpop.f32.mrf.mxu0
  %v513 = vadd.f32 0.0, %v512
  %v514 = vpop.f32.mrf.mxu0
  %515 = vdwg.mxu0
  %v516 = vadd.f32 %v445, %v513
  %v517 = vxor.u32 %v516, 2147483648
  %v518 = vmul.f32 %v517, 1.442695
  %v519 = vpow.pop %v518
  %v520 = vadd.f32 %v519, 1.0
  %v521 = vrcp.pop %v520
  %v522 = vmul.f32 1.0, %v521
  %v523 = vtanh.pop %v516
  %v524 = vmul.f32 %v522, 0.0
  %526 = vrot.lane.b32.xlu0 %v523, 64
  %v527 = vpop.permute.xlu0 %526
  %v529 = vmul.f32 %v522, %v527
  %531 = vrot.lane.b32.xlu0 %v529, 32
  %v532 = vpop.permute.xlu0 %531
  %v534 = vadd.f32 %v524, %v532
  %v535 = vtanh.pop %v534
  %537 = vrot.lane.b32.xlu0 %v535, 64
  %v538 = vpop.permute.xlu0 %537
  %v540 = vmul.f32 %v522, %v538
  %542 = vrot.lane.b32.xlu0 %v540, 32
  %v543 = vpop.permute.xlu0 %542
  %545 = vst.msk [vmem:[#allocation5 + $0x38] sm:$0xff] %vm71, %v543
  %v546 = vld [vmem:[#allocation2 + $0x8] sm:$0xff]
  %v547 = vsel %vm71, %v442, 0
  %549 = vmatprep.subr.mxu0 0.0
  %550 = vmatpush1.msra.mxu0 0.0
  %551 = vmatprep.subr.mxu0 0.0
  %552 = vmatpush1.msra.mxu0 0.0
  %553 = vmatprep.subr.mxu0 0.0
  %554 = vmatpush1.msra.mxu0 0.0
  %555 = vmatprep.subr.mxu0 0.0
  %556 = vmatpush1.msra.mxu0 0.0
  %557 = vmatprep.subr.mxu0 0.0
  %558 = vmatpush1.msra.mxu0 0.0
  %559 = vmatprep.subr.mxu0 0.0
  %560 = vmatpush1.msra.mxu0 0.0
  %561 = vmatprep.subr.mxu0 0.0
  %562 = vmatpush1.msra.mxu0 0.0
  %563 = vmatprep.subr.mxu0 0.0
  %564 = vmatpush1.msra.mxu0 0.0
  %565 = vmatprep.subr.mxu0 0.0
  %566 = vmatpush1.msra.mxu0 0.0
  %567 = vmatprep.subr.mxu0 0.0
  %568 = vmatpush1.msra.mxu0 0.0
  %569 = vmatprep.subr.mxu0 0.0
  %570 = vmatpush1.msra.mxu0 0.0
  %571 = vmatprep.subr.mxu0 0.0
  %572 = vmatpush1.msra.mxu0 0.0
  %573 = vmatprep.subr.mxu0 0.0
  %574 = vmatpush1.msra.mxu0 %v336
  %575 = vmatprep.subr.mxu0 0.0
  %576 = vmatpush1.msra.mxu0 %v335
  %577 = vmatprep.subr.mxu0 0.0
  %578 = vmatpush1.msra.mxu0 %v334
  %579 = vmatprep.subr.mxu0 0.0
  %580 = vmatpush1.msra.mxu0 %v333
  %581 = vmatprep.subr.mxu0 0.0
  %582 = vmatpush2.msra.mxu0 0.0
  %583 = vmatprep.subr.mxu0 0.0
  %584 = vmatpush2.msra.mxu0 0.0
  %585 = vmatprep.subr.mxu0 0.0
  %586 = vmatpush2.msra.mxu0 0.0
  %587 = vmatprep.subr.mxu0 0.0
  %588 = vmatpush2.msra.mxu0 0.0
  %589 = vmatprep.subr.mxu0 0.0
  %590 = vmatpush2.msra.mxu0 0.0
  %591 = vmatprep.subr.mxu0 0.0
  %592 = vmatpush2.msra.mxu0 0.0
  %593 = vmatprep.subr.mxu0 0.0
  %594 = vmatpush2.msra.mxu0 0.0
  %595 = vmatprep.subr.mxu0 0.0
  %596 = vmatpush2.msra.mxu0 0.0
  %597 = vmatprep.subr.mxu0 0.0
  %598 = vmatpush2.msra.mxu0 0.0
  %599 = vmatprep.subr.mxu0 0.0
  %600 = vmatpush2.msra.mxu0 0.0
  %601 = vmatprep.subr.mxu0 0.0
  %602 = vmatpush2.msra.mxu0 0.0
  %603 = vmatprep.subr.mxu0 0.0
  %604 = vmatpush2.msra.mxu0 0.0
  %605 = vmatprep.subr.mxu0 0.0
  %606 = vmatpush2.msra.mxu0 0.0
  %607 = vmatprep.subr.mxu0 0.0
  %608 = vmatpush2.msra.mxu0 0.0
  %609 = vmatprep.subr.mxu0 0.0
  %610 = vmatpush2.msra.mxu0 0.0
  %611 = vmatprep.subr.mxu0 0.0
  %612 = vmatpush2.msra.mxu0 0.0
  %613 = vmatprep.mubr.f32.mxu0 0.0
  %614 = vmatmul.mubr.f32.gmra.mxu0 %v547
  %v615 = vpop.f32.mrf.mxu0
  %v616 = vadd.f32 0.0, %v615
  %v617 = vpop.f32.mrf.mxu0
  %618 = vdwg.mxu0
  %v619 = vadd.f32 %v546, %v616
  %v620 = vxor.u32 %v619, 2147483648
  %v621 = vmul.f32 %v620, 1.442695
  %v622 = vpow.pop %v621
  %v623 = vadd.f32 %v622, 1.0
  %v624 = vrcp.pop %v623
  %v625 = vmul.f32 1.0, %v624
  %v626 = vtanh.pop %v619
  %v627 = vmul.f32 %v625, %v433
  %629 = vrot.lane.b32.xlu0 %v626, 64
  %v630 = vpop.permute.xlu0 %629
  %v632 = vmul.f32 %v625, %v630
  %634 = vrot.lane.b32.xlu0 %v632, 32
  %v635 = vpop.permute.xlu0 %634
  %v637 = vadd.f32 %v627, %v635
  %v638 = vtanh.pop %v637
  %640 = vrot.lane.b32.xlu0 %v638, 64
  %v641 = vpop.permute.xlu0 %640
  %v643 = vmul.f32 %v625, %v641
  %645 = vrot.lane.b32.xlu0 %v643, 32
  %v646 = vpop.permute.xlu0 %645
  %648 = vst.msk [vmem:[#allocation3 + $0x8] sm:$0xff] %vm71, %v646
  %v649 = vld [vmem:[#allocation4 + $0x30] sm:$0xff]
  %v650 = vsel %vm71, %v543, 0
  %652 = vmatprep.subr.mxu0 0.0
  %653 = vmatpush1.msra.mxu0 0.0
  %654 = vmatprep.subr.mxu0 0.0
  %655 = vmatpush1.msra.mxu0 0.0
  %656 = vmatprep.subr.mxu0 0.0
  %657 = vmatpush1.msra.mxu0 0.0
  %658 = vmatprep.subr.mxu0 0.0
  %659 = vmatpush1.msra.mxu0 0.0
  %660 = vmatprep.subr.mxu0 0.0
  %661 = vmatpush1.msra.mxu0 0.0
  %662 = vmatprep.subr.mxu0 0.0
  %663 = vmatpush1.msra.mxu0 0.0
  %664 = vmatprep.subr.mxu0 0.0
  %665 = vmatpush1.msra.mxu0 0.0
  %666 = vmatprep.subr.mxu0 0.0
  %667 = vmatpush1.msra.mxu0 0.0
  %668 = vmatprep.subr.mxu0 0.0
  %669 = vmatpush1.msra.mxu0 0.0
  %670 = vmatprep.subr.mxu0 0.0
  %671 = vmatpush1.msra.mxu0 0.0
  %672 = vmatprep.subr.mxu0 0.0
  %673 = vmatpush1.msra.mxu0 0.0
  %674 = vmatprep.subr.mxu0 0.0
  %675 = vmatpush1.msra.mxu0 0.0
  %676 = vmatprep.subr.mxu0 0.0
  %677 = vmatpush1.msra.mxu0 %v340
  %678 = vmatprep.subr.mxu0 0.0
  %679 = vmatpush1.msra.mxu0 %v339
  %680 = vmatprep.subr.mxu0 0.0
  %681 = vmatpush1.msra.mxu0 %v338
  %682 = vmatprep.subr.mxu0 0.0
  %683 = vmatpush1.msra.mxu0 %v337
  %684 = vmatprep.subr.mxu0 0.0
  %685 = vmatpush2.msra.mxu0 0.0
  %686 = vmatprep.subr.mxu0 0.0
  %687 = vmatpush2.msra.mxu0 0.0
  %688 = vmatprep.subr.mxu0 0.0
  %689 = vmatpush2.msra.mxu0 0.0
  %690 = vmatprep.subr.mxu0 0.0
  %691 = vmatpush2.msra.mxu0 0.0
  %692 = vmatprep.subr.mxu0 0.0
  %693 = vmatpush2.msra.mxu0 0.0
  %694 = vmatprep.subr.mxu0 0.0
  %695 = vmatpush2.msra.mxu0 0.0
  %696 = vmatprep.subr.mxu0 0.0
  %697 = vmatpush2.msra.mxu0 0.0
  %698 = vmatprep.subr.mxu0 0.0
  %699 = vmatpush2.msra.mxu0 0.0
  %700 = vmatprep.subr.mxu0 0.0
  %701 = vmatpush2.msra.mxu0 0.0
  %702 = vmatprep.subr.mxu0 0.0
  %703 = vmatpush2.msra.mxu0 0.0
  %704 = vmatprep.subr.mxu0 0.0
  %705 = vmatpush2.msra.mxu0 0.0
  %706 = vmatprep.subr.mxu0 0.0
  %707 = vmatpush2.msra.mxu0 0.0
  %708 = vmatprep.subr.mxu0 0.0
  %709 = vmatpush2.msra.mxu0 0.0
  %710 = vmatprep.subr.mxu0 0.0
  %711 = vmatpush2.msra.mxu0 0.0
  %712 = vmatprep.subr.mxu0 0.0
  %713 = vmatpush2.msra.mxu0 0.0
  %714 = vmatprep.subr.mxu0 0.0
  %715 = vmatpush2.msra.mxu0 0.0
  %716 = vmatprep.mubr.f32.mxu0 0.0
  %717 = vmatmul.mubr.f32.gmra.mxu0 %v650
  %v718 = vpop.f32.mrf.mxu0
  %v719 = vadd.f32 0.0, %v718
  %v720 = vpop.f32.mrf.mxu0
  %721 = vdwg.mxu0
  %v722 = vadd.f32 %v649, %v719
  %v723 = vxor.u32 %v722, 2147483648
  %v724 = vmul.f32 %v723, 1.442695
  %v725 = vpow.pop %v724
  %v726 = vadd.f32 %v725, 1.0
  %v727 = vrcp.pop %v726
  %v728 = vmul.f32 1.0, %v727
  %v729 = vtanh.pop %v722
  %v730 = vmul.f32 %v728, %v534
  %732 = vrot.lane.b32.xlu0 %v729, 64
  %v733 = vpop.permute.xlu0 %732
  %v735 = vmul.f32 %v728, %v733
  %737 = vrot.lane.b32.xlu0 %v735, 32
  %v738 = vpop.permute.xlu0 %737
  %v740 = vadd.f32 %v730, %v738
  %v741 = vtanh.pop %v740
  %743 = vrot.lane.b32.xlu0 %v741, 64
  %v744 = vpop.permute.xlu0 %743
  %v746 = vmul.f32 %v728, %v744
  %748 = vrot.lane.b32.xlu0 %v746, 32
  %v749 = vpop.permute.xlu0 %748
  %751 = vst.msk [vmem:[#allocation5 + $0x30] sm:$0xff] %vm71, %v749
  %v752 = vld [vmem:[#allocation2 + $0x10] sm:$0xff]
  %v753 = vsel %vm71, %v646, 0
  %755 = vmatprep.subr.mxu0 0.0
  %756 = vmatpush1.msra.mxu0 0.0
  %757 = vmatprep.subr.mxu0 0.0
  %758 = vmatpush1.msra.mxu0 0.0
  %759 = vmatprep.subr.mxu0 0.0
  %760 = vmatpush1.msra.mxu0 0.0
  %761 = vmatprep.subr.mxu0 0.0
  %762 = vmatpush1.msra.mxu0 0.0
  %763 = vmatprep.subr.mxu0 0.0
  %764 = vmatpush1.msra.mxu0 0.0
  %765 = vmatprep.subr.mxu0 0.0
  %766 = vmatpush1.msra.mxu0 0.0
  %767 = vmatprep.subr.mxu0 0.0
  %768 = vmatpush1.msra.mxu0 0.0
  %769 = vmatprep.subr.mxu0 0.0
  %770 = vmatpush1.msra.mxu0 0.0
  %771 = vmatprep.subr.mxu0 0.0
  %772 = vmatpush1.msra.mxu0 0.0
  %773 = vmatprep.subr.mxu0 0.0
  %774 = vmatpush1.msra.mxu0 0.0
  %775 = vmatprep.subr.mxu0 0.0
  %776 = vmatpush1.msra.mxu0 0.0
  %777 = vmatprep.subr.mxu0 0.0
  %778 = vmatpush1.msra.mxu0 0.0
  %779 = vmatprep.subr.mxu0 0.0
  %780 = vmatpush1.msra.mxu0 %v336
  %781 = vmatprep.subr.mxu0 0.0
  %782 = vmatpush1.msra.mxu0 %v335
  %783 = vmatprep.subr.mxu0 0.0
  %784 = vmatpush1.msra.mxu0 %v334
  %785 = vmatprep.subr.mxu0 0.0
  %786 = vmatpush1.msra.mxu0 %v333
  %787 = vmatprep.subr.mxu0 0.0
  %788 = vmatpush2.msra.mxu0 0.0
  %789 = vmatprep.subr.mxu0 0.0
  %790 = vmatpush2.msra.mxu0 0.0
  %791 = vmatprep.subr.mxu0 0.0
  %792 = vmatpush2.msra.mxu0 0.0
  %793 = vmatprep.subr.mxu0 0.0
  %794 = vmatpush2.msra.mxu0 0.0
  %795 = vmatprep.subr.mxu0 0.0
  %796 = vmatpush2.msra.mxu0 0.0
  %797 = vmatprep.subr.mxu0 0.0
  %798 = vmatpush2.msra.mxu0 0.0
  %799 = vmatprep.subr.mxu0 0.0
  %800 = vmatpush2.msra.mxu0 0.0
  %801 = vmatprep.subr.mxu0 0.0
  %802 = vmatpush2.msra.mxu0 0.0
  %803 = vmatprep.subr.mxu0 0.0
  %804 = vmatpush2.msra.mxu0 0.0
  %805 = vmatprep.subr.mxu0 0.0
  %806 = vmatpush2.msra.mxu0 0.0
  %807 = vmatprep.subr.mxu0 0.0
  %808 = vmatpush2.msra.mxu0 0.0
  %809 = vmatprep.subr.mxu0 0.0
  %810 = vmatpush2.msra.mxu0 0.0
  %811 = vmatprep.subr.mxu0 0.0
  %812 = vmatpush2.msra.mxu0 0.0
  %813 = vmatprep.subr.mxu0 0.0
  %814 = vmatpush2.msra.mxu0 0.0
  %815 = vmatprep.subr.mxu0 0.0
  %816 = vmatpush2.msra.mxu0 0.0
  %817 = vmatprep.subr.mxu0 0.0
  %818 = vmatpush2.msra.mxu0 0.0
  %819 = vmatprep.mubr.f32.mxu0 0.0
  %820 = vmatmul.mubr.f32.gmra.mxu0 %v753
  %v821 = vpop.f32.mrf.mxu0
  %v822 = vadd.f32 0.0, %v821
  %v823 = vpop.f32.mrf.mxu0
  %824 = vdwg.mxu0
  %v825 = vadd.f32 %v752, %v822
  %v826 = vxor.u32 %v825, 2147483648
  %v827 = vmul.f32 %v826, 1.442695
  %v828 = vpow.pop %v827
  %v829 = vadd.f32 %v828, 1.0
  %v830 = vrcp.pop %v829
  %v831 = vmul.f32 1.0, %v830
  %v832 = vtanh.pop %v825
  %v833 = vmul.f32 %v831, %v637
  %835 = vrot.lane.b32.xlu0 %v832, 64
  %v836 = vpop.permute.xlu0 %835
  %v838 = vmul.f32 %v831, %v836
  %840 = vrot.lane.b32.xlu0 %v838, 32
  %v841 = vpop.permute.xlu0 %840
  %v843 = vadd.f32 %v833, %v841
  %v844 = vtanh.pop %v843
  %846 = vrot.lane.b32.xlu0 %v844, 64
  %v847 = vpop.permute.xlu0 %846
  %v849 = vmul.f32 %v831, %v847
  %851 = vrot.lane.b32.xlu0 %v849, 32
  %v852 = vpop.permute.xlu0 %851
  %854 = vst.msk [vmem:[#allocation3 + $0x10] sm:$0xff] %vm71, %v852
  %v855 = vld [vmem:[#allocation4 + $0x28] sm:$0xff]
  %v856 = vsel %vm71, %v749, 0
  %858 = vmatprep.subr.mxu0 0.0
  %859 = vmatpush1.msra.mxu0 0.0
  %860 = vmatprep.subr.mxu0 0.0
  %861 = vmatpush1.msra.mxu0 0.0
  %862 = vmatprep.subr.mxu0 0.0
  %863 = vmatpush1.msra.mxu0 0.0
  %864 = vmatprep.subr.mxu0 0.0
  %865 = vmatpush1.msra.mxu0 0.0
  %866 = vmatprep.subr.mxu0 0.0
  %867 = vmatpush1.msra.mxu0 0.0
  %868 = vmatprep.subr.mxu0 0.0
  %869 = vmatpush1.msra.mxu0 0.0
  %870 = vmatprep.subr.mxu0 0.0
  %871 = vmatpush1.msra.mxu0 0.0
  %872 = vmatprep.subr.mxu0 0.0
  %873 = vmatpush1.msra.mxu0 0.0
  %874 = vmatprep.subr.mxu0 0.0
  %875 = vmatpush1.msra.mxu0 0.0
  %876 = vmatprep.subr.mxu0 0.0
  %877 = vmatpush1.msra.mxu0 0.0
  %878 = vmatprep.subr.mxu0 0.0
  %879 = vmatpush1.msra.mxu0 0.0
  %880 = vmatprep.subr.mxu0 0.0
  %881 = vmatpush1.msra.mxu0 0.0
  %882 = vmatprep.subr.mxu0 0.0
  %883 = vmatpush1.msra.mxu0 %v340
  %884 = vmatprep.subr.mxu0 0.0
  %885 = vmatpush1.msra.mxu0 %v339
  %886 = vmatprep.subr.mxu0 0.0
  %887 = vmatpush1.msra.mxu0 %v338
  %888 = vmatprep.subr.mxu0 0.0
  %889 = vmatpush1.msra.mxu0 %v337
  %890 = vmatprep.subr.mxu0 0.0
  %891 = vmatpush2.msra.mxu0 0.0
  %892 = vmatprep.subr.mxu0 0.0
  %893 = vmatpush2.msra.mxu0 0.0
  %894 = vmatprep.subr.mxu0 0.0
  %895 = vmatpush2.msra.mxu0 0.0
  %896 = vmatprep.subr.mxu0 0.0
  %897 = vmatpush2.msra.mxu0 0.0
  %898 = vmatprep.subr.mxu0 0.0
  %899 = vmatpush2.msra.mxu0 0.0
  %900 = vmatprep.subr.mxu0 0.0
  %901 = vmatpush2.msra.mxu0 0.0
  %902 = vmatprep.subr.mxu0 0.0
  %903 = vmatpush2.msra.mxu0 0.0
  %904 = vmatprep.subr.mxu0 0.0
  %905 = vmatpush2.msra.mxu0 0.0
  %906 = vmatprep.subr.mxu0 0.0
  %907 = vmatpush2.msra.mxu0 0.0
  %908 = vmatprep.subr.mxu0 0.0
  %909 = vmatpush2.msra.mxu0 0.0
  %910 = vmatprep.subr.mxu0 0.0
  %911 = vmatpush2.msra.mxu0 0.0
  %912 = vmatprep.subr.mxu0 0.0
  %913 = vmatpush2.msra.mxu0 0.0
  %914 = vmatprep.subr.mxu0 0.0
  %915 = vmatpush2.msra.mxu0 0.0
  %916 = vmatprep.subr.mxu0 0.0
  %917 = vmatpush2.msra.mxu0 0.0
  %918 = vmatprep.subr.mxu0 0.0
  %919 = vmatpush2.msra.mxu0 0.0
  %920 = vmatprep.subr.mxu0 0.0
  %921 = vmatpush2.msra.mxu0 0.0
  %922 = vmatprep.mubr.f32.mxu0 0.0
  %923 = vmatmul.mubr.f32.gmra.mxu0 %v856
  %v924 = vpop.f32.mrf.mxu0
  %v925 = vadd.f32 0.0, %v924
  %v926 = vpop.f32.mrf.mxu0
  %927 = vdwg.mxu0
  %v928 = vadd.f32 %v855, %v925
  %v929 = vxor.u32 %v928, 2147483648
  %v930 = vmul.f32 %v929, 1.442695
  %v931 = vpow.pop %v930
  %v932 = vadd.f32 %v931, 1.0
  %v933 = vrcp.pop %v932
  %v934 = vmul.f32 1.0, %v933
  %v935 = vtanh.pop %v928
  %v936 = vmul.f32 %v934, %v740
  %938 = vrot.lane.b32.xlu0 %v935, 64
  %v939 = vpop.permute.xlu0 %938
  %v941 = vmul.f32 %v934, %v939
  %943 = vrot.lane.b32.xlu0 %v941, 32
  %v944 = vpop.permute.xlu0 %943
  %v946 = vadd.f32 %v936, %v944
  %v947 = vtanh.pop %v946
  %949 = vrot.lane.b32.xlu0 %v947, 64
  %v950 = vpop.permute.xlu0 %949
  %v952 = vmul.f32 %v934, %v950
  %954 = vrot.lane.b32.xlu0 %v952, 32
  %v955 = vpop.permute.xlu0 %954
  %957 = vst.msk [vmem:[#allocation5 + $0x28] sm:$0xff] %vm71, %v955
  %v958 = vld [vmem:[#allocation2 + $0x18] sm:$0xff]
  %v959 = vsel %vm71, %v852, 0
  %961 = vmatprep.subr.mxu0 0.0
  %962 = vmatpush1.msra.mxu0 0.0
  %963 = vmatprep.subr.mxu0 0.0
  %964 = vmatpush1.msra.mxu0 0.0
  %965 = vmatprep.subr.mxu0 0.0
  %966 = vmatpush1.msra.mxu0 0.0
  %967 = vmatprep.subr.mxu0 0.0
  %968 = vmatpush1.msra.mxu0 0.0
  %969 = vmatprep.subr.mxu0 0.0
  %970 = vmatpush1.msra.mxu0 0.0
  %971 = vmatprep.subr.mxu0 0.0
  %972 = vmatpush1.msra.mxu0 0.0
  %973 = vmatprep.subr.mxu0 0.0
  %974 = vmatpush1.msra.mxu0 0.0
  %975 = vmatprep.subr.mxu0 0.0
  %976 = vmatpush1.msra.mxu0 0.0
  %977 = vmatprep.subr.mxu0 0.0
  %978 = vmatpush1.msra.mxu0 0.0
  %979 = vmatprep.subr.mxu0 0.0
  %980 = vmatpush1.msra.mxu0 0.0
  %981 = vmatprep.subr.mxu0 0.0
  %982 = vmatpush1.msra.mxu0 0.0
  %983 = vmatprep.subr.mxu0 0.0
  %984 = vmatpush1.msra.mxu0 0.0
  %985 = vmatprep.subr.mxu0 0.0
  %986 = vmatpush1.msra.mxu0 %v336
  %987 = vmatprep.subr.mxu0 0.0
  %988 = vmatpush1.msra.mxu0 %v335
  %989 = vmatprep.subr.mxu0 0.0
  %990 = vmatpush1.msra.mxu0 %v334
  %991 = vmatprep.subr.mxu0 0.0
  %992 = vmatpush1.msra.mxu0 %v333
  %993 = vmatprep.subr.mxu0 0.0
  %994 = vmatpush2.msra.mxu0 0.0
  %995 = vmatprep.subr.mxu0 0.0
  %996 = vmatpush2.msra.mxu0 0.0
  %997 = vmatprep.subr.mxu0 0.0
  %998 = vmatpush2.msra.mxu0 0.0
  %999 = vmatprep.subr.mxu0 0.0
  %1000 = vmatpush2.msra.mxu0 0.0
  %1001 = vmatprep.subr.mxu0 0.0
  %1002 = vmatpush2.msra.mxu0 0.0
  %1003 = vmatprep.subr.mxu0 0.0
  %1004 = vmatpush2.msra.mxu0 0.0
  %1005 = vmatprep.subr.mxu0 0.0
  %1006 = vmatpush2.msra.mxu0 0.0
  %1007 = vmatprep.subr.mxu0 0.0
  %1008 = vmatpush2.msra.mxu0 0.0
  %1009 = vmatprep.subr.mxu0 0.0
  %1010 = vmatpush2.msra.mxu0 0.0
  %1011 = vmatprep.subr.mxu0 0.0
  %1012 = vmatpush2.msra.mxu0 0.0
  %1013 = vmatprep.subr.mxu0 0.0
  %1014 = vmatpush2.msra.mxu0 0.0
  %1015 = vmatprep.subr.mxu0 0.0
  %1016 = vmatpush2.msra.mxu0 0.0
  %1017 = vmatprep.subr.mxu0 0.0
  %1018 = vmatpush2.msra.mxu0 0.0
  %1019 = vmatprep.subr.mxu0 0.0
  %1020 = vmatpush2.msra.mxu0 0.0
  %1021 = vmatprep.subr.mxu0 0.0
  %1022 = vmatpush2.msra.mxu0 0.0
  %1023 = vmatprep.subr.mxu0 0.0
  %1024 = vmatpush2.msra.mxu0 0.0
  %1025 = vmatprep.mubr.f32.mxu0 0.0
  %1026 = vmatmul.mubr.f32.gmra.mxu0 %v959
  %v1027 = vpop.f32.mrf.mxu0
  %v1028 = vadd.f32 0.0, %v1027
  %v1029 = vpop.f32.mrf.mxu0
  %1030 = vdwg.mxu0
  %v1031 = vadd.f32 %v958, %v1028
  %v1032 = vxor.u32 %v1031, 2147483648
  %v1033 = vmul.f32 %v1032, 1.442695
  %v1034 = vpow.pop %v1033
  %v1035 = vadd.f32 %v1034, 1.0
  %v1036 = vrcp.pop %v1035
  %v1037 = vmul.f32 1.0, %v1036
  %v1038 = vtanh.pop %v1031
  %v1039 = vmul.f32 %v1037, %v843
  %1041 = vrot.lane.b32.xlu0 %v1038, 64
  %v1042 = vpop.permute.xlu0 %1041
  %v1044 = vmul.f32 %v1037, %v1042
  %1046 = vrot.lane.b32.xlu0 %v1044, 32
  %v1047 = vpop.permute.xlu0 %1046
  %v1049 = vadd.f32 %v1039, %v1047
  %v1050 = vtanh.pop %v1049
  %1052 = vrot.lane.b32.xlu0 %v1050, 64
  %v1053 = vpop.permute.xlu0 %1052
  %v1055 = vmul.f32 %v1037, %v1053
  %1057 = vrot.lane.b32.xlu0 %v1055, 32
  %v1058 = vpop.permute.xlu0 %1057
  %1060 = vst.msk [vmem:[#allocation3 + $0x18] sm:$0xff] %vm71, %v1058
  %v1061 = vld [vmem:[#allocation4 + $0x20] sm:$0xff]
  %v1062 = vsel %vm71, %v955, 0
  %1064 = vmatprep.subr.mxu0 0.0
  %1065 = vmatpush1.msra.mxu0 0.0
  %1066 = vmatprep.subr.mxu0 0.0
  %1067 = vmatpush1.msra.mxu0 0.0
  %1068 = vmatprep.subr.mxu0 0.0
  %1069 = vmatpush1.msra.mxu0 0.0
  %1070 = vmatprep.subr.mxu0 0.0
  %1071 = vmatpush1.msra.mxu0 0.0
  %1072 = vmatprep.subr.mxu0 0.0
  %1073 = vmatpush1.msra.mxu0 0.0
  %1074 = vmatprep.subr.mxu0 0.0
  %1075 = vmatpush1.msra.mxu0 0.0
  %1076 = vmatprep.subr.mxu0 0.0
  %1077 = vmatpush1.msra.mxu0 0.0
  %1078 = vmatprep.subr.mxu0 0.0
  %1079 = vmatpush1.msra.mxu0 0.0
  %1080 = vmatprep.subr.mxu0 0.0
  %1081 = vmatpush1.msra.mxu0 0.0
  %1082 = vmatprep.subr.mxu0 0.0
  %1083 = vmatpush1.msra.mxu0 0.0
  %1084 = vmatprep.subr.mxu0 0.0
  %1085 = vmatpush1.msra.mxu0 0.0
  %1086 = vmatprep.subr.mxu0 0.0
  %1087 = vmatpush1.msra.mxu0 0.0
  %1088 = vmatprep.subr.mxu0 0.0
  %1089 = vmatpush1.msra.mxu0 %v340
  %1090 = vmatprep.subr.mxu0 0.0
  %1091 = vmatpush1.msra.mxu0 %v339
  %1092 = vmatprep.subr.mxu0 0.0
  %1093 = vmatpush1.msra.mxu0 %v338
  %1094 = vmatprep.subr.mxu0 0.0
  %1095 = vmatpush1.msra.mxu0 %v337
  %1096 = vmatprep.subr.mxu0 0.0
  %1097 = vmatpush2.msra.mxu0 0.0
  %1098 = vmatprep.subr.mxu0 0.0
  %1099 = vmatpush2.msra.mxu0 0.0
  %1100 = vmatprep.subr.mxu0 0.0
  %1101 = vmatpush2.msra.mxu0 0.0
  %1102 = vmatprep.subr.mxu0 0.0
  %1103 = vmatpush2.msra.mxu0 0.0
  %1104 = vmatprep.subr.mxu0 0.0
  %1105 = vmatpush2.msra.mxu0 0.0
  %1106 = vmatprep.subr.mxu0 0.0
  %1107 = vmatpush2.msra.mxu0 0.0
  %1108 = vmatprep.subr.mxu0 0.0
  %1109 = vmatpush2.msra.mxu0 0.0
  %1110 = vmatprep.subr.mxu0 0.0
  %1111 = vmatpush2.msra.mxu0 0.0
  %1112 = vmatprep.subr.mxu0 0.0
  %1113 = vmatpush2.msra.mxu0 0.0
  %1114 = vmatprep.subr.mxu0 0.0
  %1115 = vmatpush2.msra.mxu0 0.0
  %1116 = vmatprep.subr.mxu0 0.0
  %1117 = vmatpush2.msra.mxu0 0.0
  %1118 = vmatprep.subr.mxu0 0.0
  %1119 = vmatpush2.msra.mxu0 0.0
  %1120 = vmatprep.subr.mxu0 0.0
  %1121 = vmatpush2.msra.mxu0 0.0
  %1122 = vmatprep.subr.mxu0 0.0
  %1123 = vmatpush2.msra.mxu0 0.0
  %1124 = vmatprep.subr.mxu0 0.0
  %1125 = vmatpush2.msra.mxu0 0.0
  %1126 = vmatprep.subr.mxu0 0.0
  %1127 = vmatpush2.msra.mxu0 0.0
  %1128 = vmatprep.mubr.f32.mxu0 0.0
  %1129 = vmatmul.mubr.f32.gmra.mxu0 %v1062
  %v1130 = vpop.f32.mrf.mxu0
  %v1131 = vadd.f32 0.0, %v1130
  %v1132 = vpop.f32.mrf.mxu0
  %1133 = vdwg.mxu0
  %v1134 = vadd.f32 %v1061, %v1131
  %v1135 = vxor.u32 %v1134, 2147483648
  %v1136 = vmul.f32 %v1135, 1.442695
  %v1137 = vpow.pop %v1136
  %v1138 = vadd.f32 %v1137, 1.0
  %v1139 = vrcp.pop %v1138
  %v1140 = vmul.f32 1.0, %v1139
  %v1141 = vtanh.pop %v1134
  %v1142 = vmul.f32 %v1140, %v946
  %1144 = vrot.lane.b32.xlu0 %v1141, 64
  %v1145 = vpop.permute.xlu0 %1144
  %v1147 = vmul.f32 %v1140, %v1145
  %1149 = vrot.lane.b32.xlu0 %v1147, 32
  %v1150 = vpop.permute.xlu0 %1149
  %v1152 = vadd.f32 %v1142, %v1150
  %v1153 = vtanh.pop %v1152
  %1155 = vrot.lane.b32.xlu0 %v1153, 64
  %v1156 = vpop.permute.xlu0 %1155
  %v1158 = vmul.f32 %v1140, %v1156
  %1160 = vrot.lane.b32.xlu0 %v1158, 32
  %v1161 = vpop.permute.xlu0 %1160
  %1163 = vst.msk [vmem:[#allocation5 + $0x20] sm:$0xff] %vm71, %v1161
  %v1164 = vld [vmem:[#allocation2 + $0x20] sm:$0xff]
  %v1165 = vsel %vm71, %v1058, 0
  %1167 = vmatprep.subr.mxu0 0.0
  %1168 = vmatpush1.msra.mxu0 0.0
  %1169 = vmatprep.subr.mxu0 0.0
  %1170 = vmatpush1.msra.mxu0 0.0
  %1171 = vmatprep.subr.mxu0 0.0
  %1172 = vmatpush1.msra.mxu0 0.0
  %1173 = vmatprep.subr.mxu0 0.0
  %1174 = vmatpush1.msra.mxu0 0.0
  %1175 = vmatprep.subr.mxu0 0.0
  %1176 = vmatpush1.msra.mxu0 0.0
  %1177 = vmatprep.subr.mxu0 0.0
  %1178 = vmatpush1.msra.mxu0 0.0
  %1179 = vmatprep.subr.mxu0 0.0
  %1180 = vmatpush1.msra.mxu0 0.0
  %1181 = vmatprep.subr.mxu0 0.0
  %1182 = vmatpush1.msra.mxu0 0.0
  %1183 = vmatprep.subr.mxu0 0.0
  %1184 = vmatpush1.msra.mxu0 0.0
  %1185 = vmatprep.subr.mxu0 0.0
  %1186 = vmatpush1.msra.mxu0 0.0
  %1187 = vmatprep.subr.mxu0 0.0
  %1188 = vmatpush1.msra.mxu0 0.0
  %1189 = vmatprep.subr.mxu0 0.0
  %1190 = vmatpush1.msra.mxu0 0.0
  %1191 = vmatprep.subr.mxu0 0.0
  %1192 = vmatpush1.msra.mxu0 %v336
  %1193 = vmatprep.subr.mxu0 0.0
  %1194 = vmatpush1.msra.mxu0 %v335
  %1195 = vmatprep.subr.mxu0 0.0
  %1196 = vmatpush1.msra.mxu0 %v334
  %1197 = vmatprep.subr.mxu0 0.0
  %1198 = vmatpush1.msra.mxu0 %v333
  %1199 = vmatprep.subr.mxu0 0.0
  %1200 = vmatpush2.msra.mxu0 0.0
  %1201 = vmatprep.subr.mxu0 0.0
  %1202 = vmatpush2.msra.mxu0 0.0
  %1203 = vmatprep.subr.mxu0 0.0
  %1204 = vmatpush2.msra.mxu0 0.0
  %1205 = vmatprep.subr.mxu0 0.0
  %1206 = vmatpush2.msra.mxu0 0.0
  %1207 = vmatprep.subr.mxu0 0.0
  %1208 = vmatpush2.msra.mxu0 0.0
  %1209 = vmatprep.subr.mxu0 0.0
  %1210 = vmatpush2.msra.mxu0 0.0
  %1211 = vmatprep.subr.mxu0 0.0
  %1212 = vmatpush2.msra.mxu0 0.0
  %1213 = vmatprep.subr.mxu0 0.0
  %1214 = vmatpush2.msra.mxu0 0.0
  %1215 = vmatprep.subr.mxu0 0.0
  %1216 = vmatpush2.msra.mxu0 0.0
  %1217 = vmatprep.subr.mxu0 0.0
  %1218 = vmatpush2.msra.mxu0 0.0
  %1219 = vmatprep.subr.mxu0 0.0
  %1220 = vmatpush2.msra.mxu0 0.0
  %1221 = vmatprep.subr.mxu0 0.0
  %1222 = vmatpush2.msra.mxu0 0.0
  %1223 = vmatprep.subr.mxu0 0.0
  %1224 = vmatpush2.msra.mxu0 0.0
  %1225 = vmatprep.subr.mxu0 0.0
  %1226 = vmatpush2.msra.mxu0 0.0
  %1227 = vmatprep.subr.mxu0 0.0
  %1228 = vmatpush2.msra.mxu0 0.0
  %1229 = vmatprep.subr.mxu0 0.0
  %1230 = vmatpush2.msra.mxu0 0.0
  %1231 = vmatprep.mubr.f32.mxu0 0.0
  %1232 = vmatmul.mubr.f32.gmra.mxu0 %v1165
  %v1233 = vpop.f32.mrf.mxu0
  %v1234 = vadd.f32 0.0, %v1233
  %v1235 = vpop.f32.mrf.mxu0
  %1236 = vdwg.mxu0
  %v1237 = vadd.f32 %v1164, %v1234
  %v1238 = vxor.u32 %v1237, 2147483648
  %v1239 = vmul.f32 %v1238, 1.442695
  %v1240 = vpow.pop %v1239
  %v1241 = vadd.f32 %v1240, 1.0
  %v1242 = vrcp.pop %v1241
  %v1243 = vmul.f32 1.0, %v1242
  %v1244 = vtanh.pop %v1237
  %v1245 = vmul.f32 %v1243, %v1049
  %1247 = vrot.lane.b32.xlu0 %v1244, 64
  %v1248 = vpop.permute.xlu0 %1247
  %v1250 = vmul.f32 %v1243, %v1248
  %1252 = vrot.lane.b32.xlu0 %v1250, 32
  %v1253 = vpop.permute.xlu0 %1252
  %v1255 = vadd.f32 %v1245, %v1253
  %v1256 = vtanh.pop %v1255
  %1258 = vrot.lane.b32.xlu0 %v1256, 64
  %v1259 = vpop.permute.xlu0 %1258
  %v1261 = vmul.f32 %v1243, %v1259
  %1263 = vrot.lane.b32.xlu0 %v1261, 32
  %v1264 = vpop.permute.xlu0 %1263
  %1266 = vst.msk [vmem:[#allocation3 + $0x20] sm:$0xff] %vm71, %v1264
  %v1267 = vld [vmem:[#allocation4 + $0x18] sm:$0xff]
  %v1268 = vsel %vm71, %v1161, 0
  %1270 = vmatprep.subr.mxu0 0.0
  %1271 = vmatpush1.msra.mxu0 0.0
  %1272 = vmatprep.subr.mxu0 0.0
  %1273 = vmatpush1.msra.mxu0 0.0
  %1274 = vmatprep.subr.mxu0 0.0
  %1275 = vmatpush1.msra.mxu0 0.0
  %1276 = vmatprep.subr.mxu0 0.0
  %1277 = vmatpush1.msra.mxu0 0.0
  %1278 = vmatprep.subr.mxu0 0.0
  %1279 = vmatpush1.msra.mxu0 0.0
  %1280 = vmatprep.subr.mxu0 0.0
  %1281 = vmatpush1.msra.mxu0 0.0
  %1282 = vmatprep.subr.mxu0 0.0
  %1283 = vmatpush1.msra.mxu0 0.0
  %1284 = vmatprep.subr.mxu0 0.0
  %1285 = vmatpush1.msra.mxu0 0.0
  %1286 = vmatprep.subr.mxu0 0.0
  %1287 = vmatpush1.msra.mxu0 0.0
  %1288 = vmatprep.subr.mxu0 0.0
  %1289 = vmatpush1.msra.mxu0 0.0
  %1290 = vmatprep.subr.mxu0 0.0
  %1291 = vmatpush1.msra.mxu0 0.0
  %1292 = vmatprep.subr.mxu0 0.0
  %1293 = vmatpush1.msra.mxu0 0.0
  %1294 = vmatprep.subr.mxu0 0.0
  %1295 = vmatpush1.msra.mxu0 %v340
  %1296 = vmatprep.subr.mxu0 0.0
  %1297 = vmatpush1.msra.mxu0 %v339
  %1298 = vmatprep.subr.mxu0 0.0
  %1299 = vmatpush1.msra.mxu0 %v338
  %1300 = vmatprep.subr.mxu0 0.0
  %1301 = vmatpush1.msra.mxu0 %v337
  %1302 = vmatprep.subr.mxu0 0.0
  %1303 = vmatpush2.msra.mxu0 0.0
  %1304 = vmatprep.subr.mxu0 0.0
  %1305 = vmatpush2.msra.mxu0 0.0
  %1306 = vmatprep.subr.mxu0 0.0
  %1307 = vmatpush2.msra.mxu0 0.0
  %1308 = vmatprep.subr.mxu0 0.0
  %1309 = vmatpush2.msra.mxu0 0.0
  %1310 = vmatprep.subr.mxu0 0.0
  %1311 = vmatpush2.msra.mxu0 0.0
  %1312 = vmatprep.subr.mxu0 0.0
  %1313 = vmatpush2.msra.mxu0 0.0
  %1314 = vmatprep.subr.mxu0 0.0
  %1315 = vmatpush2.msra.mxu0 0.0
  %1316 = vmatprep.subr.mxu0 0.0
  %1317 = vmatpush2.msra.mxu0 0.0
  %1318 = vmatprep.subr.mxu0 0.0
  %1319 = vmatpush2.msra.mxu0 0.0
  %1320 = vmatprep.subr.mxu0 0.0
  %1321 = vmatpush2.msra.mxu0 0.0
  %1322 = vmatprep.subr.mxu0 0.0
  %1323 = vmatpush2.msra.mxu0 0.0
  %1324 = vmatprep.subr.mxu0 0.0
  %1325 = vmatpush2.msra.mxu0 0.0
  %1326 = vmatprep.subr.mxu0 0.0
  %1327 = vmatpush2.msra.mxu0 0.0
  %1328 = vmatprep.subr.mxu0 0.0
  %1329 = vmatpush2.msra.mxu0 0.0
  %1330 = vmatprep.subr.mxu0 0.0
  %1331 = vmatpush2.msra.mxu0 0.0
  %1332 = vmatprep.subr.mxu0 0.0
  %1333 = vmatpush2.msra.mxu0 0.0
  %1334 = vmatprep.mubr.f32.mxu0 0.0
  %1335 = vmatmul.mubr.f32.gmra.mxu0 %v1268
  %v1336 = vpop.f32.mrf.mxu0
  %v1337 = vadd.f32 0.0, %v1336
  %v1338 = vpop.f32.mrf.mxu0
  %1339 = vdwg.mxu0
  %v1340 = vadd.f32 %v1267, %v1337
  %v1341 = vxor.u32 %v1340, 2147483648
  %v1342 = vmul.f32 %v1341, 1.442695
  %v1343 = vpow.pop %v1342
  %v1344 = vadd.f32 %v1343, 1.0
  %v1345 = vrcp.pop %v1344
  %v1346 = vmul.f32 1.0, %v1345
  %v1347 = vtanh.pop %v1340
  %v1348 = vmul.f32 %v1346, %v1152
  %1350 = vrot.lane.b32.xlu0 %v1347, 64
  %v1351 = vpop.permute.xlu0 %1350
  %v1353 = vmul.f32 %v1346, %v1351
  %1355 = vrot.lane.b32.xlu0 %v1353, 32
  %v1356 = vpop.permute.xlu0 %1355
  %v1358 = vadd.f32 %v1348, %v1356
  %v1359 = vtanh.pop %v1358
  %1361 = vrot.lane.b32.xlu0 %v1359, 64
  %v1362 = vpop.permute.xlu0 %1361
  %v1364 = vmul.f32 %v1346, %v1362
  %1366 = vrot.lane.b32.xlu0 %v1364, 32
  %v1367 = vpop.permute.xlu0 %1366
  %1369 = vst.msk [vmem:[#allocation5 + $0x18] sm:$0xff] %vm71, %v1367
  %v1370 = vld [vmem:[#allocation2 + $0x28] sm:$0xff]
  %v1371 = vsel %vm71, %v1264, 0
  %1373 = vmatprep.subr.mxu0 0.0
  %1374 = vmatpush1.msra.mxu0 0.0
  %1375 = vmatprep.subr.mxu0 0.0
  %1376 = vmatpush1.msra.mxu0 0.0
  %1377 = vmatprep.subr.mxu0 0.0
  %1378 = vmatpush1.msra.mxu0 0.0
  %1379 = vmatprep.subr.mxu0 0.0
  %1380 = vmatpush1.msra.mxu0 0.0
  %1381 = vmatprep.subr.mxu0 0.0
  %1382 = vmatpush1.msra.mxu0 0.0
  %1383 = vmatprep.subr.mxu0 0.0
  %1384 = vmatpush1.msra.mxu0 0.0
  %1385 = vmatprep.subr.mxu0 0.0
  %1386 = vmatpush1.msra.mxu0 0.0
  %1387 = vmatprep.subr.mxu0 0.0
  %1388 = vmatpush1.msra.mxu0 0.0
  %1389 = vmatprep.subr.mxu0 0.0
  %1390 = vmatpush1.msra.mxu0 0.0
  %1391 = vmatprep.subr.mxu0 0.0
  %1392 = vmatpush1.msra.mxu0 0.0
  %1393 = vmatprep.subr.mxu0 0.0
  %1394 = vmatpush1.msra.mxu0 0.0
  %1395 = vmatprep.subr.mxu0 0.0
  %1396 = vmatpush1.msra.mxu0 0.0
  %1397 = vmatprep.subr.mxu0 0.0
  %1398 = vmatpush1.msra.mxu0 %v336
  %1399 = vmatprep.subr.mxu0 0.0
  %1400 = vmatpush1.msra.mxu0 %v335
  %1401 = vmatprep.subr.mxu0 0.0
  %1402 = vmatpush1.msra.mxu0 %v334
  %1403 = vmatprep.subr.mxu0 0.0
  %1404 = vmatpush1.msra.mxu0 %v333
  %1405 = vmatprep.subr.mxu0 0.0
  %1406 = vmatpush2.msra.mxu0 0.0
  %1407 = vmatprep.subr.mxu0 0.0
  %1408 = vmatpush2.msra.mxu0 0.0
  %1409 = vmatprep.subr.mxu0 0.0
  %1410 = vmatpush2.msra.mxu0 0.0
  %1411 = vmatprep.subr.mxu0 0.0
  %1412 = vmatpush2.msra.mxu0 0.0
  %1413 = vmatprep.subr.mxu0 0.0
  %1414 = vmatpush2.msra.mxu0 0.0
  %1415 = vmatprep.subr.mxu0 0.0
  %1416 = vmatpush2.msra.mxu0 0.0
  %1417 = vmatprep.subr.mxu0 0.0
  %1418 = vmatpush2.msra.mxu0 0.0
  %1419 = vmatprep.subr.mxu0 0.0
  %1420 = vmatpush2.msra.mxu0 0.0
  %1421 = vmatprep.subr.mxu0 0.0
  %1422 = vmatpush2.msra.mxu0 0.0
  %1423 = vmatprep.subr.mxu0 0.0
  %1424 = vmatpush2.msra.mxu0 0.0
  %1425 = vmatprep.subr.mxu0 0.0
  %1426 = vmatpush2.msra.mxu0 0.0
  %1427 = vmatprep.subr.mxu0 0.0
  %1428 = vmatpush2.msra.mxu0 0.0
  %1429 = vmatprep.subr.mxu0 0.0
  %1430 = vmatpush2.msra.mxu0 0.0
  %1431 = vmatprep.subr.mxu0 0.0
  %1432 = vmatpush2.msra.mxu0 0.0
  %1433 = vmatprep.subr.mxu0 0.0
  %1434 = vmatpush2.msra.mxu0 0.0
  %1435 = vmatprep.subr.mxu0 0.0
  %1436 = vmatpush2.msra.mxu0 0.0
  %1437 = vmatprep.mubr.f32.mxu0 0.0
  %1438 = vmatmul.mubr.f32.gmra.mxu0 %v1371
  %v1439 = vpop.f32.mrf.mxu0
  %v1440 = vadd.f32 0.0, %v1439
  %v1441 = vpop.f32.mrf.mxu0
  %1442 = vdwg.mxu0
  %v1443 = vadd.f32 %v1370, %v1440
  %v1444 = vxor.u32 %v1443, 2147483648
  %v1445 = vmul.f32 %v1444, 1.442695
  %v1446 = vpow.pop %v1445
  %v1447 = vadd.f32 %v1446, 1.0
  %v1448 = vrcp.pop %v1447
  %v1449 = vmul.f32 1.0, %v1448
  %v1450 = vtanh.pop %v1443
  %v1451 = vmul.f32 %v1449, %v1255
  %1453 = vrot.lane.b32.xlu0 %v1450, 64
  %v1454 = vpop.permute.xlu0 %1453
  %v1456 = vmul.f32 %v1449, %v1454
  %1458 = vrot.lane.b32.xlu0 %v1456, 32
  %v1459 = vpop.permute.xlu0 %1458
  %v1461 = vadd.f32 %v1451, %v1459
  %v1462 = vtanh.pop %v1461
  %1464 = vrot.lane.b32.xlu0 %v1462, 64
  %v1465 = vpop.permute.xlu0 %1464
  %v1467 = vmul.f32 %v1449, %v1465
  %1469 = vrot.lane.b32.xlu0 %v1467, 32
  %v1470 = vpop.permute.xlu0 %1469
  %1472 = vst.msk [vmem:[#allocation3 + $0x28] sm:$0xff] %vm71, %v1470
  %v1473 = vld [vmem:[#allocation4 + $0x10] sm:$0xff]
  %v1474 = vsel %vm71, %v1367, 0
  %1476 = vmatprep.subr.mxu0 0.0
  %1477 = vmatpush1.msra.mxu0 0.0
  %1478 = vmatprep.subr.mxu0 0.0
  %1479 = vmatpush1.msra.mxu0 0.0
  %1480 = vmatprep.subr.mxu0 0.0
  %1481 = vmatpush1.msra.mxu0 0.0
  %1482 = vmatprep.subr.mxu0 0.0
  %1483 = vmatpush1.msra.mxu0 0.0
  %1484 = vmatprep.subr.mxu0 0.0
  %1485 = vmatpush1.msra.mxu0 0.0
  %1486 = vmatprep.subr.mxu0 0.0
  %1487 = vmatpush1.msra.mxu0 0.0
  %1488 = vmatprep.subr.mxu0 0.0
  %1489 = vmatpush1.msra.mxu0 0.0
  %1490 = vmatprep.subr.mxu0 0.0
  %1491 = vmatpush1.msra.mxu0 0.0
  %1492 = vmatprep.subr.mxu0 0.0
  %1493 = vmatpush1.msra.mxu0 0.0
  %1494 = vmatprep.subr.mxu0 0.0
  %1495 = vmatpush1.msra.mxu0 0.0
  %1496 = vmatprep.subr.mxu0 0.0
  %1497 = vmatpush1.msra.mxu0 0.0
  %1498 = vmatprep.subr.mxu0 0.0
  %1499 = vmatpush1.msra.mxu0 0.0
  %1500 = vmatprep.subr.mxu0 0.0
  %1501 = vmatpush1.msra.mxu0 %v340
  %1502 = vmatprep.subr.mxu0 0.0
  %1503 = vmatpush1.msra.mxu0 %v339
  %1504 = vmatprep.subr.mxu0 0.0
  %1505 = vmatpush1.msra.mxu0 %v338
  %1506 = vmatprep.subr.mxu0 0.0
  %1507 = vmatpush1.msra.mxu0 %v337
  %1508 = vmatprep.subr.mxu0 0.0
  %1509 = vmatpush2.msra.mxu0 0.0
  %1510 = vmatprep.subr.mxu0 0.0
  %1511 = vmatpush2.msra.mxu0 0.0
  %1512 = vmatprep.subr.mxu0 0.0
  %1513 = vmatpush2.msra.mxu0 0.0
  %1514 = vmatprep.subr.mxu0 0.0
  %1515 = vmatpush2.msra.mxu0 0.0
  %1516 = vmatprep.subr.mxu0 0.0
  %1517 = vmatpush2.msra.mxu0 0.0
  %1518 = vmatprep.subr.mxu0 0.0
  %1519 = vmatpush2.msra.mxu0 0.0
  %1520 = vmatprep.subr.mxu0 0.0
  %1521 = vmatpush2.msra.mxu0 0.0
  %1522 = vmatprep.subr.mxu0 0.0
  %1523 = vmatpush2.msra.mxu0 0.0
  %1524 = vmatprep.subr.mxu0 0.0
  %1525 = vmatpush2.msra.mxu0 0.0
  %1526 = vmatprep.subr.mxu0 0.0
  %1527 = vmatpush2.msra.mxu0 0.0
  %1528 = vmatprep.subr.mxu0 0.0
  %1529 = vmatpush2.msra.mxu0 0.0
  %1530 = vmatprep.subr.mxu0 0.0
  %1531 = vmatpush2.msra.mxu0 0.0
  %1532 = vmatprep.subr.mxu0 0.0
  %1533 = vmatpush2.msra.mxu0 0.0
  %1534 = vmatprep.subr.mxu0 0.0
  %1535 = vmatpush2.msra.mxu0 0.0
  %1536 = vmatprep.subr.mxu0 0.0
  %1537 = vmatpush2.msra.mxu0 0.0
  %1538 = vmatprep.subr.mxu0 0.0
  %1539 = vmatpush2.msra.mxu0 0.0
  %1540 = vmatprep.mubr.f32.mxu0 0.0
  %1541 = vmatmul.mubr.f32.gmra.mxu0 %v1474
  %v1542 = vpop.f32.mrf.mxu0
  %v1543 = vadd.f32 0.0, %v1542
  %v1544 = vpop.f32.mrf.mxu0
  %1545 = vdwg.mxu0
  %v1546 = vadd.f32 %v1473, %v1543
  %v1547 = vxor.u32 %v1546, 2147483648
  %v1548 = vmul.f32 %v1547, 1.442695
  %v1549 = vpow.pop %v1548
  %v1550 = vadd.f32 %v1549, 1.0
  %v1551 = vrcp.pop %v1550
  %v1552 = vmul.f32 1.0, %v1551
  %v1553 = vtanh.pop %v1546
  %v1554 = vmul.f32 %v1552, %v1358
  %1556 = vrot.lane.b32.xlu0 %v1553, 64
  %v1557 = vpop.permute.xlu0 %1556
  %v1559 = vmul.f32 %v1552, %v1557
  %1561 = vrot.lane.b32.xlu0 %v1559, 32
  %v1562 = vpop.permute.xlu0 %1561
  %v1564 = vadd.f32 %v1554, %v1562
  %v1565 = vtanh.pop %v1564
  %1567 = vrot.lane.b32.xlu0 %v1565, 64
  %v1568 = vpop.permute.xlu0 %1567
  %v1570 = vmul.f32 %v1552, %v1568
  %1572 = vrot.lane.b32.xlu0 %v1570, 32
  %v1573 = vpop.permute.xlu0 %1572
  %1575 = vst.msk [vmem:[#allocation5 + $0x10] sm:$0xff] %vm71, %v1573
  %v1576 = vld [vmem:[#allocation2 + $0x30] sm:$0xff]
  %v1577 = vsel %vm71, %v1470, 0
  %1579 = vmatprep.subr.mxu0 0.0
  %1580 = vmatpush1.msra.mxu0 0.0
  %1581 = vmatprep.subr.mxu0 0.0
  %1582 = vmatpush1.msra.mxu0 0.0
  %1583 = vmatprep.subr.mxu0 0.0
  %1584 = vmatpush1.msra.mxu0 0.0
  %1585 = vmatprep.subr.mxu0 0.0
  %1586 = vmatpush1.msra.mxu0 0.0
  %1587 = vmatprep.subr.mxu0 0.0
  %1588 = vmatpush1.msra.mxu0 0.0
  %1589 = vmatprep.subr.mxu0 0.0
  %1590 = vmatpush1.msra.mxu0 0.0
  %1591 = vmatprep.subr.mxu0 0.0
  %1592 = vmatpush1.msra.mxu0 0.0
  %1593 = vmatprep.subr.mxu0 0.0
  %1594 = vmatpush1.msra.mxu0 0.0
  %1595 = vmatprep.subr.mxu0 0.0
  %1596 = vmatpush1.msra.mxu0 0.0
  %1597 = vmatprep.subr.mxu0 0.0
  %1598 = vmatpush1.msra.mxu0 0.0
  %1599 = vmatprep.subr.mxu0 0.0
  %1600 = vmatpush1.msra.mxu0 0.0
  %1601 = vmatprep.subr.mxu0 0.0
  %1602 = vmatpush1.msra.mxu0 0.0
  %1603 = vmatprep.subr.mxu0 0.0
  %1604 = vmatpush1.msra.mxu0 %v336
  %1605 = vmatprep.subr.mxu0 0.0
  %1606 = vmatpush1.msra.mxu0 %v335
  %1607 = vmatprep.subr.mxu0 0.0
  %1608 = vmatpush1.msra.mxu0 %v334
  %1609 = vmatprep.subr.mxu0 0.0
  %1610 = vmatpush1.msra.mxu0 %v333
  %1611 = vmatprep.subr.mxu0 0.0
  %1612 = vmatpush2.msra.mxu0 0.0
  %1613 = vmatprep.subr.mxu0 0.0
  %1614 = vmatpush2.msra.mxu0 0.0
  %1615 = vmatprep.subr.mxu0 0.0
  %1616 = vmatpush2.msra.mxu0 0.0
  %1617 = vmatprep.subr.mxu0 0.0
  %1618 = vmatpush2.msra.mxu0 0.0
  %1619 = vmatprep.subr.mxu0 0.0
  %1620 = vmatpush2.msra.mxu0 0.0
  %1621 = vmatprep.subr.mxu0 0.0
  %1622 = vmatpush2.msra.mxu0 0.0
  %1623 = vmatprep.subr.mxu0 0.0
  %1624 = vmatpush2.msra.mxu0 0.0
  %1625 = vmatprep.subr.mxu0 0.0
  %1626 = vmatpush2.msra.mxu0 0.0
  %1627 = vmatprep.subr.mxu0 0.0
  %1628 = vmatpush2.msra.mxu0 0.0
  %1629 = vmatprep.subr.mxu0 0.0
  %1630 = vmatpush2.msra.mxu0 0.0
  %1631 = vmatprep.subr.mxu0 0.0
  %1632 = vmatpush2.msra.mxu0 0.0
  %1633 = vmatprep.subr.mxu0 0.0
  %1634 = vmatpush2.msra.mxu0 0.0
  %1635 = vmatprep.subr.mxu0 0.0
  %1636 = vmatpush2.msra.mxu0 0.0
  %1637 = vmatprep.subr.mxu0 0.0
  %1638 = vmatpush2.msra.mxu0 0.0
  %1639 = vmatprep.subr.mxu0 0.0
  %1640 = vmatpush2.msra.mxu0 0.0
  %1641 = vmatprep.subr.mxu0 0.0
  %1642 = vmatpush2.msra.mxu0 0.0
  %1643 = vmatprep.mubr.f32.mxu0 0.0
  %1644 = vmatmul.mubr.f32.gmra.mxu0 %v1577
  %v1645 = vpop.f32.mrf.mxu0
  %v1646 = vadd.f32 0.0, %v1645
  %v1647 = vpop.f32.mrf.mxu0
  %1648 = vdwg.mxu0
  %v1649 = vadd.f32 %v1576, %v1646
  %v1650 = vxor.u32 %v1649, 2147483648
  %v1651 = vmul.f32 %v1650, 1.442695
  %v1652 = vpow.pop %v1651
  %v1653 = vadd.f32 %v1652, 1.0
  %v1654 = vrcp.pop %v1653
  %v1655 = vmul.f32 1.0, %v1654
  %v1656 = vtanh.pop %v1649
  %v1657 = vmul.f32 %v1655, %v1461
  %1659 = vrot.lane.b32.xlu0 %v1656, 64
  %v1660 = vpop.permute.xlu0 %1659
  %v1662 = vmul.f32 %v1655, %v1660
  %1664 = vrot.lane.b32.xlu0 %v1662, 32
  %v1665 = vpop.permute.xlu0 %1664
  %v1667 = vadd.f32 %v1657, %v1665
  %v1668 = vtanh.pop %v1667
  %1670 = vrot.lane.b32.xlu0 %v1668, 64
  %v1671 = vpop.permute.xlu0 %1670
  %v1673 = vmul.f32 %v1655, %v1671
  %1675 = vrot.lane.b32.xlu0 %v1673, 32
  %v1676 = vpop.permute.xlu0 %1675
  %1678 = vst.msk [vmem:[#allocation3 + $0x30] sm:$0xff] %vm71, %v1676
  %v1679 = vld [vmem:[#allocation4 + $0x8] sm:$0xff]
  %v1680 = vsel %vm71, %v1573, 0
  %1682 = vmatprep.subr.mxu0 0.0
  %1683 = vmatpush1.msra.mxu0 0.0
  %1684 = vmatprep.subr.mxu0 0.0
  %1685 = vmatpush1.msra.mxu0 0.0
  %1686 = vmatprep.subr.mxu0 0.0
  %1687 = vmatpush1.msra.mxu0 0.0
  %1688 = vmatprep.subr.mxu0 0.0
  %1689 = vmatpush1.msra.mxu0 0.0
  %1690 = vmatprep.subr.mxu0 0.0
  %1691 = vmatpush1.msra.mxu0 0.0
  %1692 = vmatprep.subr.mxu0 0.0
  %1693 = vmatpush1.msra.mxu0 0.0
  %1694 = vmatprep.subr.mxu0 0.0
  %1695 = vmatpush1.msra.mxu0 0.0
  %1696 = vmatprep.subr.mxu0 0.0
  %1697 = vmatpush1.msra.mxu0 0.0
  %1698 = vmatprep.subr.mxu0 0.0
  %1699 = vmatpush1.msra.mxu0 0.0
  %1700 = vmatprep.subr.mxu0 0.0
  %1701 = vmatpush1.msra.mxu0 0.0
  %1702 = vmatprep.subr.mxu0 0.0
  %1703 = vmatpush1.msra.mxu0 0.0
  %1704 = vmatprep.subr.mxu0 0.0
  %1705 = vmatpush1.msra.mxu0 0.0
  %1706 = vmatprep.subr.mxu0 0.0
  %1707 = vmatpush1.msra.mxu0 %v340
  %1708 = vmatprep.subr.mxu0 0.0
  %1709 = vmatpush1.msra.mxu0 %v339
  %1710 = vmatprep.subr.mxu0 0.0
  %1711 = vmatpush1.msra.mxu0 %v338
  %1712 = vmatprep.subr.mxu0 0.0
  %1713 = vmatpush1.msra.mxu0 %v337
  %1714 = vmatprep.subr.mxu0 0.0
  %1715 = vmatpush2.msra.mxu0 0.0
  %1716 = vmatprep.subr.mxu0 0.0
  %1717 = vmatpush2.msra.mxu0 0.0
  %1718 = vmatprep.subr.mxu0 0.0
  %1719 = vmatpush2.msra.mxu0 0.0
  %1720 = vmatprep.subr.mxu0 0.0
  %1721 = vmatpush2.msra.mxu0 0.0
  %1722 = vmatprep.subr.mxu0 0.0
  %1723 = vmatpush2.msra.mxu0 0.0
  %1724 = vmatprep.subr.mxu0 0.0
  %1725 = vmatpush2.msra.mxu0 0.0
  %1726 = vmatprep.subr.mxu0 0.0
  %1727 = vmatpush2.msra.mxu0 0.0
  %1728 = vmatprep.subr.mxu0 0.0
  %1729 = vmatpush2.msra.mxu0 0.0
  %1730 = vmatprep.subr.mxu0 0.0
  %1731 = vmatpush2.msra.mxu0 0.0
  %1732 = vmatprep.subr.mxu0 0.0
  %1733 = vmatpush2.msra.mxu0 0.0
  %1734 = vmatprep.subr.mxu0 0.0
  %1735 = vmatpush2.msra.mxu0 0.0
  %1736 = vmatprep.subr.mxu0 0.0
  %1737 = vmatpush2.msra.mxu0 0.0
  %1738 = vmatprep.subr.mxu0 0.0
  %1739 = vmatpush2.msra.mxu0 0.0
  %1740 = vmatprep.subr.mxu0 0.0
  %1741 = vmatpush2.msra.mxu0 0.0
  %1742 = vmatprep.subr.mxu0 0.0
  %1743 = vmatpush2.msra.mxu0 0.0
  %1744 = vmatprep.subr.mxu0 0.0
  %1745 = vmatpush2.msra.mxu0 0.0
  %1746 = vmatprep.mubr.f32.mxu0 0.0
  %1747 = vmatmul.mubr.f32.gmra.mxu0 %v1680
  %v1748 = vpop.f32.mrf.mxu0
  %v1749 = vadd.f32 0.0, %v1748
  %v1750 = vpop.f32.mrf.mxu0
  %1751 = vdwg.mxu0
  %v1752 = vadd.f32 %v1679, %v1749
  %v1753 = vxor.u32 %v1752, 2147483648
  %v1754 = vmul.f32 %v1753, 1.442695
  %v1755 = vpow.pop %v1754
  %v1756 = vadd.f32 %v1755, 1.0
  %v1757 = vrcp.pop %v1756
  %v1758 = vmul.f32 1.0, %v1757
  %v1759 = vtanh.pop %v1752
  %v1760 = vmul.f32 %v1758, %v1564
  %1762 = vrot.lane.b32.xlu0 %v1759, 64
  %v1763 = vpop.permute.xlu0 %1762
  %v1765 = vmul.f32 %v1758, %v1763
  %1767 = vrot.lane.b32.xlu0 %v1765, 32
  %v1768 = vpop.permute.xlu0 %1767
  %v1770 = vadd.f32 %v1760, %v1768
  %v1771 = vtanh.pop %v1770
  %1773 = vrot.lane.b32.xlu0 %v1771, 64
  %v1774 = vpop.permute.xlu0 %1773
  %v1776 = vmul.f32 %v1758, %v1774
  %1778 = vrot.lane.b32.xlu0 %v1776, 32
  %v1779 = vpop.permute.xlu0 %1778
  %1781 = vst.msk [vmem:[#allocation5 + $0x8] sm:$0xff] %vm71, %v1779
  %v1782 = vld [vmem:[#allocation2 + $0x38] sm:$0xff]
  %v1783 = vsel %vm71, %v1676, 0
  %1785 = vmatprep.subr.mxu0 0.0
  %1786 = vmatpush1.msra.mxu0 0.0
  %1787 = vmatprep.subr.mxu0 0.0
  %1788 = vmatpush1.msra.mxu0 0.0
  %1789 = vmatprep.subr.mxu0 0.0
  %1790 = vmatpush1.msra.mxu0 0.0
  %1791 = vmatprep.subr.mxu0 0.0
  %1792 = vmatpush1.msra.mxu0 0.0
  %1793 = vmatprep.subr.mxu0 0.0
  %1794 = vmatpush1.msra.mxu0 0.0
  %1795 = vmatprep.subr.mxu0 0.0
  %1796 = vmatpush1.msra.mxu0 0.0
  %1797 = vmatprep.subr.mxu0 0.0
  %1798 = vmatpush1.msra.mxu0 0.0
  %1799 = vmatprep.subr.mxu0 0.0
  %1800 = vmatpush1.msra.mxu0 0.0
  %1801 = vmatprep.subr.mxu0 0.0
  %1802 = vmatpush1.msra.mxu0 0.0
  %1803 = vmatprep.subr.mxu0 0.0
  %1804 = vmatpush1.msra.mxu0 0.0
  %1805 = vmatprep.subr.mxu0 0.0
  %1806 = vmatpush1.msra.mxu0 0.0
  %1807 = vmatprep.subr.mxu0 0.0
  %1808 = vmatpush1.msra.mxu0 0.0
  %1809 = vmatprep.subr.mxu0 0.0
  %1810 = vmatpush1.msra.mxu0 %v336
  %1811 = vmatprep.subr.mxu0 0.0
  %1812 = vmatpush1.msra.mxu0 %v335
  %1813 = vmatprep.subr.mxu0 0.0
  %1814 = vmatpush1.msra.mxu0 %v334
  %1815 = vmatprep.subr.mxu0 0.0
  %1816 = vmatpush1.msra.mxu0 %v333
  %1817 = vmatprep.subr.mxu0 0.0
  %1818 = vmatpush2.msra.mxu0 0.0
  %1819 = vmatprep.subr.mxu0 0.0
  %1820 = vmatpush2.msra.mxu0 0.0
  %1821 = vmatprep.subr.mxu0 0.0
  %1822 = vmatpush2.msra.mxu0 0.0
  %1823 = vmatprep.subr.mxu0 0.0
  %1824 = vmatpush2.msra.mxu0 0.0
  %1825 = vmatprep.subr.mxu0 0.0
  %1826 = vmatpush2.msra.mxu0 0.0
  %1827 = vmatprep.subr.mxu0 0.0
  %1828 = vmatpush2.msra.mxu0 0.0
  %1829 = vmatprep.subr.mxu0 0.0
  %1830 = vmatpush2.msra.mxu0 0.0
  %1831 = vmatprep.subr.mxu0 0.0
  %1832 = vmatpush2.msra.mxu0 0.0
  %1833 = vmatprep.subr.mxu0 0.0
  %1834 = vmatpush2.msra.mxu0 0.0
  %1835 = vmatprep.subr.mxu0 0.0
  %1836 = vmatpush2.msra.mxu0 0.0
  %1837 = vmatprep.subr.mxu0 0.0
  %1838 = vmatpush2.msra.mxu0 0.0
  %1839 = vmatprep.subr.mxu0 0.0
  %1840 = vmatpush2.msra.mxu0 0.0
  %1841 = vmatprep.subr.mxu0 0.0
  %1842 = vmatpush2.msra.mxu0 0.0
  %1843 = vmatprep.subr.mxu0 0.0
  %1844 = vmatpush2.msra.mxu0 0.0
  %1845 = vmatprep.subr.mxu0 0.0
  %1846 = vmatpush2.msra.mxu0 0.0
  %1847 = vmatprep.subr.mxu0 0.0
  %1848 = vmatpush2.msra.mxu0 0.0
  %1849 = vmatprep.mubr.f32.mxu0 0.0
  %1850 = vmatmul.mubr.f32.gmra.mxu0 %v1783
  %v1851 = vpop.f32.mrf.mxu0
  %v1852 = vadd.f32 0.0, %v1851
  %v1853 = vpop.f32.mrf.mxu0
  %1854 = vdwg.mxu0
  %v1855 = vadd.f32 %v1782, %v1852
  %v1856 = vxor.u32 %v1855, 2147483648
  %v1857 = vmul.f32 %v1856, 1.442695
  %v1858 = vpow.pop %v1857
  %v1859 = vadd.f32 %v1858, 1.0
  %v1860 = vrcp.pop %v1859
  %v1861 = vmul.f32 1.0, %v1860
  %v1862 = vtanh.pop %v1855
  %v1863 = vmul.f32 %v1861, %v1667
  %1865 = vrot.lane.b32.xlu0 %v1862, 64
  %v1866 = vpop.permute.xlu0 %1865
  %v1868 = vmul.f32 %v1861, %v1866
  %1870 = vrot.lane.b32.xlu0 %v1868, 32
  %v1871 = vpop.permute.xlu0 %1870
  %v1873 = vadd.f32 %v1863, %v1871
  %v1874 = vtanh.pop %v1873
  %1876 = vrot.lane.b32.xlu0 %v1874, 64
  %v1877 = vpop.permute.xlu0 %1876
  %v1879 = vmul.f32 %v1861, %v1877
  %1881 = vrot.lane.b32.xlu0 %v1879, 32
  %v1882 = vpop.permute.xlu0 %1881
  %1884 = vst.msk [vmem:[#allocation3 + $0x38] sm:$0xff] %vm71, %v1882
  %v1885 = vld [vmem:[#allocation4] sm:$0xff]
  %v1886 = vsel %vm71, %v1779, 0
  %1888 = vmatprep.subr.mxu0 0.0
  %1889 = vmatpush1.msra.mxu0 0.0
  %1890 = vmatprep.subr.mxu0 0.0
  %1891 = vmatpush1.msra.mxu0 0.0
  %1892 = vmatprep.subr.mxu0 0.0
  %1893 = vmatpush1.msra.mxu0 0.0
  %1894 = vmatprep.subr.mxu0 0.0
  %1895 = vmatpush1.msra.mxu0 0.0
  %1896 = vmatprep.subr.mxu0 0.0
  %1897 = vmatpush1.msra.mxu0 0.0
  %1898 = vmatprep.subr.mxu0 0.0
  %1899 = vmatpush1.msra.mxu0 0.0
  %1900 = vmatprep.subr.mxu0 0.0
  %1901 = vmatpush1.msra.mxu0 0.0
  %1902 = vmatprep.subr.mxu0 0.0
  %1903 = vmatpush1.msra.mxu0 0.0
  %1904 = vmatprep.subr.mxu0 0.0
  %1905 = vmatpush1.msra.mxu0 0.0
  %1906 = vmatprep.subr.mxu0 0.0
  %1907 = vmatpush1.msra.mxu0 0.0
  %1908 = vmatprep.subr.mxu0 0.0
  %1909 = vmatpush1.msra.mxu0 0.0
  %1910 = vmatprep.subr.mxu0 0.0
  %1911 = vmatpush1.msra.mxu0 0.0
  %1912 = vmatprep.subr.mxu0 0.0
  %1913 = vmatpush1.msra.mxu0 %v340
  %1914 = vmatprep.subr.mxu0 0.0
  %1915 = vmatpush1.msra.mxu0 %v339
  %1916 = vmatprep.subr.mxu0 0.0
  %1917 = vmatpush1.msra.mxu0 %v338
  %1918 = vmatprep.subr.mxu0 0.0
  %1919 = vmatpush1.msra.mxu0 %v337
  %1920 = vmatprep.subr.mxu0 0.0
  %1921 = vmatpush2.msra.mxu0 0.0
  %1922 = vmatprep.subr.mxu0 0.0
  %1923 = vmatpush2.msra.mxu0 0.0
  %1924 = vmatprep.subr.mxu0 0.0
  %1925 = vmatpush2.msra.mxu0 0.0
  %1926 = vmatprep.subr.mxu0 0.0
  %1927 = vmatpush2.msra.mxu0 0.0
  %1928 = vmatprep.subr.mxu0 0.0
  %1929 = vmatpush2.msra.mxu0 0.0
  %1930 = vmatprep.subr.mxu0 0.0
  %1931 = vmatpush2.msra.mxu0 0.0
  %1932 = vmatprep.subr.mxu0 0.0
  %1933 = vmatpush2.msra.mxu0 0.0
  %1934 = vmatprep.subr.mxu0 0.0
  %1935 = vmatpush2.msra.mxu0 0.0
  %1936 = vmatprep.subr.mxu0 0.0
  %1937 = vmatpush2.msra.mxu0 0.0
  %1938 = vmatprep.subr.mxu0 0.0
  %1939 = vmatpush2.msra.mxu0 0.0
  %1940 = vmatprep.subr.mxu0 0.0
  %1941 = vmatpush2.msra.mxu0 0.0
  %1942 = vmatprep.subr.mxu0 0.0
  %1943 = vmatpush2.msra.mxu0 0.0
  %1944 = vmatprep.subr.mxu0 0.0
  %1945 = vmatpush2.msra.mxu0 0.0
  %1946 = vmatprep.subr.mxu0 0.0
  %1947 = vmatpush2.msra.mxu0 0.0
  %1948 = vmatprep.subr.mxu0 0.0
  %1949 = vmatpush2.msra.mxu0 0.0
  %1950 = vmatprep.subr.mxu0 0.0
  %1951 = vmatpush2.msra.mxu0 0.0
  %1952 = vmatprep.mubr.f32.mxu0 0.0
  %1953 = vmatmul.mubr.f32.gmra.mxu0 %v1886
  %v1954 = vpop.f32.mrf.mxu0
  %v1955 = vadd.f32 0.0, %v1954
  %v1956 = vpop.f32.mrf.mxu0
  %1957 = vdwg.mxu0
  %v1958 = vadd.f32 %v1885, %v1955
  %v1959 = vxor.u32 %v1958, 2147483648
  %v1960 = vmul.f32 %v1959, 1.442695
  %v1961 = vpow.pop %v1960
  %v1962 = vadd.f32 %v1961, 1.0
  %v1963 = vrcp.pop %v1962
  %v1964 = vmul.f32 1.0, %v1963
  %v1965 = vtanh.pop %v1958
  %v1966 = vmul.f32 %v1964, %v1770
  %1968 = vrot.lane.b32.xlu0 %v1965, 64
  %v1969 = vpop.permute.xlu0 %1968
  %v1971 = vmul.f32 %v1964, %v1969
  %1973 = vrot.lane.b32.xlu0 %v1971, 32
  %v1974 = vpop.permute.xlu0 %1973
  %v1976 = vadd.f32 %v1966, %v1974
  %v1977 = vtanh.pop %v1976
  %1979 = vrot.lane.b32.xlu0 %v1977, 64
  %v1980 = vpop.permute.xlu0 %1979
  %v1982 = vmul.f32 %v1964, %v1980
  %1984 = vrot.lane.b32.xlu0 %v1982, 32
  %v1985 = vpop.permute.xlu0 %1984
  %1987 = vst.msk [vmem:[#allocation5] sm:$0xff] %vm71, %v1985
  %v1988 = vld [vmem:[#allocation3] sm:$0xff]
  %v1989 = vld [vmem:[#allocation3 + $0x8] sm:$0xff]
  %v1990 = vld [vmem:[#allocation3 + $0x10] sm:$0xff]
  %v1991 = vld [vmem:[#allocation3 + $0x18] sm:$0xff]
  %v1992 = vld [vmem:[#allocation3 + $0x20] sm:$0xff]
  %v1993 = vld [vmem:[#allocation3 + $0x28] sm:$0xff]
  %v1994 = vld [vmem:[#allocation3 + $0x30] sm:$0xff]
  %v1995 = vld [vmem:[#allocation3 + $0x38] sm:$0xff]
  %v1996 = vld [vmem:[#allocation5] sm:$0xff]
  %v1997 = vld [vmem:[#allocation5 + $0x8] sm:$0xff]
  %v1998 = vld [vmem:[#allocation5 + $0x10] sm:$0xff]
  %v1999 = vld [vmem:[#allocation5 + $0x18] sm:$0xff]
  %v2000 = vld [vmem:[#allocation5 + $0x20] sm:$0xff]
  %v2001 = vld [vmem:[#allocation5 + $0x28] sm:$0xff]
  %v2002 = vld [vmem:[#allocation5 + $0x30] sm:$0xff]
  %v2003 = vld [vmem:[#allocation5 + $0x38] sm:$0xff]
  %v2004 = vld [vmem:[%s7] sm:$0xff]
  %v2005 = vld [vmem:[%s7 + $0x8] sm:$0xff]
  %v2006 = vld [vmem:[%s7 + $0x10] sm:$0xff]
  %v2007 = vld [vmem:[%s7 + $0x18] sm:$0xff]
  %v2008 = vld [vmem:[%s7 + $0x20] sm:$0xff]
  %v2009 = vld [vmem:[%s7 + $0x28] sm:$0xff]
  %v2010 = vld [vmem:[%s7 + $0x30] sm:$0xff]
  %v2011 = vld [vmem:[%s7 + $0x38] sm:$0xff]
  %v2013 = vsel %vm71, %v1996, 0
  %v2016 = vsel %vm71, %v1997, 0
  %v2019 = vsel %vm71, %v1998, 0
  %v2022 = vsel %vm71, %v1999, 0
  %v2025 = vsel %vm71, %v2000, 0
  %v2028 = vsel %vm71, %v2001, 0
  %v2031 = vsel %vm71, %v2002, 0
  %v2034 = vsel %vm71, %v2003, 0
  %2036 = vmatprep.subr.mxu0 0.0
  %2037 = vmatpush1.msra.mxu0 0.0
  %2038 = vmatprep.subr.mxu0 0.0
  %2039 = vmatpush1.msra.mxu0 0.0
  %2040 = vmatprep.subr.mxu0 0.0
  %2041 = vmatpush1.msra.mxu0 0.0
  %2042 = vmatprep.subr.mxu0 0.0
  %2043 = vmatpush1.msra.mxu0 0.0
  %2044 = vmatprep.subr.mxu0 0.0
  %2045 = vmatpush1.msra.mxu0 0.0
  %2046 = vmatprep.subr.mxu0 0.0
  %2047 = vmatpush1.msra.mxu0 0.0
  %2048 = vmatprep.subr.mxu0 0.0
  %2049 = vmatpush1.msra.mxu0 0.0
  %2050 = vmatprep.subr.mxu0 0.0
  %2051 = vmatpush1.msra.mxu0 0.0
  %2052 = vmatprep.subr.mxu0 0.0
  %2053 = vmatpush1.msra.mxu0 0.0
  %2054 = vmatprep.subr.mxu0 0.0
  %2055 = vmatpush1.msra.mxu0 0.0
  %2056 = vmatprep.subr.mxu0 0.0
  %2057 = vmatpush1.msra.mxu0 0.0
  %2058 = vmatprep.subr.mxu0 0.0
  %2059 = vmatpush1.msra.mxu0 0.0
  %2060 = vmatprep.subr.mxu0 0.0
  %2061 = vmatpush1.msra.mxu0 %v2011
  %2062 = vmatprep.subr.mxu0 0.0
  %2063 = vmatpush1.msra.mxu0 %v2010
  %2064 = vmatprep.subr.mxu0 0.0
  %2065 = vmatpush1.msra.mxu0 %v2009
  %2066 = vmatprep.subr.mxu0 0.0
  %2067 = vmatpush1.msra.mxu0 %v2008
  %2068 = vmatprep.subr.mxu0 0.0
  %2069 = vmatpush2.msra.mxu0 0.0
  %2070 = vmatprep.subr.mxu0 0.0
  %2071 = vmatpush2.msra.mxu0 0.0
  %2072 = vmatprep.subr.mxu0 0.0
  %2073 = vmatpush2.msra.mxu0 0.0
  %2074 = vmatprep.subr.mxu0 0.0
  %2075 = vmatpush2.msra.mxu0 0.0
  %2076 = vmatprep.subr.mxu0 0.0
  %2077 = vmatpush2.msra.mxu0 0.0
  %2078 = vmatprep.subr.mxu0 0.0
  %2079 = vmatpush2.msra.mxu0 0.0
  %2080 = vmatprep.subr.mxu0 0.0
  %2081 = vmatpush2.msra.mxu0 0.0
  %2082 = vmatprep.subr.mxu0 0.0
  %2083 = vmatpush2.msra.mxu0 0.0
  %2084 = vmatprep.subr.mxu0 0.0
  %2085 = vmatpush2.msra.mxu0 0.0
  %2086 = vmatprep.subr.mxu0 0.0
  %2087 = vmatpush2.msra.mxu0 0.0
  %2088 = vmatprep.subr.mxu0 0.0
  %2089 = vmatpush2.msra.mxu0 0.0
  %2090 = vmatprep.subr.mxu0 0.0
  %2091 = vmatpush2.msra.mxu0 0.0
  %2092 = vmatprep.subr.mxu0 0.0
  %2093 = vmatpush2.msra.mxu0 0.0
  %2094 = vmatprep.subr.mxu0 0.0
  %2095 = vmatpush2.msra.mxu0 0.0
  %2096 = vmatprep.subr.mxu0 0.0
  %2097 = vmatpush2.msra.mxu0 0.0
  %2098 = vmatprep.subr.mxu0 0.0
  %2099 = vmatpush2.msra.mxu0 0.0
  %2100 = vmatprep.mubr.f32.mxu0 0.0
  %2101 = vmatmul.mubr.f32.gmra.mxu0 %v2013
  %v2102 = vpop.f32.mrf.mxu0
  %v2103 = vadd.f32 0.0, %v2102
  %v2104 = vpop.f32.mrf.mxu0
  %2105 = vmatprep.mubr.f32.mxu0 0.0
  %2106 = vmatmul.mubr.f32.gmra.mxu0 %v2016
  %v2107 = vpop.f32.mrf.mxu0
  %v2108 = vadd.f32 0.0, %v2107
  %v2109 = vpop.f32.mrf.mxu0
  %2110 = vmatprep.mubr.f32.mxu0 0.0
  %2111 = vmatmul.mubr.f32.gmra.mxu0 %v2019
  %v2112 = vpop.f32.mrf.mxu0
  %v2113 = vadd.f32 0.0, %v2112
  %v2114 = vpop.f32.mrf.mxu0
  %2115 = vmatprep.mubr.f32.mxu0 0.0
  %2116 = vmatmul.mubr.f32.gmra.mxu0 %v2022
  %v2117 = vpop.f32.mrf.mxu0
  %v2118 = vadd.f32 0.0, %v2117
  %v2119 = vpop.f32.mrf.mxu0
  %2120 = vmatprep.mubr.f32.mxu0 0.0
  %2121 = vmatmul.mubr.f32.gmra.mxu0 %v2025
  %v2122 = vpop.f32.mrf.mxu0
  %v2123 = vadd.f32 0.0, %v2122
  %v2124 = vpop.f32.mrf.mxu0
  %2125 = vmatprep.mubr.f32.mxu0 0.0
  %2126 = vmatmul.mubr.f32.gmra.mxu0 %v2028
  %v2127 = vpop.f32.mrf.mxu0
  %v2128 = vadd.f32 0.0, %v2127
  %v2129 = vpop.f32.mrf.mxu0
  %2130 = vmatprep.mubr.f32.mxu0 0.0
  %2131 = vmatmul.mubr.f32.gmra.mxu0 %v2031
  %v2132 = vpop.f32.mrf.mxu0
  %v2133 = vadd.f32 0.0, %v2132
  %v2134 = vpop.f32.mrf.mxu0
  %2135 = vmatprep.mubr.f32.mxu0 0.0
  %2136 = vmatmul.mubr.f32.gmra.mxu0 %v2034
  %v2137 = vpop.f32.mrf.mxu0
  %v2138 = vadd.f32 0.0, %v2137
  %v2139 = vpop.f32.mrf.mxu0
  %2140 = vdwg.mxu0
  %v2142 = vsel %vm71, %v1988, 0
  %v2145 = vsel %vm71, %v1989, 0
  %v2148 = vsel %vm71, %v1990, 0
  %v2151 = vsel %vm71, %v1991, 0
  %v2154 = vsel %vm71, %v1992, 0
  %v2157 = vsel %vm71, %v1993, 0
  %v2160 = vsel %vm71, %v1994, 0
  %v2163 = vsel %vm71, %v1995, 0
  %2165 = vmatprep.subr.mxu0 0.0
  %2166 = vmatpush1.msra.mxu0 0.0
  %2167 = vmatprep.subr.mxu0 0.0
  %2168 = vmatpush1.msra.mxu0 0.0
  %2169 = vmatprep.subr.mxu0 0.0
  %2170 = vmatpush1.msra.mxu0 0.0
  %2171 = vmatprep.subr.mxu0 0.0
  %2172 = vmatpush1.msra.mxu0 0.0
  %2173 = vmatprep.subr.mxu0 0.0
  %2174 = vmatpush1.msra.mxu0 0.0
  %2175 = vmatprep.subr.mxu0 0.0
  %2176 = vmatpush1.msra.mxu0 0.0
  %2177 = vmatprep.subr.mxu0 0.0
  %2178 = vmatpush1.msra.mxu0 0.0
  %2179 = vmatprep.subr.mxu0 0.0
  %2180 = vmatpush1.msra.mxu0 0.0
  %2181 = vmatprep.subr.mxu0 0.0
  %2182 = vmatpush1.msra.mxu0 0.0
  %2183 = vmatprep.subr.mxu0 0.0
  %2184 = vmatpush1.msra.mxu0 0.0
  %2185 = vmatprep.subr.mxu0 0.0
  %2186 = vmatpush1.msra.mxu0 0.0
  %2187 = vmatprep.subr.mxu0 0.0
  %2188 = vmatpush1.msra.mxu0 0.0
  %2189 = vmatprep.subr.mxu0 0.0
  %2190 = vmatpush1.msra.mxu0 %v2007
  %2191 = vmatprep.subr.mxu0 0.0
  %2192 = vmatpush1.msra.mxu0 %v2006
  %2193 = vmatprep.subr.mxu0 0.0
  %2194 = vmatpush1.msra.mxu0 %v2005
  %2195 = vmatprep.subr.mxu0 0.0
  %2196 = vmatpush1.msra.mxu0 %v2004
  %2197 = vmatprep.subr.mxu0 0.0
  %2198 = vmatpush2.msra.mxu0 0.0
  %2199 = vmatprep.subr.mxu0 0.0
  %2200 = vmatpush2.msra.mxu0 0.0
  %2201 = vmatprep.subr.mxu0 0.0
  %2202 = vmatpush2.msra.mxu0 0.0
  %2203 = vmatprep.subr.mxu0 0.0
  %2204 = vmatpush2.msra.mxu0 0.0
  %2205 = vmatprep.subr.mxu0 0.0
  %2206 = vmatpush2.msra.mxu0 0.0
  %2207 = vmatprep.subr.mxu0 0.0
  %2208 = vmatpush2.msra.mxu0 0.0
  %2209 = vmatprep.subr.mxu0 0.0
  %2210 = vmatpush2.msra.mxu0 0.0
  %2211 = vmatprep.subr.mxu0 0.0
  %2212 = vmatpush2.msra.mxu0 0.0
  %2213 = vmatprep.subr.mxu0 0.0
  %2214 = vmatpush2.msra.mxu0 0.0
  %2215 = vmatprep.subr.mxu0 0.0
  %2216 = vmatpush2.msra.mxu0 0.0
  %2217 = vmatprep.subr.mxu0 0.0
  %2218 = vmatpush2.msra.mxu0 0.0
  %2219 = vmatprep.subr.mxu0 0.0
  %2220 = vmatpush2.msra.mxu0 0.0
  %2221 = vmatprep.subr.mxu0 0.0
  %2222 = vmatpush2.msra.mxu0 0.0
  %2223 = vmatprep.subr.mxu0 0.0
  %2224 = vmatpush2.msra.mxu0 0.0
  %2225 = vmatprep.subr.mxu0 0.0
  %2226 = vmatpush2.msra.mxu0 0.0
  %2227 = vmatprep.subr.mxu0 0.0
  %2228 = vmatpush2.msra.mxu0 0.0
  %2229 = vmatprep.mubr.f32.mxu0 0.0
  %2230 = vmatmul.mubr.f32.gmra.mxu0 %v2142
  %v2231 = vpop.f32.mrf.mxu0
  %v2232 = vadd.f32 %v2103, %v2231
  %v2233 = vpop.f32.mrf.mxu0
  %2234 = vmatprep.mubr.f32.mxu0 0.0
  %2235 = vmatmul.mubr.f32.gmra.mxu0 %v2145
  %v2236 = vpop.f32.mrf.mxu0
  %v2237 = vadd.f32 %v2108, %v2236
  %v2238 = vpop.f32.mrf.mxu0
  %2239 = vmatprep.mubr.f32.mxu0 0.0
  %2240 = vmatmul.mubr.f32.gmra.mxu0 %v2148
  %v2241 = vpop.f32.mrf.mxu0
  %v2242 = vadd.f32 %v2113, %v2241
  %v2243 = vpop.f32.mrf.mxu0
  %2244 = vmatprep.mubr.f32.mxu0 0.0
  %2245 = vmatmul.mubr.f32.gmra.mxu0 %v2151
  %v2246 = vpop.f32.mrf.mxu0
  %v2247 = vadd.f32 %v2118, %v2246
  %v2248 = vpop.f32.mrf.mxu0
  %2249 = vmatprep.mubr.f32.mxu0 0.0
  %2250 = vmatmul.mubr.f32.gmra.mxu0 %v2154
  %v2251 = vpop.f32.mrf.mxu0
  %v2252 = vadd.f32 %v2123, %v2251
  %v2253 = vpop.f32.mrf.mxu0
  %2254 = vmatprep.mubr.f32.mxu0 0.0
  %2255 = vmatmul.mubr.f32.gmra.mxu0 %v2157
  %v2256 = vpop.f32.mrf.mxu0
  %v2257 = vadd.f32 %v2128, %v2256
  %v2258 = vpop.f32.mrf.mxu0
  %2259 = vmatprep.mubr.f32.mxu0 0.0
  %2260 = vmatmul.mubr.f32.gmra.mxu0 %v2160
  %v2261 = vpop.f32.mrf.mxu0
  %v2262 = vadd.f32 %v2133, %v2261
  %v2263 = vpop.f32.mrf.mxu0
  %2264 = vmatprep.mubr.f32.mxu0 0.0
  %2265 = vmatmul.mubr.f32.gmra.mxu0 %v2163
  %v2266 = vpop.f32.mrf.mxu0
  %v2267 = vadd.f32 %v2138, %v2266
  %v2268 = vpop.f32.mrf.mxu0
  %2269 = vdwg.mxu0
  %v2270 = vld [vmem:[%s9] sm:$0x1]
  %v2272 = vlaneseq
  %v2273 = vshrl.u32 %v2272, 7
  %v2274 = vsub.s32 0, %v2273
  %v2275 = vrot.slane %v2270, %v2274
  %v2277 = vadd.f32 %v2232, %v2275
  %v2278 = vadd.f32 %v2237, %v2275
  %v2279 = vadd.f32 %v2242, %v2275
  %v2280 = vadd.f32 %v2247, %v2275
  %v2281 = vadd.f32 %v2252, %v2275
  %v2282 = vadd.f32 %v2257, %v2275
  %v2283 = vadd.f32 %v2262, %v2275
  %v2284 = vadd.f32 %v2267, %v2275
  %v2285 = vld [vmem:[%s10] sm:$0xff]
  %v2286 = vld [vmem:[%s10 + $0x8] sm:$0xff]
  %v2287 = vld [vmem:[%s10 + $0x10] sm:$0xff]
  %v2288 = vld [vmem:[%s10 + $0x18] sm:$0xff]
  %v2289 = vld [vmem:[%s10 + $0x20] sm:$0xff]
  %v2290 = vld [vmem:[%s10 + $0x28] sm:$0xff]
  %v2291 = vld [vmem:[%s10 + $0x30] sm:$0xff]
  %v2292 = vld [vmem:[%s10 + $0x38] sm:$0xff]
  %2293 = vmatprep.subr.mxu0 0.0
  %2294 = vmatpush1.msra.mxu0 0.0
  %2295 = vmatprep.subr.mxu0 0.0
  %2296 = vmatpush1.msra.mxu0 0.0
  %2297 = vmatprep.subr.mxu0 0.0
  %2298 = vmatpush1.msra.mxu0 0.0
  %2299 = vmatprep.subr.mxu0 0.0
  %2300 = vmatpush1.msra.mxu0 0.0
  %2301 = vmatprep.subr.mxu0 0.0
  %2302 = vmatpush1.msra.mxu0 0.0
  %2303 = vmatprep.subr.mxu0 0.0
  %2304 = vmatpush1.msra.mxu0 0.0
  %2305 = vmatprep.subr.mxu0 0.0
  %2306 = vmatpush1.msra.mxu0 0.0
  %2307 = vmatprep.subr.mxu0 0.0
  %2308 = vmatpush1.msra.mxu0 0.0
  %2309 = vmatprep.subr.mxu0 0.0
  %2310 = vmatpush1.msra.mxu0 0.0
  %2311 = vmatprep.subr.mxu0 0.0
  %2312 = vmatpush1.msra.mxu0 0.0
  %2313 = vmatprep.subr.mxu0 0.0
  %2314 = vmatpush1.msra.mxu0 0.0
  %2315 = vmatprep.subr.mxu0 0.0
  %2316 = vmatpush1.msra.mxu0 0.0
  %2317 = vmatprep.subr.mxu0 0.0
  %2318 = vmatpush1.msra.mxu0 %v2292
  %2319 = vmatprep.subr.mxu0 0.0
  %2320 = vmatpush1.msra.mxu0 %v2291
  %2321 = vmatprep.subr.mxu0 0.0
  %2322 = vmatpush1.msra.mxu0 %v2290
  %2323 = vmatprep.subr.mxu0 0.0
  %2324 = vmatpush1.msra.mxu0 %v2289
  %2325 = vmatprep.subr.mxu0 0.0
  %2326 = vmatpush2.msra.mxu0 0.0
  %2327 = vmatprep.subr.mxu0 0.0
  %2328 = vmatpush2.msra.mxu0 0.0
  %2329 = vmatprep.subr.mxu0 0.0
  %2330 = vmatpush2.msra.mxu0 0.0
  %2331 = vmatprep.subr.mxu0 0.0
  %2332 = vmatpush2.msra.mxu0 0.0
  %2333 = vmatprep.subr.mxu0 0.0
  %2334 = vmatpush2.msra.mxu0 0.0
  %2335 = vmatprep.subr.mxu0 0.0
  %2336 = vmatpush2.msra.mxu0 0.0
  %2337 = vmatprep.subr.mxu0 0.0
  %2338 = vmatpush2.msra.mxu0 0.0
  %2339 = vmatprep.subr.mxu0 0.0
  %2340 = vmatpush2.msra.mxu0 0.0
  %2341 = vmatprep.subr.mxu0 0.0
  %2342 = vmatpush2.msra.mxu0 0.0
  %2343 = vmatprep.subr.mxu0 0.0
  %2344 = vmatpush2.msra.mxu0 0.0
  %2345 = vmatprep.subr.mxu0 0.0
  %2346 = vmatpush2.msra.mxu0 0.0
  %2347 = vmatprep.subr.mxu0 0.0
  %2348 = vmatpush2.msra.mxu0 0.0
  %2349 = vmatprep.subr.mxu0 0.0
  %2350 = vmatpush2.msra.mxu0 0.0
  %2351 = vmatprep.subr.mxu0 0.0
  %2352 = vmatpush2.msra.mxu0 0.0
  %2353 = vmatprep.subr.mxu0 0.0
  %2354 = vmatpush2.msra.mxu0 0.0
  %2355 = vmatprep.subr.mxu0 0.0
  %2356 = vmatpush2.msra.mxu0 0.0
  %2357 = vmatprep.mubr.f32.mxu0 0.0
  %2358 = vmatmul.mubr.f32.gmra.mxu0 %v2013
  %v2359 = vpop.f32.mrf.mxu0
  %v2360 = vadd.f32 0.0, %v2359
  %v2361 = vpop.f32.mrf.mxu0
  %2362 = vmatprep.mubr.f32.mxu0 0.0
  %2363 = vmatmul.mubr.f32.gmra.mxu0 %v2016
  %v2364 = vpop.f32.mrf.mxu0
  %v2365 = vadd.f32 0.0, %v2364
  %v2366 = vpop.f32.mrf.mxu0
  %2367 = vmatprep.mubr.f32.mxu0 0.0
  %2368 = vmatmul.mubr.f32.gmra.mxu0 %v2019
  %v2369 = vpop.f32.mrf.mxu0
  %v2370 = vadd.f32 0.0, %v2369
  %v2371 = vpop.f32.mrf.mxu0
  %2372 = vmatprep.mubr.f32.mxu0 0.0
  %2373 = vmatmul.mubr.f32.gmra.mxu0 %v2022
  %v2374 = vpop.f32.mrf.mxu0
  %v2375 = vadd.f32 0.0, %v2374
  %v2376 = vpop.f32.mrf.mxu0
  %2377 = vmatprep.mubr.f32.mxu0 0.0
  %2378 = vmatmul.mubr.f32.gmra.mxu0 %v2025
  %v2379 = vpop.f32.mrf.mxu0
  %v2380 = vadd.f32 0.0, %v2379
  %v2381 = vpop.f32.mrf.mxu0
  %2382 = vmatprep.mubr.f32.mxu0 0.0
  %2383 = vmatmul.mubr.f32.gmra.mxu0 %v2028
  %v2384 = vpop.f32.mrf.mxu0
  %v2385 = vadd.f32 0.0, %v2384
  %v2386 = vpop.f32.mrf.mxu0
  %2387 = vmatprep.mubr.f32.mxu0 0.0
  %2388 = vmatmul.mubr.f32.gmra.mxu0 %v2031
  %v2389 = vpop.f32.mrf.mxu0
  %v2390 = vadd.f32 0.0, %v2389
  %v2391 = vpop.f32.mrf.mxu0
  %2392 = vmatprep.mubr.f32.mxu0 0.0
  %2393 = vmatmul.mubr.f32.gmra.mxu0 %v2034
  %v2394 = vpop.f32.mrf.mxu0
  %v2395 = vadd.f32 0.0, %v2394
  %v2396 = vpop.f32.mrf.mxu0
  %2397 = vdwg.mxu0
  %2398 = vmatprep.subr.mxu0 0.0
  %2399 = vmatpush1.msra.mxu0 0.0
  %2400 = vmatprep.subr.mxu0 0.0
  %2401 = vmatpush1.msra.mxu0 0.0
  %2402 = vmatprep.subr.mxu0 0.0
  %2403 = vmatpush1.msra.mxu0 0.0
  %2404 = vmatprep.subr.mxu0 0.0
  %2405 = vmatpush1.msra.mxu0 0.0
  %2406 = vmatprep.subr.mxu0 0.0
  %2407 = vmatpush1.msra.mxu0 0.0
  %2408 = vmatprep.subr.mxu0 0.0
  %2409 = vmatpush1.msra.mxu0 0.0
  %2410 = vmatprep.subr.mxu0 0.0
  %2411 = vmatpush1.msra.mxu0 0.0
  %2412 = vmatprep.subr.mxu0 0.0
  %2413 = vmatpush1.msra.mxu0 0.0
  %2414 = vmatprep.subr.mxu0 0.0
  %2415 = vmatpush1.msra.mxu0 0.0
  %2416 = vmatprep.subr.mxu0 0.0
  %2417 = vmatpush1.msra.mxu0 0.0
  %2418 = vmatprep.subr.mxu0 0.0
  %2419 = vmatpush1.msra.mxu0 0.0
  %2420 = vmatprep.subr.mxu0 0.0
  %2421 = vmatpush1.msra.mxu0 0.0
  %2422 = vmatprep.subr.mxu0 0.0
  %2423 = vmatpush1.msra.mxu0 %v2288
  %2424 = vmatprep.subr.mxu0 0.0
  %2425 = vmatpush1.msra.mxu0 %v2287
  %2426 = vmatprep.subr.mxu0 0.0
  %2427 = vmatpush1.msra.mxu0 %v2286
  %2428 = vmatprep.subr.mxu0 0.0
  %2429 = vmatpush1.msra.mxu0 %v2285
  %2430 = vmatprep.subr.mxu0 0.0
  %2431 = vmatpush2.msra.mxu0 0.0
  %2432 = vmatprep.subr.mxu0 0.0
  %2433 = vmatpush2.msra.mxu0 0.0
  %2434 = vmatprep.subr.mxu0 0.0
  %2435 = vmatpush2.msra.mxu0 0.0
  %2436 = vmatprep.subr.mxu0 0.0
  %2437 = vmatpush2.msra.mxu0 0.0
  %2438 = vmatprep.subr.mxu0 0.0
  %2439 = vmatpush2.msra.mxu0 0.0
  %2440 = vmatprep.subr.mxu0 0.0
  %2441 = vmatpush2.msra.mxu0 0.0
  %2442 = vmatprep.subr.mxu0 0.0
  %2443 = vmatpush2.msra.mxu0 0.0
  %2444 = vmatprep.subr.mxu0 0.0
  %2445 = vmatpush2.msra.mxu0 0.0
  %2446 = vmatprep.subr.mxu0 0.0
  %2447 = vmatpush2.msra.mxu0 0.0
  %2448 = vmatprep.subr.mxu0 0.0
  %2449 = vmatpush2.msra.mxu0 0.0
  %2450 = vmatprep.subr.mxu0 0.0
  %2451 = vmatpush2.msra.mxu0 0.0
  %2452 = vmatprep.subr.mxu0 0.0
  %2453 = vmatpush2.msra.mxu0 0.0
  %2454 = vmatprep.subr.mxu0 0.0
  %2455 = vmatpush2.msra.mxu0 0.0
  %2456 = vmatprep.subr.mxu0 0.0
  %2457 = vmatpush2.msra.mxu0 0.0
  %2458 = vmatprep.subr.mxu0 0.0
  %2459 = vmatpush2.msra.mxu0 0.0
  %2460 = vmatprep.subr.mxu0 0.0
  %2461 = vmatpush2.msra.mxu0 0.0
  %2462 = vmatprep.mubr.f32.mxu0 0.0
  %2463 = vmatmul.mubr.f32.gmra.mxu0 %v2142
  %v2464 = vpop.f32.mrf.mxu0
  %v2465 = vadd.f32 %v2360, %v2464
  %v2466 = vpop.f32.mrf.mxu0
  %2467 = vmatprep.mubr.f32.mxu0 0.0
  %2468 = vmatmul.mubr.f32.gmra.mxu0 %v2145
  %v2469 = vpop.f32.mrf.mxu0
  %v2470 = vadd.f32 %v2365, %v2469
  %v2471 = vpop.f32.mrf.mxu0
  %2472 = vmatprep.mubr.f32.mxu0 0.0
  %2473 = vmatmul.mubr.f32.gmra.mxu0 %v2148
  %v2474 = vpop.f32.mrf.mxu0
  %v2475 = vadd.f32 %v2370, %v2474
  %v2476 = vpop.f32.mrf.mxu0
  %2477 = vmatprep.mubr.f32.mxu0 0.0
  %2478 = vmatmul.mubr.f32.gmra.mxu0 %v2151
  %v2479 = vpop.f32.mrf.mxu0
  %v2480 = vadd.f32 %v2375, %v2479
  %v2481 = vpop.f32.mrf.mxu0
  %2482 = vmatprep.mubr.f32.mxu0 0.0
  %2483 = vmatmul.mubr.f32.gmra.mxu0 %v2154
  %v2484 = vpop.f32.mrf.mxu0
  %v2485 = vadd.f32 %v2380, %v2484
  %v2486 = vpop.f32.mrf.mxu0
  %2487 = vmatprep.mubr.f32.mxu0 0.0
  %2488 = vmatmul.mubr.f32.gmra.mxu0 %v2157
  %v2489 = vpop.f32.mrf.mxu0
  %v2490 = vadd.f32 %v2385, %v2489
  %v2491 = vpop.f32.mrf.mxu0
  %2492 = vmatprep.mubr.f32.mxu0 0.0
  %2493 = vmatmul.mubr.f32.gmra.mxu0 %v2160
  %v2494 = vpop.f32.mrf.mxu0
  %v2495 = vadd.f32 %v2390, %v2494
  %v2496 = vpop.f32.mrf.mxu0
  %2497 = vmatprep.mubr.f32.mxu0 0.0
  %2498 = vmatmul.mubr.f32.gmra.mxu0 %v2163
  %v2499 = vpop.f32.mrf.mxu0
  %v2500 = vadd.f32 %v2395, %v2499
  %v2501 = vpop.f32.mrf.mxu0
  %2502 = vdwg.mxu0
  %v2503 = vld [vmem:[%s12] sm:$0x1]
  %v2505 = vlaneseq
  %v2506 = vshrl.u32 %v2505, 7
  %v2507 = vsub.s32 0, %v2506
  %v2508 = vrot.slane %v2503, %v2507
  %v2510 = vadd.f32 %v2465, %v2508
  %v2511 = vadd.f32 %v2470, %v2508
  %v2512 = vadd.f32 %v2475, %v2508
  %v2513 = vadd.f32 %v2480, %v2508
  %v2514 = vadd.f32 %v2485, %v2508
  %v2515 = vadd.f32 %v2490, %v2508
  %v2516 = vadd.f32 %v2495, %v2508
  %v2517 = vadd.f32 %v2500, %v2508
  %2518 = vst [vmem:[#allocation2] sm:$0xff] %v2277
  %2519 = vst [vmem:[#allocation2 + $0x8] sm:$0xff] %v2278
  %2520 = vst [vmem:[#allocation2 + $0x10] sm:$0xff] %v2279
  %2521 = vst [vmem:[#allocation2 + $0x18] sm:$0xff] %v2280
  %2522 = vst [vmem:[#allocation2 + $0x20] sm:$0xff] %v2281
  %2523 = vst [vmem:[#allocation2 + $0x28] sm:$0xff] %v2282
  %2524 = vst [vmem:[#allocation2 + $0x30] sm:$0xff] %v2283
  %2525 = vst [vmem:[#allocation2 + $0x38] sm:$0xff] %v2284
  %2526 = vst [vmem:[#allocation4] sm:$0xff] %v2510
  %2527 = vst [vmem:[#allocation4 + $0x8] sm:$0xff] %v2511
  %2528 = vst [vmem:[#allocation4 + $0x10] sm:$0xff] %v2512
  %2529 = vst [vmem:[#allocation4 + $0x18] sm:$0xff] %v2513
  %2530 = vst [vmem:[#allocation4 + $0x20] sm:$0xff] %v2514
  %2531 = vst [vmem:[#allocation4 + $0x28] sm:$0xff] %v2515
  %2532 = vst [vmem:[#allocation4 + $0x30] sm:$0xff] %v2516
  %2533 = vst [vmem:[#allocation4 + $0x38] sm:$0xff] %v2517
  %v2534 = vld [vmem:[%s8] sm:$0xff]
  %v2535 = vld [vmem:[%s8 + $0x8] sm:$0xff]
  %v2536 = vld [vmem:[%s8 + $0x10] sm:$0xff]
  %v2537 = vld [vmem:[%s8 + $0x18] sm:$0xff]
  %v2538 = vld [vmem:[%s11] sm:$0xff]
  %v2539 = vld [vmem:[%s11 + $0x8] sm:$0xff]
  %v2540 = vld [vmem:[%s11 + $0x10] sm:$0xff]
  %v2541 = vld [vmem:[%s11 + $0x18] sm:$0xff]
  %v2542 = vld [vmem:[#allocation2] sm:$0xff]
  %2543 = vmatprep.subr.mxu0 0.0
  %2544 = vmatpush1.msra.mxu0 0.0
  %2545 = vmatprep.subr.mxu0 0.0
  %2546 = vmatpush1.msra.mxu0 0.0
  %2547 = vmatprep.subr.mxu0 0.0
  %2548 = vmatpush1.msra.mxu0 0.0
  %2549 = vmatprep.subr.mxu0 0.0
  %2550 = vmatpush1.msra.mxu0 0.0
  %2551 = vmatprep.subr.mxu0 0.0
  %2552 = vmatpush1.msra.mxu0 0.0
  %2553 = vmatprep.subr.mxu0 0.0
  %2554 = vmatpush1.msra.mxu0 0.0
  %2555 = vmatprep.subr.mxu0 0.0
  %2556 = vmatpush1.msra.mxu0 0.0
  %2557 = vmatprep.subr.mxu0 0.0
  %2558 = vmatpush1.msra.mxu0 0.0
  %2559 = vmatprep.subr.mxu0 0.0
  %2560 = vmatpush1.msra.mxu0 0.0
  %2561 = vmatprep.subr.mxu0 0.0
  %2562 = vmatpush1.msra.mxu0 0.0
  %2563 = vmatprep.subr.mxu0 0.0
  %2564 = vmatpush1.msra.mxu0 0.0
  %2565 = vmatprep.subr.mxu0 0.0
  %2566 = vmatpush1.msra.mxu0 0.0
  %2567 = vmatprep.subr.mxu0 0.0
  %2568 = vmatpush1.msra.mxu0 %v2537
  %2569 = vmatprep.subr.mxu0 0.0
  %2570 = vmatpush1.msra.mxu0 %v2536
  %2571 = vmatprep.subr.mxu0 0.0
  %2572 = vmatpush1.msra.mxu0 %v2535
  %2573 = vmatprep.subr.mxu0 0.0
  %2574 = vmatpush1.msra.mxu0 %v2534
  %2575 = vmatprep.subr.mxu0 0.0
  %2576 = vmatpush2.msra.mxu0 0.0
  %2577 = vmatprep.subr.mxu0 0.0
  %2578 = vmatpush2.msra.mxu0 0.0
  %2579 = vmatprep.subr.mxu0 0.0
  %2580 = vmatpush2.msra.mxu0 0.0
  %2581 = vmatprep.subr.mxu0 0.0
  %2582 = vmatpush2.msra.mxu0 0.0
  %2583 = vmatprep.subr.mxu0 0.0
  %2584 = vmatpush2.msra.mxu0 0.0
  %2585 = vmatprep.subr.mxu0 0.0
  %2586 = vmatpush2.msra.mxu0 0.0
  %2587 = vmatprep.subr.mxu0 0.0
  %2588 = vmatpush2.msra.mxu0 0.0
  %2589 = vmatprep.subr.mxu0 0.0
  %2590 = vmatpush2.msra.mxu0 0.0
  %2591 = vmatprep.subr.mxu0 0.0
  %2592 = vmatpush2.msra.mxu0 0.0
  %2593 = vmatprep.subr.mxu0 0.0
  %2594 = vmatpush2.msra.mxu0 0.0
  %2595 = vmatprep.subr.mxu0 0.0
  %2596 = vmatpush2.msra.mxu0 0.0
  %2597 = vmatprep.subr.mxu0 0.0
  %2598 = vmatpush2.msra.mxu0 0.0
  %2599 = vmatprep.subr.mxu0 0.0
  %2600 = vmatpush2.msra.mxu0 0.0
  %2601 = vmatprep.subr.mxu0 0.0
  %2602 = vmatpush2.msra.mxu0 0.0
  %2603 = vmatprep.subr.mxu0 0.0
  %2604 = vmatpush2.msra.mxu0 0.0
  %2605 = vmatprep.subr.mxu0 0.0
  %2606 = vmatpush2.msra.mxu0 0.0
  %2607 = vmatprep.mubr.f32.mxu0 0.0
  %2608 = vmatmul.mubr.f32.gmra.mxu0 %v343
  %v2609 = vpop.f32.mrf.mxu0
  %v2610 = vadd.f32 0.0, %v2609
  %v2611 = vpop.f32.mrf.mxu0
  %2612 = vdwg.mxu0
  %v2613 = vadd.f32 %v2542, %v2610
  %v2614 = vxor.u32 %v2613, 2147483648
  %v2615 = vmul.f32 %v2614, 1.442695
  %v2616 = vpow.pop %v2615
  %v2617 = vadd.f32 %v2616, 1.0
  %v2618 = vrcp.pop %v2617
  %v2619 = vmul.f32 1.0, %v2618
  %v2620 = vtanh.pop %v2613
  %v2621 = vmul.f32 %v2619, 0.0
  %2623 = vrot.lane.b32.xlu0 %v2620, 64
  %v2624 = vpop.permute.xlu0 %2623
  %v2626 = vmul.f32 %v2619, %v2624
  %2628 = vrot.lane.b32.xlu0 %v2626, 32
  %v2629 = vpop.permute.xlu0 %2628
  %v2631 = vadd.f32 %v2621, %v2629
  %v2632 = vtanh.pop %v2631
  %2634 = vrot.lane.b32.xlu0 %v2632, 64
  %v2635 = vpop.permute.xlu0 %2634
  %v2637 = vmul.f32 %v2619, %v2635
  %v2638 = vld [vmem:[#allocation4 + $0x38] sm:$0xff]
  %2639 = vmatprep.subr.mxu0 0.0
  %2640 = vmatpush1.msra.mxu0 0.0
  %2641 = vmatprep.subr.mxu0 0.0
  %2642 = vmatpush1.msra.mxu0 0.0
  %2643 = vmatprep.subr.mxu0 0.0
  %2644 = vmatpush1.msra.mxu0 0.0
  %2645 = vmatprep.subr.mxu0 0.0
  %2646 = vmatpush1.msra.mxu0 0.0
  %2647 = vmatprep.subr.mxu0 0.0
  %2648 = vmatpush1.msra.mxu0 0.0
  %2649 = vmatprep.subr.mxu0 0.0
  %2650 = vmatpush1.msra.mxu0 0.0
  %2651 = vmatprep.subr.mxu0 0.0
  %2652 = vmatpush1.msra.mxu0 0.0
  %2653 = vmatprep.subr.mxu0 0.0
  %2654 = vmatpush1.msra.mxu0 0.0
  %2655 = vmatprep.subr.mxu0 0.0
  %2656 = vmatpush1.msra.mxu0 0.0
  %2657 = vmatprep.subr.mxu0 0.0
  %2658 = vmatpush1.msra.mxu0 0.0
  %2659 = vmatprep.subr.mxu0 0.0
  %2660 = vmatpush1.msra.mxu0 0.0
  %2661 = vmatprep.subr.mxu0 0.0
  %2662 = vmatpush1.msra.mxu0 0.0
  %2663 = vmatprep.subr.mxu0 0.0
  %2664 = vmatpush1.msra.mxu0 %v2541
  %2665 = vmatprep.subr.mxu0 0.0
  %2666 = vmatpush1.msra.mxu0 %v2540
  %2667 = vmatprep.subr.mxu0 0.0
  %2668 = vmatpush1.msra.mxu0 %v2539
  %2669 = vmatprep.subr.mxu0 0.0
  %2670 = vmatpush1.msra.mxu0 %v2538
  %2671 = vmatprep.subr.mxu0 0.0
  %2672 = vmatpush2.msra.mxu0 0.0
  %2673 = vmatprep.subr.mxu0 0.0
  %2674 = vmatpush2.msra.mxu0 0.0
  %2675 = vmatprep.subr.mxu0 0.0
  %2676 = vmatpush2.msra.mxu0 0.0
  %2677 = vmatprep.subr.mxu0 0.0
  %2678 = vmatpush2.msra.mxu0 0.0
  %2679 = vmatprep.subr.mxu0 0.0
  %2680 = vmatpush2.msra.mxu0 0.0
  %2681 = vmatprep.subr.mxu0 0.0
  %2682 = vmatpush2.msra.mxu0 0.0
  %2683 = vmatprep.subr.mxu0 0.0
  %2684 = vmatpush2.msra.mxu0 0.0
  %2685 = vmatprep.subr.mxu0 0.0
  %2686 = vmatpush2.msra.mxu0 0.0
  %2687 = vmatprep.subr.mxu0 0.0
  %2688 = vmatpush2.msra.mxu0 0.0
  %2689 = vmatprep.subr.mxu0 0.0
  %2690 = vmatpush2.msra.mxu0 0.0
  %2691 = vmatprep.subr.mxu0 0.0
  %2692 = vmatpush2.msra.mxu0 0.0
  %2693 = vmatprep.subr.mxu0 0.0
  %2694 = vmatpush2.msra.mxu0 0.0
  %2695 = vmatprep.subr.mxu0 0.0
  %2696 = vmatpush2.msra.mxu0 0.0
  %2697 = vmatprep.subr.mxu0 0.0
  %2698 = vmatpush2.msra.mxu0 0.0
  %2699 = vmatprep.subr.mxu0 0.0
  %2700 = vmatpush2.msra.mxu0 0.0
  %2701 = vmatprep.subr.mxu0 0.0
  %2702 = vmatpush2.msra.mxu0 0.0
  %2703 = vmatprep.mubr.f32.mxu0 0.0
  %2704 = vmatmul.mubr.f32.gmra.mxu0 %v343
  %v2705 = vpop.f32.mrf.mxu0
  %v2706 = vadd.f32 0.0, %v2705
  %v2707 = vpop.f32.mrf.mxu0
  %2708 = vdwg.mxu0
  %v2709 = vadd.f32 %v2638, %v2706
  %v2710 = vxor.u32 %v2709, 2147483648
  %v2711 = vmul.f32 %v2710, 1.442695
  %v2712 = vpow.pop %v2711
  %v2713 = vadd.f32 %v2712, 1.0
  %v2714 = vrcp.pop %v2713
  %v2715 = vmul.f32 1.0, %v2714
  %v2716 = vtanh.pop %v2709
  %v2717 = vmul.f32 %v2715, 0.0
  %2719 = vrot.lane.b32.xlu0 %v2716, 64
  %v2720 = vpop.permute.xlu0 %2719
  %v2722 = vmul.f32 %v2715, %v2720
  %2724 = vrot.lane.b32.xlu0 %v2722, 32
  %v2725 = vpop.permute.xlu0 %2724
  %v2727 = vadd.f32 %v2717, %v2725
  %v2728 = vtanh.pop %v2727
  %2730 = vrot.lane.b32.xlu0 %v2728, 64
  %v2731 = vpop.permute.xlu0 %2730
  %v2733 = vmul.f32 %v2715, %v2731
  %v2734 = vld [vmem:[#allocation2 + $0x8] sm:$0xff]
  %2736 = vrot.lane.b32.xlu0 %v2637, 32
  %v2737 = vpop.permute.xlu0 %2736
  %v2738 = vsel %vm71, %v2737, 0
  %2740 = vmatprep.subr.mxu0 0.0
  %2741 = vmatpush1.msra.mxu0 0.0
  %2742 = vmatprep.subr.mxu0 0.0
  %2743 = vmatpush1.msra.mxu0 0.0
  %2744 = vmatprep.subr.mxu0 0.0
  %2745 = vmatpush1.msra.mxu0 0.0
  %2746 = vmatprep.subr.mxu0 0.0
  %2747 = vmatpush1.msra.mxu0 0.0
  %2748 = vmatprep.subr.mxu0 0.0
  %2749 = vmatpush1.msra.mxu0 0.0
  %2750 = vmatprep.subr.mxu0 0.0
  %2751 = vmatpush1.msra.mxu0 0.0
  %2752 = vmatprep.subr.mxu0 0.0
  %2753 = vmatpush1.msra.mxu0 0.0
  %2754 = vmatprep.subr.mxu0 0.0
  %2755 = vmatpush1.msra.mxu0 0.0
  %2756 = vmatprep.subr.mxu0 0.0
  %2757 = vmatpush1.msra.mxu0 0.0
  %2758 = vmatprep.subr.mxu0 0.0
  %2759 = vmatpush1.msra.mxu0 0.0
  %2760 = vmatprep.subr.mxu0 0.0
  %2761 = vmatpush1.msra.mxu0 0.0
  %2762 = vmatprep.subr.mxu0 0.0
  %2763 = vmatpush1.msra.mxu0 0.0
  %2764 = vmatprep.subr.mxu0 0.0
  %2765 = vmatpush1.msra.mxu0 %v2537
  %2766 = vmatprep.subr.mxu0 0.0
  %2767 = vmatpush1.msra.mxu0 %v2536
  %2768 = vmatprep.subr.mxu0 0.0
  %2769 = vmatpush1.msra.mxu0 %v2535
  %2770 = vmatprep.subr.mxu0 0.0
  %2771 = vmatpush1.msra.mxu0 %v2534
  %2772 = vmatprep.subr.mxu0 0.0
  %2773 = vmatpush2.msra.mxu0 0.0
  %2774 = vmatprep.subr.mxu0 0.0
  %2775 = vmatpush2.msra.mxu0 0.0
  %2776 = vmatprep.subr.mxu0 0.0
  %2777 = vmatpush2.msra.mxu0 0.0
  %2778 = vmatprep.subr.mxu0 0.0
  %2779 = vmatpush2.msra.mxu0 0.0
  %2780 = vmatprep.subr.mxu0 0.0
  %2781 = vmatpush2.msra.mxu0 0.0
  %2782 = vmatprep.subr.mxu0 0.0
  %2783 = vmatpush2.msra.mxu0 0.0
  %2784 = vmatprep.subr.mxu0 0.0
  %2785 = vmatpush2.msra.mxu0 0.0
  %2786 = vmatprep.subr.mxu0 0.0
  %2787 = vmatpush2.msra.mxu0 0.0
  %2788 = vmatprep.subr.mxu0 0.0
  %2789 = vmatpush2.msra.mxu0 0.0
  %2790 = vmatprep.subr.mxu0 0.0
  %2791 = vmatpush2.msra.mxu0 0.0
  %2792 = vmatprep.subr.mxu0 0.0
  %2793 = vmatpush2.msra.mxu0 0.0
  %2794 = vmatprep.subr.mxu0 0.0
  %2795 = vmatpush2.msra.mxu0 0.0
  %2796 = vmatprep.subr.mxu0 0.0
  %2797 = vmatpush2.msra.mxu0 0.0
  %2798 = vmatprep.subr.mxu0 0.0
  %2799 = vmatpush2.msra.mxu0 0.0
  %2800 = vmatprep.subr.mxu0 0.0
  %2801 = vmatpush2.msra.mxu0 0.0
  %2802 = vmatprep.subr.mxu0 0.0
  %2803 = vmatpush2.msra.mxu0 0.0
  %2804 = vmatprep.mubr.f32.mxu0 0.0
  %2805 = vmatmul.mubr.f32.gmra.mxu0 %v2738
  %v2806 = vpop.f32.mrf.mxu0
  %v2807 = vadd.f32 0.0, %v2806
  %v2808 = vpop.f32.mrf.mxu0
  %2809 = vdwg.mxu0
  %v2810 = vadd.f32 %v2734, %v2807
  %v2811 = vxor.u32 %v2810, 2147483648
  %v2812 = vmul.f32 %v2811, 1.442695
  %v2813 = vpow.pop %v2812
  %v2814 = vadd.f32 %v2813, 1.0
  %v2815 = vrcp.pop %v2814
  %v2816 = vmul.f32 1.0, %v2815
  %v2817 = vtanh.pop %v2810
  %v2818 = vmul.f32 %v2816, %v2631
  %2820 = vrot.lane.b32.xlu0 %v2817, 64
  %v2821 = vpop.permute.xlu0 %2820
  %v2823 = vmul.f32 %v2816, %v2821
  %2825 = vrot.lane.b32.xlu0 %v2823, 32
  %v2826 = vpop.permute.xlu0 %2825
  %v2828 = vadd.f32 %v2818, %v2826
  %v2829 = vtanh.pop %v2828
  %2831 = vrot.lane.b32.xlu0 %v2829, 64
  %v2832 = vpop.permute.xlu0 %2831
  %v2834 = vmul.f32 %v2816, %v2832
  %v2835 = vld [vmem:[#allocation4 + $0x30] sm:$0xff]
  %2837 = vrot.lane.b32.xlu0 %v2733, 32
  %v2838 = vpop.permute.xlu0 %2837
  %v2839 = vsel %vm71, %v2838, 0
  %2841 = vmatprep.subr.mxu0 0.0
  %2842 = vmatpush1.msra.mxu0 0.0
  %2843 = vmatprep.subr.mxu0 0.0
  %2844 = vmatpush1.msra.mxu0 0.0
  %2845 = vmatprep.subr.mxu0 0.0
  %2846 = vmatpush1.msra.mxu0 0.0
  %2847 = vmatprep.subr.mxu0 0.0
  %2848 = vmatpush1.msra.mxu0 0.0
  %2849 = vmatprep.subr.mxu0 0.0
  %2850 = vmatpush1.msra.mxu0 0.0
  %2851 = vmatprep.subr.mxu0 0.0
  %2852 = vmatpush1.msra.mxu0 0.0
  %2853 = vmatprep.subr.mxu0 0.0
  %2854 = vmatpush1.msra.mxu0 0.0
  %2855 = vmatprep.subr.mxu0 0.0
  %2856 = vmatpush1.msra.mxu0 0.0
  %2857 = vmatprep.subr.mxu0 0.0
  %2858 = vmatpush1.msra.mxu0 0.0
  %2859 = vmatprep.subr.mxu0 0.0
  %2860 = vmatpush1.msra.mxu0 0.0
  %2861 = vmatprep.subr.mxu0 0.0
  %2862 = vmatpush1.msra.mxu0 0.0
  %2863 = vmatprep.subr.mxu0 0.0
  %2864 = vmatpush1.msra.mxu0 0.0
  %2865 = vmatprep.subr.mxu0 0.0
  %2866 = vmatpush1.msra.mxu0 %v2541
  %2867 = vmatprep.subr.mxu0 0.0
  %2868 = vmatpush1.msra.mxu0 %v2540
  %2869 = vmatprep.subr.mxu0 0.0
  %2870 = vmatpush1.msra.mxu0 %v2539
  %2871 = vmatprep.subr.mxu0 0.0
  %2872 = vmatpush1.msra.mxu0 %v2538
  %2873 = vmatprep.subr.mxu0 0.0
  %2874 = vmatpush2.msra.mxu0 0.0
  %2875 = vmatprep.subr.mxu0 0.0
  %2876 = vmatpush2.msra.mxu0 0.0
  %2877 = vmatprep.subr.mxu0 0.0
  %2878 = vmatpush2.msra.mxu0 0.0
  %2879 = vmatprep.subr.mxu0 0.0
  %2880 = vmatpush2.msra.mxu0 0.0
  %2881 = vmatprep.subr.mxu0 0.0
  %2882 = vmatpush2.msra.mxu0 0.0
  %2883 = vmatprep.subr.mxu0 0.0
  %2884 = vmatpush2.msra.mxu0 0.0
  %2885 = vmatprep.subr.mxu0 0.0
  %2886 = vmatpush2.msra.mxu0 0.0
  %2887 = vmatprep.subr.mxu0 0.0
  %2888 = vmatpush2.msra.mxu0 0.0
  %2889 = vmatprep.subr.mxu0 0.0
  %2890 = vmatpush2.msra.mxu0 0.0
  %2891 = vmatprep.subr.mxu0 0.0
  %2892 = vmatpush2.msra.mxu0 0.0
  %2893 = vmatprep.subr.mxu0 0.0
  %2894 = vmatpush2.msra.mxu0 0.0
  %2895 = vmatprep.subr.mxu0 0.0
  %2896 = vmatpush2.msra.mxu0 0.0
  %2897 = vmatprep.subr.mxu0 0.0
  %2898 = vmatpush2.msra.mxu0 0.0
  %2899 = vmatprep.subr.mxu0 0.0
  %2900 = vmatpush2.msra.mxu0 0.0
  %2901 = vmatprep.subr.mxu0 0.0
  %2902 = vmatpush2.msra.mxu0 0.0
  %2903 = vmatprep.subr.mxu0 0.0
  %2904 = vmatpush2.msra.mxu0 0.0
  %2905 = vmatprep.mubr.f32.mxu0 0.0
  %2906 = vmatmul.mubr.f32.gmra.mxu0 %v2839
  %v2907 = vpop.f32.mrf.mxu0
  %v2908 = vadd.f32 0.0, %v2907
  %v2909 = vpop.f32.mrf.mxu0
  %2910 = vdwg.mxu0
  %v2911 = vadd.f32 %v2835, %v2908
  %v2912 = vxor.u32 %v2911, 2147483648
  %v2913 = vmul.f32 %v2912, 1.442695
  %v2914 = vpow.pop %v2913
  %v2915 = vadd.f32 %v2914, 1.0
  %v2916 = vrcp.pop %v2915
  %v2917 = vmul.f32 1.0, %v2916
  %v2918 = vtanh.pop %v2911
  %v2919 = vmul.f32 %v2917, %v2727
  %2921 = vrot.lane.b32.xlu0 %v2918, 64
  %v2922 = vpop.permute.xlu0 %2921
  %v2924 = vmul.f32 %v2917, %v2922
  %2926 = vrot.lane.b32.xlu0 %v2924, 32
  %v2927 = vpop.permute.xlu0 %2926
  %v2929 = vadd.f32 %v2919, %v2927
  %v2930 = vtanh.pop %v2929
  %2932 = vrot.lane.b32.xlu0 %v2930, 64
  %v2933 = vpop.permute.xlu0 %2932
  %v2935 = vmul.f32 %v2917, %v2933
  %v2936 = vld [vmem:[#allocation2 + $0x10] sm:$0xff]
  %2938 = vrot.lane.b32.xlu0 %v2834, 32
  %v2939 = vpop.permute.xlu0 %2938
  %v2940 = vsel %vm71, %v2939, 0
  %2942 = vmatprep.subr.mxu0 0.0
  %2943 = vmatpush1.msra.mxu0 0.0
  %2944 = vmatprep.subr.mxu0 0.0
  %2945 = vmatpush1.msra.mxu0 0.0
  %2946 = vmatprep.subr.mxu0 0.0
  %2947 = vmatpush1.msra.mxu0 0.0
  %2948 = vmatprep.subr.mxu0 0.0
  %2949 = vmatpush1.msra.mxu0 0.0
  %2950 = vmatprep.subr.mxu0 0.0
  %2951 = vmatpush1.msra.mxu0 0.0
  %2952 = vmatprep.subr.mxu0 0.0
  %2953 = vmatpush1.msra.mxu0 0.0
  %2954 = vmatprep.subr.mxu0 0.0
  %2955 = vmatpush1.msra.mxu0 0.0
  %2956 = vmatprep.subr.mxu0 0.0
  %2957 = vmatpush1.msra.mxu0 0.0
  %2958 = vmatprep.subr.mxu0 0.0
  %2959 = vmatpush1.msra.mxu0 0.0
  %2960 = vmatprep.subr.mxu0 0.0
  %2961 = vmatpush1.msra.mxu0 0.0
  %2962 = vmatprep.subr.mxu0 0.0
  %2963 = vmatpush1.msra.mxu0 0.0
  %2964 = vmatprep.subr.mxu0 0.0
  %2965 = vmatpush1.msra.mxu0 0.0
  %2966 = vmatprep.subr.mxu0 0.0
  %2967 = vmatpush1.msra.mxu0 %v2537
  %2968 = vmatprep.subr.mxu0 0.0
  %2969 = vmatpush1.msra.mxu0 %v2536
  %2970 = vmatprep.subr.mxu0 0.0
  %2971 = vmatpush1.msra.mxu0 %v2535
  %2972 = vmatprep.subr.mxu0 0.0
  %2973 = vmatpush1.msra.mxu0 %v2534
  %2974 = vmatprep.subr.mxu0 0.0
  %2975 = vmatpush2.msra.mxu0 0.0
  %2976 = vmatprep.subr.mxu0 0.0
  %2977 = vmatpush2.msra.mxu0 0.0
  %2978 = vmatprep.subr.mxu0 0.0
  %2979 = vmatpush2.msra.mxu0 0.0
  %2980 = vmatprep.subr.mxu0 0.0
  %2981 = vmatpush2.msra.mxu0 0.0
  %2982 = vmatprep.subr.mxu0 0.0
  %2983 = vmatpush2.msra.mxu0 0.0
  %2984 = vmatprep.subr.mxu0 0.0
  %2985 = vmatpush2.msra.mxu0 0.0
  %2986 = vmatprep.subr.mxu0 0.0
  %2987 = vmatpush2.msra.mxu0 0.0
  %2988 = vmatprep.subr.mxu0 0.0
  %2989 = vmatpush2.msra.mxu0 0.0
  %2990 = vmatprep.subr.mxu0 0.0
  %2991 = vmatpush2.msra.mxu0 0.0
  %2992 = vmatprep.subr.mxu0 0.0
  %2993 = vmatpush2.msra.mxu0 0.0
  %2994 = vmatprep.subr.mxu0 0.0
  %2995 = vmatpush2.msra.mxu0 0.0
  %2996 = vmatprep.subr.mxu0 0.0
  %2997 = vmatpush2.msra.mxu0 0.0
  %2998 = vmatprep.subr.mxu0 0.0
  %2999 = vmatpush2.msra.mxu0 0.0
  %3000 = vmatprep.subr.mxu0 0.0
  %3001 = vmatpush2.msra.mxu0 0.0
  %3002 = vmatprep.subr.mxu0 0.0
  %3003 = vmatpush2.msra.mxu0 0.0
  %3004 = vmatprep.subr.mxu0 0.0
  %3005 = vmatpush2.msra.mxu0 0.0
  %3006 = vmatprep.mubr.f32.mxu0 0.0
  %3007 = vmatmul.mubr.f32.gmra.mxu0 %v2940
  %v3008 = vpop.f32.mrf.mxu0
  %v3009 = vadd.f32 0.0, %v3008
  %v3010 = vpop.f32.mrf.mxu0
  %3011 = vdwg.mxu0
  %v3012 = vadd.f32 %v2936, %v3009
  %v3013 = vxor.u32 %v3012, 2147483648
  %v3014 = vmul.f32 %v3013, 1.442695
  %v3015 = vpow.pop %v3014
  %v3016 = vadd.f32 %v3015, 1.0
  %v3017 = vrcp.pop %v3016
  %v3018 = vmul.f32 1.0, %v3017
  %v3019 = vtanh.pop %v3012
  %v3020 = vmul.f32 %v3018, %v2828
  %3022 = vrot.lane.b32.xlu0 %v3019, 64
  %v3023 = vpop.permute.xlu0 %3022
  %v3025 = vmul.f32 %v3018, %v3023
  %3027 = vrot.lane.b32.xlu0 %v3025, 32
  %v3028 = vpop.permute.xlu0 %3027
  %v3030 = vadd.f32 %v3020, %v3028
  %v3031 = vtanh.pop %v3030
  %3033 = vrot.lane.b32.xlu0 %v3031, 64
  %v3034 = vpop.permute.xlu0 %3033
  %v3036 = vmul.f32 %v3018, %v3034
  %v3037 = vld [vmem:[#allocation4 + $0x28] sm:$0xff]
  %3039 = vrot.lane.b32.xlu0 %v2935, 32
  %v3040 = vpop.permute.xlu0 %3039
  %v3041 = vsel %vm71, %v3040, 0
  %3043 = vmatprep.subr.mxu0 0.0
  %3044 = vmatpush1.msra.mxu0 0.0
  %3045 = vmatprep.subr.mxu0 0.0
  %3046 = vmatpush1.msra.mxu0 0.0
  %3047 = vmatprep.subr.mxu0 0.0
  %3048 = vmatpush1.msra.mxu0 0.0
  %3049 = vmatprep.subr.mxu0 0.0
  %3050 = vmatpush1.msra.mxu0 0.0
  %3051 = vmatprep.subr.mxu0 0.0
  %3052 = vmatpush1.msra.mxu0 0.0
  %3053 = vmatprep.subr.mxu0 0.0
  %3054 = vmatpush1.msra.mxu0 0.0
  %3055 = vmatprep.subr.mxu0 0.0
  %3056 = vmatpush1.msra.mxu0 0.0
  %3057 = vmatprep.subr.mxu0 0.0
  %3058 = vmatpush1.msra.mxu0 0.0
  %3059 = vmatprep.subr.mxu0 0.0
  %3060 = vmatpush1.msra.mxu0 0.0
  %3061 = vmatprep.subr.mxu0 0.0
  %3062 = vmatpush1.msra.mxu0 0.0
  %3063 = vmatprep.subr.mxu0 0.0
  %3064 = vmatpush1.msra.mxu0 0.0
  %3065 = vmatprep.subr.mxu0 0.0
  %3066 = vmatpush1.msra.mxu0 0.0
  %3067 = vmatprep.subr.mxu0 0.0
  %3068 = vmatpush1.msra.mxu0 %v2541
  %3069 = vmatprep.subr.mxu0 0.0
  %3070 = vmatpush1.msra.mxu0 %v2540
  %3071 = vmatprep.subr.mxu0 0.0
  %3072 = vmatpush1.msra.mxu0 %v2539
  %3073 = vmatprep.subr.mxu0 0.0
  %3074 = vmatpush1.msra.mxu0 %v2538
  %3075 = vmatprep.subr.mxu0 0.0
  %3076 = vmatpush2.msra.mxu0 0.0
  %3077 = vmatprep.subr.mxu0 0.0
  %3078 = vmatpush2.msra.mxu0 0.0
  %3079 = vmatprep.subr.mxu0 0.0
  %3080 = vmatpush2.msra.mxu0 0.0
  %3081 = vmatprep.subr.mxu0 0.0
  %3082 = vmatpush2.msra.mxu0 0.0
  %3083 = vmatprep.subr.mxu0 0.0
  %3084 = vmatpush2.msra.mxu0 0.0
  %3085 = vmatprep.subr.mxu0 0.0
  %3086 = vmatpush2.msra.mxu0 0.0
  %3087 = vmatprep.subr.mxu0 0.0
  %3088 = vmatpush2.msra.mxu0 0.0
  %3089 = vmatprep.subr.mxu0 0.0
  %3090 = vmatpush2.msra.mxu0 0.0
  %3091 = vmatprep.subr.mxu0 0.0
  %3092 = vmatpush2.msra.mxu0 0.0
  %3093 = vmatprep.subr.mxu0 0.0
  %3094 = vmatpush2.msra.mxu0 0.0
  %3095 = vmatprep.subr.mxu0 0.0
  %3096 = vmatpush2.msra.mxu0 0.0
  %3097 = vmatprep.subr.mxu0 0.0
  %3098 = vmatpush2.msra.mxu0 0.0
  %3099 = vmatprep.subr.mxu0 0.0
  %3100 = vmatpush2.msra.mxu0 0.0
  %3101 = vmatprep.subr.mxu0 0.0
  %3102 = vmatpush2.msra.mxu0 0.0
  %3103 = vmatprep.subr.mxu0 0.0
  %3104 = vmatpush2.msra.mxu0 0.0
  %3105 = vmatprep.subr.mxu0 0.0
  %3106 = vmatpush2.msra.mxu0 0.0
  %3107 = vmatprep.mubr.f32.mxu0 0.0
  %3108 = vmatmul.mubr.f32.gmra.mxu0 %v3041
  %v3109 = vpop.f32.mrf.mxu0
  %v3110 = vadd.f32 0.0, %v3109
  %v3111 = vpop.f32.mrf.mxu0
  %3112 = vdwg.mxu0
  %v3113 = vadd.f32 %v3037, %v3110
  %v3114 = vxor.u32 %v3113, 2147483648
  %v3115 = vmul.f32 %v3114, 1.442695
  %v3116 = vpow.pop %v3115
  %v3117 = vadd.f32 %v3116, 1.0
  %v3118 = vrcp.pop %v3117
  %v3119 = vmul.f32 1.0, %v3118
  %v3120 = vtanh.pop %v3113
  %v3121 = vmul.f32 %v3119, %v2929
  %3123 = vrot.lane.b32.xlu0 %v3120, 64
  %v3124 = vpop.permute.xlu0 %3123
  %v3126 = vmul.f32 %v3119, %v3124
  %3128 = vrot.lane.b32.xlu0 %v3126, 32
  %v3129 = vpop.permute.xlu0 %3128
  %v3131 = vadd.f32 %v3121, %v3129
  %v3132 = vtanh.pop %v3131
  %3134 = vrot.lane.b32.xlu0 %v3132, 64
  %v3135 = vpop.permute.xlu0 %3134
  %v3137 = vmul.f32 %v3119, %v3135
  %v3138 = vld [vmem:[#allocation2 + $0x18] sm:$0xff]
  %3140 = vrot.lane.b32.xlu0 %v3036, 32
  %v3141 = vpop.permute.xlu0 %3140
  %v3142 = vsel %vm71, %v3141, 0
  %3144 = vmatprep.subr.mxu0 0.0
  %3145 = vmatpush1.msra.mxu0 0.0
  %3146 = vmatprep.subr.mxu0 0.0
  %3147 = vmatpush1.msra.mxu0 0.0
  %3148 = vmatprep.subr.mxu0 0.0
  %3149 = vmatpush1.msra.mxu0 0.0
  %3150 = vmatprep.subr.mxu0 0.0
  %3151 = vmatpush1.msra.mxu0 0.0
  %3152 = vmatprep.subr.mxu0 0.0
  %3153 = vmatpush1.msra.mxu0 0.0
  %3154 = vmatprep.subr.mxu0 0.0
  %3155 = vmatpush1.msra.mxu0 0.0
  %3156 = vmatprep.subr.mxu0 0.0
  %3157 = vmatpush1.msra.mxu0 0.0
  %3158 = vmatprep.subr.mxu0 0.0
  %3159 = vmatpush1.msra.mxu0 0.0
  %3160 = vmatprep.subr.mxu0 0.0
  %3161 = vmatpush1.msra.mxu0 0.0
  %3162 = vmatprep.subr.mxu0 0.0
  %3163 = vmatpush1.msra.mxu0 0.0
  %3164 = vmatprep.subr.mxu0 0.0
  %3165 = vmatpush1.msra.mxu0 0.0
  %3166 = vmatprep.subr.mxu0 0.0
  %3167 = vmatpush1.msra.mxu0 0.0
  %3168 = vmatprep.subr.mxu0 0.0
  %3169 = vmatpush1.msra.mxu0 %v2537
  %3170 = vmatprep.subr.mxu0 0.0
  %3171 = vmatpush1.msra.mxu0 %v2536
  %3172 = vmatprep.subr.mxu0 0.0
  %3173 = vmatpush1.msra.mxu0 %v2535
  %3174 = vmatprep.subr.mxu0 0.0
  %3175 = vmatpush1.msra.mxu0 %v2534
  %3176 = vmatprep.subr.mxu0 0.0
  %3177 = vmatpush2.msra.mxu0 0.0
  %3178 = vmatprep.subr.mxu0 0.0
  %3179 = vmatpush2.msra.mxu0 0.0
  %3180 = vmatprep.subr.mxu0 0.0
  %3181 = vmatpush2.msra.mxu0 0.0
  %3182 = vmatprep.subr.mxu0 0.0
  %3183 = vmatpush2.msra.mxu0 0.0
  %3184 = vmatprep.subr.mxu0 0.0
  %3185 = vmatpush2.msra.mxu0 0.0
  %3186 = vmatprep.subr.mxu0 0.0
  %3187 = vmatpush2.msra.mxu0 0.0
  %3188 = vmatprep.subr.mxu0 0.0
  %3189 = vmatpush2.msra.mxu0 0.0
  %3190 = vmatprep.subr.mxu0 0.0
  %3191 = vmatpush2.msra.mxu0 0.0
  %3192 = vmatprep.subr.mxu0 0.0
  %3193 = vmatpush2.msra.mxu0 0.0
  %3194 = vmatprep.subr.mxu0 0.0
  %3195 = vmatpush2.msra.mxu0 0.0
  %3196 = vmatprep.subr.mxu0 0.0
  %3197 = vmatpush2.msra.mxu0 0.0
  %3198 = vmatprep.subr.mxu0 0.0
  %3199 = vmatpush2.msra.mxu0 0.0
  %3200 = vmatprep.subr.mxu0 0.0
  %3201 = vmatpush2.msra.mxu0 0.0
  %3202 = vmatprep.subr.mxu0 0.0
  %3203 = vmatpush2.msra.mxu0 0.0
  %3204 = vmatprep.subr.mxu0 0.0
  %3205 = vmatpush2.msra.mxu0 0.0
  %3206 = vmatprep.subr.mxu0 0.0
  %3207 = vmatpush2.msra.mxu0 0.0
  %3208 = vmatprep.mubr.f32.mxu0 0.0
  %3209 = vmatmul.mubr.f32.gmra.mxu0 %v3142
  %v3210 = vpop.f32.mrf.mxu0
  %v3211 = vadd.f32 0.0, %v3210
  %v3212 = vpop.f32.mrf.mxu0
  %3213 = vdwg.mxu0
  %v3214 = vadd.f32 %v3138, %v3211
  %v3215 = vxor.u32 %v3214, 2147483648
  %v3216 = vmul.f32 %v3215, 1.442695
  %v3217 = vpow.pop %v3216
  %v3218 = vadd.f32 %v3217, 1.0
  %v3219 = vrcp.pop %v3218
  %v3220 = vmul.f32 1.0, %v3219
  %v3221 = vtanh.pop %v3214
  %v3222 = vmul.f32 %v3220, %v3030
  %3224 = vrot.lane.b32.xlu0 %v3221, 64
  %v3225 = vpop.permute.xlu0 %3224
  %v3227 = vmul.f32 %v3220, %v3225
  %3229 = vrot.lane.b32.xlu0 %v3227, 32
  %v3230 = vpop.permute.xlu0 %3229
  %v3232 = vadd.f32 %v3222, %v3230
  %v3233 = vtanh.pop %v3232
  %3235 = vrot.lane.b32.xlu0 %v3233, 64
  %v3236 = vpop.permute.xlu0 %3235
  %v3238 = vmul.f32 %v3220, %v3236
  %v3239 = vld [vmem:[#allocation4 + $0x20] sm:$0xff]
  %3241 = vrot.lane.b32.xlu0 %v3137, 32
  %v3242 = vpop.permute.xlu0 %3241
  %v3243 = vsel %vm71, %v3242, 0
  %3245 = vmatprep.subr.mxu0 0.0
  %3246 = vmatpush1.msra.mxu0 0.0
  %3247 = vmatprep.subr.mxu0 0.0
  %3248 = vmatpush1.msra.mxu0 0.0
  %3249 = vmatprep.subr.mxu0 0.0
  %3250 = vmatpush1.msra.mxu0 0.0
  %3251 = vmatprep.subr.mxu0 0.0
  %3252 = vmatpush1.msra.mxu0 0.0
  %3253 = vmatprep.subr.mxu0 0.0
  %3254 = vmatpush1.msra.mxu0 0.0
  %3255 = vmatprep.subr.mxu0 0.0
  %3256 = vmatpush1.msra.mxu0 0.0
  %3257 = vmatprep.subr.mxu0 0.0
  %3258 = vmatpush1.msra.mxu0 0.0
  %3259 = vmatprep.subr.mxu0 0.0
  %3260 = vmatpush1.msra.mxu0 0.0
  %3261 = vmatprep.subr.mxu0 0.0
  %3262 = vmatpush1.msra.mxu0 0.0
  %3263 = vmatprep.subr.mxu0 0.0
  %3264 = vmatpush1.msra.mxu0 0.0
  %3265 = vmatprep.subr.mxu0 0.0
  %3266 = vmatpush1.msra.mxu0 0.0
  %3267 = vmatprep.subr.mxu0 0.0
  %3268 = vmatpush1.msra.mxu0 0.0
  %3269 = vmatprep.subr.mxu0 0.0
  %3270 = vmatpush1.msra.mxu0 %v2541
  %3271 = vmatprep.subr.mxu0 0.0
  %3272 = vmatpush1.msra.mxu0 %v2540
  %3273 = vmatprep.subr.mxu0 0.0
  %3274 = vmatpush1.msra.mxu0 %v2539
  %3275 = vmatprep.subr.mxu0 0.0
  %3276 = vmatpush1.msra.mxu0 %v2538
  %3277 = vmatprep.subr.mxu0 0.0
  %3278 = vmatpush2.msra.mxu0 0.0
  %3279 = vmatprep.subr.mxu0 0.0
  %3280 = vmatpush2.msra.mxu0 0.0
  %3281 = vmatprep.subr.mxu0 0.0
  %3282 = vmatpush2.msra.mxu0 0.0
  %3283 = vmatprep.subr.mxu0 0.0
  %3284 = vmatpush2.msra.mxu0 0.0
  %3285 = vmatprep.subr.mxu0 0.0
  %3286 = vmatpush2.msra.mxu0 0.0
  %3287 = vmatprep.subr.mxu0 0.0
  %3288 = vmatpush2.msra.mxu0 0.0
  %3289 = vmatprep.subr.mxu0 0.0
  %3290 = vmatpush2.msra.mxu0 0.0
  %3291 = vmatprep.subr.mxu0 0.0
  %3292 = vmatpush2.msra.mxu0 0.0
  %3293 = vmatprep.subr.mxu0 0.0
  %3294 = vmatpush2.msra.mxu0 0.0
  %3295 = vmatprep.subr.mxu0 0.0
  %3296 = vmatpush2.msra.mxu0 0.0
  %3297 = vmatprep.subr.mxu0 0.0
  %3298 = vmatpush2.msra.mxu0 0.0
  %3299 = vmatprep.subr.mxu0 0.0
  %3300 = vmatpush2.msra.mxu0 0.0
  %3301 = vmatprep.subr.mxu0 0.0
  %3302 = vmatpush2.msra.mxu0 0.0
  %3303 = vmatprep.subr.mxu0 0.0
  %3304 = vmatpush2.msra.mxu0 0.0
  %3305 = vmatprep.subr.mxu0 0.0
  %3306 = vmatpush2.msra.mxu0 0.0
  %3307 = vmatprep.subr.mxu0 0.0
  %3308 = vmatpush2.msra.mxu0 0.0
  %3309 = vmatprep.mubr.f32.mxu0 0.0
  %3310 = vmatmul.mubr.f32.gmra.mxu0 %v3243
  %v3311 = vpop.f32.mrf.mxu0
  %v3312 = vadd.f32 0.0, %v3311
  %v3313 = vpop.f32.mrf.mxu0
  %3314 = vdwg.mxu0
  %v3315 = vadd.f32 %v3239, %v3312
  %v3316 = vxor.u32 %v3315, 2147483648
  %v3317 = vmul.f32 %v3316, 1.442695
  %v3318 = vpow.pop %v3317
  %v3319 = vadd.f32 %v3318, 1.0
  %v3320 = vrcp.pop %v3319
  %v3321 = vmul.f32 1.0, %v3320
  %v3322 = vtanh.pop %v3315
  %v3323 = vmul.f32 %v3321, %v3131
  %3325 = vrot.lane.b32.xlu0 %v3322, 64
  %v3326 = vpop.permute.xlu0 %3325
  %v3328 = vmul.f32 %v3321, %v3326
  %3330 = vrot.lane.b32.xlu0 %v3328, 32
  %v3331 = vpop.permute.xlu0 %3330
  %v3333 = vadd.f32 %v3323, %v3331
  %v3334 = vtanh.pop %v3333
  %3336 = vrot.lane.b32.xlu0 %v3334, 64
  %v3337 = vpop.permute.xlu0 %3336
  %v3339 = vmul.f32 %v3321, %v3337
  %v3340 = vld [vmem:[#allocation2 + $0x20] sm:$0xff]
  %3342 = vrot.lane.b32.xlu0 %v3238, 32
  %v3343 = vpop.permute.xlu0 %3342
  %v3344 = vsel %vm71, %v3343, 0
  %3346 = vmatprep.subr.mxu0 0.0
  %3347 = vmatpush1.msra.mxu0 0.0
  %3348 = vmatprep.subr.mxu0 0.0
  %3349 = vmatpush1.msra.mxu0 0.0
  %3350 = vmatprep.subr.mxu0 0.0
  %3351 = vmatpush1.msra.mxu0 0.0
  %3352 = vmatprep.subr.mxu0 0.0
  %3353 = vmatpush1.msra.mxu0 0.0
  %3354 = vmatprep.subr.mxu0 0.0
  %3355 = vmatpush1.msra.mxu0 0.0
  %3356 = vmatprep.subr.mxu0 0.0
  %3357 = vmatpush1.msra.mxu0 0.0
  %3358 = vmatprep.subr.mxu0 0.0
  %3359 = vmatpush1.msra.mxu0 0.0
  %3360 = vmatprep.subr.mxu0 0.0
  %3361 = vmatpush1.msra.mxu0 0.0
  %3362 = vmatprep.subr.mxu0 0.0
  %3363 = vmatpush1.msra.mxu0 0.0
  %3364 = vmatprep.subr.mxu0 0.0
  %3365 = vmatpush1.msra.mxu0 0.0
  %3366 = vmatprep.subr.mxu0 0.0
  %3367 = vmatpush1.msra.mxu0 0.0
  %3368 = vmatprep.subr.mxu0 0.0
  %3369 = vmatpush1.msra.mxu0 0.0
  %3370 = vmatprep.subr.mxu0 0.0
  %3371 = vmatpush1.msra.mxu0 %v2537
  %3372 = vmatprep.subr.mxu0 0.0
  %3373 = vmatpush1.msra.mxu0 %v2536
  %3374 = vmatprep.subr.mxu0 0.0
  %3375 = vmatpush1.msra.mxu0 %v2535
  %3376 = vmatprep.subr.mxu0 0.0
  %3377 = vmatpush1.msra.mxu0 %v2534
  %3378 = vmatprep.subr.mxu0 0.0
  %3379 = vmatpush2.msra.mxu0 0.0
  %3380 = vmatprep.subr.mxu0 0.0
  %3381 = vmatpush2.msra.mxu0 0.0
  %3382 = vmatprep.subr.mxu0 0.0
  %3383 = vmatpush2.msra.mxu0 0.0
  %3384 = vmatprep.subr.mxu0 0.0
  %3385 = vmatpush2.msra.mxu0 0.0
  %3386 = vmatprep.subr.mxu0 0.0
  %3387 = vmatpush2.msra.mxu0 0.0
  %3388 = vmatprep.subr.mxu0 0.0
  %3389 = vmatpush2.msra.mxu0 0.0
  %3390 = vmatprep.subr.mxu0 0.0
  %3391 = vmatpush2.msra.mxu0 0.0
  %3392 = vmatprep.subr.mxu0 0.0
  %3393 = vmatpush2.msra.mxu0 0.0
  %3394 = vmatprep.subr.mxu0 0.0
  %3395 = vmatpush2.msra.mxu0 0.0
  %3396 = vmatprep.subr.mxu0 0.0
  %3397 = vmatpush2.msra.mxu0 0.0
  %3398 = vmatprep.subr.mxu0 0.0
  %3399 = vmatpush2.msra.mxu0 0.0
  %3400 = vmatprep.subr.mxu0 0.0
  %3401 = vmatpush2.msra.mxu0 0.0
  %3402 = vmatprep.subr.mxu0 0.0
  %3403 = vmatpush2.msra.mxu0 0.0
  %3404 = vmatprep.subr.mxu0 0.0
  %3405 = vmatpush2.msra.mxu0 0.0
  %3406 = vmatprep.subr.mxu0 0.0
  %3407 = vmatpush2.msra.mxu0 0.0
  %3408 = vmatprep.subr.mxu0 0.0
  %3409 = vmatpush2.msra.mxu0 0.0
  %3410 = vmatprep.mubr.f32.mxu0 0.0
  %3411 = vmatmul.mubr.f32.gmra.mxu0 %v3344
  %v3412 = vpop.f32.mrf.mxu0
  %v3413 = vadd.f32 0.0, %v3412
  %v3414 = vpop.f32.mrf.mxu0
  %3415 = vdwg.mxu0
  %v3416 = vadd.f32 %v3340, %v3413
  %v3417 = vxor.u32 %v3416, 2147483648
  %v3418 = vmul.f32 %v3417, 1.442695
  %v3419 = vpow.pop %v3418
  %v3420 = vadd.f32 %v3419, 1.0
  %v3421 = vrcp.pop %v3420
  %v3422 = vmul.f32 1.0, %v3421
  %v3423 = vtanh.pop %v3416
  %v3424 = vmul.f32 %v3422, %v3232
  %3426 = vrot.lane.b32.xlu0 %v3423, 64
  %v3427 = vpop.permute.xlu0 %3426
  %v3429 = vmul.f32 %v3422, %v3427
  %3431 = vrot.lane.b32.xlu0 %v3429, 32
  %v3432 = vpop.permute.xlu0 %3431
  %v3434 = vadd.f32 %v3424, %v3432
  %v3435 = vtanh.pop %v3434
  %3437 = vrot.lane.b32.xlu0 %v3435, 64
  %v3438 = vpop.permute.xlu0 %3437
  %v3440 = vmul.f32 %v3422, %v3438
  %v3441 = vld [vmem:[#allocation4 + $0x18] sm:$0xff]
  %3443 = vrot.lane.b32.xlu0 %v3339, 32
  %v3444 = vpop.permute.xlu0 %3443
  %v3445 = vsel %vm71, %v3444, 0
  %3447 = vmatprep.subr.mxu0 0.0
  %3448 = vmatpush1.msra.mxu0 0.0
  %3449 = vmatprep.subr.mxu0 0.0
  %3450 = vmatpush1.msra.mxu0 0.0
  %3451 = vmatprep.subr.mxu0 0.0
  %3452 = vmatpush1.msra.mxu0 0.0
  %3453 = vmatprep.subr.mxu0 0.0
  %3454 = vmatpush1.msra.mxu0 0.0
  %3455 = vmatprep.subr.mxu0 0.0
  %3456 = vmatpush1.msra.mxu0 0.0
  %3457 = vmatprep.subr.mxu0 0.0
  %3458 = vmatpush1.msra.mxu0 0.0
  %3459 = vmatprep.subr.mxu0 0.0
  %3460 = vmatpush1.msra.mxu0 0.0
  %3461 = vmatprep.subr.mxu0 0.0
  %3462 = vmatpush1.msra.mxu0 0.0
  %3463 = vmatprep.subr.mxu0 0.0
  %3464 = vmatpush1.msra.mxu0 0.0
  %3465 = vmatprep.subr.mxu0 0.0
  %3466 = vmatpush1.msra.mxu0 0.0
  %3467 = vmatprep.subr.mxu0 0.0
  %3468 = vmatpush1.msra.mxu0 0.0
  %3469 = vmatprep.subr.mxu0 0.0
  %3470 = vmatpush1.msra.mxu0 0.0
  %3471 = vmatprep.subr.mxu0 0.0
  %3472 = vmatpush1.msra.mxu0 %v2541
  %3473 = vmatprep.subr.mxu0 0.0
  %3474 = vmatpush1.msra.mxu0 %v2540
  %3475 = vmatprep.subr.mxu0 0.0
  %3476 = vmatpush1.msra.mxu0 %v2539
  %3477 = vmatprep.subr.mxu0 0.0
  %3478 = vmatpush1.msra.mxu0 %v2538
  %3479 = vmatprep.subr.mxu0 0.0
  %3480 = vmatpush2.msra.mxu0 0.0
  %3481 = vmatprep.subr.mxu0 0.0
  %3482 = vmatpush2.msra.mxu0 0.0
  %3483 = vmatprep.subr.mxu0 0.0
  %3484 = vmatpush2.msra.mxu0 0.0
  %3485 = vmatprep.subr.mxu0 0.0
  %3486 = vmatpush2.msra.mxu0 0.0
  %3487 = vmatprep.subr.mxu0 0.0
  %3488 = vmatpush2.msra.mxu0 0.0
  %3489 = vmatprep.subr.mxu0 0.0
  %3490 = vmatpush2.msra.mxu0 0.0
  %3491 = vmatprep.subr.mxu0 0.0
  %3492 = vmatpush2.msra.mxu0 0.0
  %3493 = vmatprep.subr.mxu0 0.0
  %3494 = vmatpush2.msra.mxu0 0.0
  %3495 = vmatprep.subr.mxu0 0.0
  %3496 = vmatpush2.msra.mxu0 0.0
  %3497 = vmatprep.subr.mxu0 0.0
  %3498 = vmatpush2.msra.mxu0 0.0
  %3499 = vmatprep.subr.mxu0 0.0
  %3500 = vmatpush2.msra.mxu0 0.0
  %3501 = vmatprep.subr.mxu0 0.0
  %3502 = vmatpush2.msra.mxu0 0.0
  %3503 = vmatprep.subr.mxu0 0.0
  %3504 = vmatpush2.msra.mxu0 0.0
  %3505 = vmatprep.subr.mxu0 0.0
  %3506 = vmatpush2.msra.mxu0 0.0
  %3507 = vmatprep.subr.mxu0 0.0
  %3508 = vmatpush2.msra.mxu0 0.0
  %3509 = vmatprep.subr.mxu0 0.0
  %3510 = vmatpush2.msra.mxu0 0.0
  %3511 = vmatprep.mubr.f32.mxu0 0.0
  %3512 = vmatmul.mubr.f32.gmra.mxu0 %v3445
  %v3513 = vpop.f32.mrf.mxu0
  %v3514 = vadd.f32 0.0, %v3513
  %v3515 = vpop.f32.mrf.mxu0
  %3516 = vdwg.mxu0
  %v3517 = vadd.f32 %v3441, %v3514
  %v3518 = vxor.u32 %v3517, 2147483648
  %v3519 = vmul.f32 %v3518, 1.442695
  %v3520 = vpow.pop %v3519
  %v3521 = vadd.f32 %v3520, 1.0
  %v3522 = vrcp.pop %v3521
  %v3523 = vmul.f32 1.0, %v3522
  %v3524 = vtanh.pop %v3517
  %v3525 = vmul.f32 %v3523, %v3333
  %3527 = vrot.lane.b32.xlu0 %v3524, 64
  %v3528 = vpop.permute.xlu0 %3527
  %v3530 = vmul.f32 %v3523, %v3528
  %3532 = vrot.lane.b32.xlu0 %v3530, 32
  %v3533 = vpop.permute.xlu0 %3532
  %v3535 = vadd.f32 %v3525, %v3533
  %v3536 = vtanh.pop %v3535
  %3538 = vrot.lane.b32.xlu0 %v3536, 64
  %v3539 = vpop.permute.xlu0 %3538
  %v3541 = vmul.f32 %v3523, %v3539
  %v3542 = vld [vmem:[#allocation2 + $0x28] sm:$0xff]
  %3544 = vrot.lane.b32.xlu0 %v3440, 32
  %v3545 = vpop.permute.xlu0 %3544
  %v3546 = vsel %vm71, %v3545, 0
  %3548 = vmatprep.subr.mxu0 0.0
  %3549 = vmatpush1.msra.mxu0 0.0
  %3550 = vmatprep.subr.mxu0 0.0
  %3551 = vmatpush1.msra.mxu0 0.0
  %3552 = vmatprep.subr.mxu0 0.0
  %3553 = vmatpush1.msra.mxu0 0.0
  %3554 = vmatprep.subr.mxu0 0.0
  %3555 = vmatpush1.msra.mxu0 0.0
  %3556 = vmatprep.subr.mxu0 0.0
  %3557 = vmatpush1.msra.mxu0 0.0
  %3558 = vmatprep.subr.mxu0 0.0
  %3559 = vmatpush1.msra.mxu0 0.0
  %3560 = vmatprep.subr.mxu0 0.0
  %3561 = vmatpush1.msra.mxu0 0.0
  %3562 = vmatprep.subr.mxu0 0.0
  %3563 = vmatpush1.msra.mxu0 0.0
  %3564 = vmatprep.subr.mxu0 0.0
  %3565 = vmatpush1.msra.mxu0 0.0
  %3566 = vmatprep.subr.mxu0 0.0
  %3567 = vmatpush1.msra.mxu0 0.0
  %3568 = vmatprep.subr.mxu0 0.0
  %3569 = vmatpush1.msra.mxu0 0.0
  %3570 = vmatprep.subr.mxu0 0.0
  %3571 = vmatpush1.msra.mxu0 0.0
  %3572 = vmatprep.subr.mxu0 0.0
  %3573 = vmatpush1.msra.mxu0 %v2537
  %3574 = vmatprep.subr.mxu0 0.0
  %3575 = vmatpush1.msra.mxu0 %v2536
  %3576 = vmatprep.subr.mxu0 0.0
  %3577 = vmatpush1.msra.mxu0 %v2535
  %3578 = vmatprep.subr.mxu0 0.0
  %3579 = vmatpush1.msra.mxu0 %v2534
  %3580 = vmatprep.subr.mxu0 0.0
  %3581 = vmatpush2.msra.mxu0 0.0
  %3582 = vmatprep.subr.mxu0 0.0
  %3583 = vmatpush2.msra.mxu0 0.0
  %3584 = vmatprep.subr.mxu0 0.0
  %3585 = vmatpush2.msra.mxu0 0.0
  %3586 = vmatprep.subr.mxu0 0.0
  %3587 = vmatpush2.msra.mxu0 0.0
  %3588 = vmatprep.subr.mxu0 0.0
  %3589 = vmatpush2.msra.mxu0 0.0
  %3590 = vmatprep.subr.mxu0 0.0
  %3591 = vmatpush2.msra.mxu0 0.0
  %3592 = vmatprep.subr.mxu0 0.0
  %3593 = vmatpush2.msra.mxu0 0.0
  %3594 = vmatprep.subr.mxu0 0.0
  %3595 = vmatpush2.msra.mxu0 0.0
  %3596 = vmatprep.subr.mxu0 0.0
  %3597 = vmatpush2.msra.mxu0 0.0
  %3598 = vmatprep.subr.mxu0 0.0
  %3599 = vmatpush2.msra.mxu0 0.0
  %3600 = vmatprep.subr.mxu0 0.0
  %3601 = vmatpush2.msra.mxu0 0.0
  %3602 = vmatprep.subr.mxu0 0.0
  %3603 = vmatpush2.msra.mxu0 0.0
  %3604 = vmatprep.subr.mxu0 0.0
  %3605 = vmatpush2.msra.mxu0 0.0
  %3606 = vmatprep.subr.mxu0 0.0
  %3607 = vmatpush2.msra.mxu0 0.0
  %3608 = vmatprep.subr.mxu0 0.0
  %3609 = vmatpush2.msra.mxu0 0.0
  %3610 = vmatprep.subr.mxu0 0.0
  %3611 = vmatpush2.msra.mxu0 0.0
  %3612 = vmatprep.mubr.f32.mxu0 0.0
  %3613 = vmatmul.mubr.f32.gmra.mxu0 %v3546
  %v3614 = vpop.f32.mrf.mxu0
  %v3615 = vadd.f32 0.0, %v3614
  %v3616 = vpop.f32.mrf.mxu0
  %3617 = vdwg.mxu0
  %v3618 = vadd.f32 %v3542, %v3615
  %v3619 = vxor.u32 %v3618, 2147483648
  %v3620 = vmul.f32 %v3619, 1.442695
  %v3621 = vpow.pop %v3620
  %v3622 = vadd.f32 %v3621, 1.0
  %v3623 = vrcp.pop %v3622
  %v3624 = vmul.f32 1.0, %v3623
  %v3625 = vtanh.pop %v3618
  %v3626 = vmul.f32 %v3624, %v3434
  %3628 = vrot.lane.b32.xlu0 %v3625, 64
  %v3629 = vpop.permute.xlu0 %3628
  %v3631 = vmul.f32 %v3624, %v3629
  %3633 = vrot.lane.b32.xlu0 %v3631, 32
  %v3634 = vpop.permute.xlu0 %3633
  %v3636 = vadd.f32 %v3626, %v3634
  %v3637 = vtanh.pop %v3636
  %3639 = vrot.lane.b32.xlu0 %v3637, 64
  %v3640 = vpop.permute.xlu0 %3639
  %v3642 = vmul.f32 %v3624, %v3640
  %v3643 = vld [vmem:[#allocation4 + $0x10] sm:$0xff]
  %3645 = vrot.lane.b32.xlu0 %v3541, 32
  %v3646 = vpop.permute.xlu0 %3645
  %v3647 = vsel %vm71, %v3646, 0
  %3649 = vmatprep.subr.mxu0 0.0
  %3650 = vmatpush1.msra.mxu0 0.0
  %3651 = vmatprep.subr.mxu0 0.0
  %3652 = vmatpush1.msra.mxu0 0.0
  %3653 = vmatprep.subr.mxu0 0.0
  %3654 = vmatpush1.msra.mxu0 0.0
  %3655 = vmatprep.subr.mxu0 0.0
  %3656 = vmatpush1.msra.mxu0 0.0
  %3657 = vmatprep.subr.mxu0 0.0
  %3658 = vmatpush1.msra.mxu0 0.0
  %3659 = vmatprep.subr.mxu0 0.0
  %3660 = vmatpush1.msra.mxu0 0.0
  %3661 = vmatprep.subr.mxu0 0.0
  %3662 = vmatpush1.msra.mxu0 0.0
  %3663 = vmatprep.subr.mxu0 0.0
  %3664 = vmatpush1.msra.mxu0 0.0
  %3665 = vmatprep.subr.mxu0 0.0
  %3666 = vmatpush1.msra.mxu0 0.0
  %3667 = vmatprep.subr.mxu0 0.0
  %3668 = vmatpush1.msra.mxu0 0.0
  %3669 = vmatprep.subr.mxu0 0.0
  %3670 = vmatpush1.msra.mxu0 0.0
  %3671 = vmatprep.subr.mxu0 0.0
  %3672 = vmatpush1.msra.mxu0 0.0
  %3673 = vmatprep.subr.mxu0 0.0
  %3674 = vmatpush1.msra.mxu0 %v2541
  %3675 = vmatprep.subr.mxu0 0.0
  %3676 = vmatpush1.msra.mxu0 %v2540
  %3677 = vmatprep.subr.mxu0 0.0
  %3678 = vmatpush1.msra.mxu0 %v2539
  %3679 = vmatprep.subr.mxu0 0.0
  %3680 = vmatpush1.msra.mxu0 %v2538
  %3681 = vmatprep.subr.mxu0 0.0
  %3682 = vmatpush2.msra.mxu0 0.0
  %3683 = vmatprep.subr.mxu0 0.0
  %3684 = vmatpush2.msra.mxu0 0.0
  %3685 = vmatprep.subr.mxu0 0.0
  %3686 = vmatpush2.msra.mxu0 0.0
  %3687 = vmatprep.subr.mxu0 0.0
  %3688 = vmatpush2.msra.mxu0 0.0
  %3689 = vmatprep.subr.mxu0 0.0
  %3690 = vmatpush2.msra.mxu0 0.0
  %3691 = vmatprep.subr.mxu0 0.0
  %3692 = vmatpush2.msra.mxu0 0.0
  %3693 = vmatprep.subr.mxu0 0.0
  %3694 = vmatpush2.msra.mxu0 0.0
  %3695 = vmatprep.subr.mxu0 0.0
  %3696 = vmatpush2.msra.mxu0 0.0
  %3697 = vmatprep.subr.mxu0 0.0
  %3698 = vmatpush2.msra.mxu0 0.0
  %3699 = vmatprep.subr.mxu0 0.0
  %3700 = vmatpush2.msra.mxu0 0.0
  %3701 = vmatprep.subr.mxu0 0.0
  %3702 = vmatpush2.msra.mxu0 0.0
  %3703 = vmatprep.subr.mxu0 0.0
  %3704 = vmatpush2.msra.mxu0 0.0
  %3705 = vmatprep.subr.mxu0 0.0
  %3706 = vmatpush2.msra.mxu0 0.0
  %3707 = vmatprep.subr.mxu0 0.0
  %3708 = vmatpush2.msra.mxu0 0.0
  %3709 = vmatprep.subr.mxu0 0.0
  %3710 = vmatpush2.msra.mxu0 0.0
  %3711 = vmatprep.subr.mxu0 0.0
  %3712 = vmatpush2.msra.mxu0 0.0
  %3713 = vmatprep.mubr.f32.mxu0 0.0
  %3714 = vmatmul.mubr.f32.gmra.mxu0 %v3647
  %v3715 = vpop.f32.mrf.mxu0
  %v3716 = vadd.f32 0.0, %v3715
  %v3717 = vpop.f32.mrf.mxu0
  %3718 = vdwg.mxu0
  %v3719 = vadd.f32 %v3643, %v3716
  %v3720 = vxor.u32 %v3719, 2147483648
  %v3721 = vmul.f32 %v3720, 1.442695
  %v3722 = vpow.pop %v3721
  %v3723 = vadd.f32 %v3722, 1.0
  %v3724 = vrcp.pop %v3723
  %v3725 = vmul.f32 1.0, %v3724
  %v3726 = vtanh.pop %v3719
  %v3727 = vmul.f32 %v3725, %v3535
  %3729 = vrot.lane.b32.xlu0 %v3726, 64
  %v3730 = vpop.permute.xlu0 %3729
  %v3732 = vmul.f32 %v3725, %v3730
  %3734 = vrot.lane.b32.xlu0 %v3732, 32
  %v3735 = vpop.permute.xlu0 %3734
  %v3737 = vadd.f32 %v3727, %v3735
  %v3738 = vtanh.pop %v3737
  %3740 = vrot.lane.b32.xlu0 %v3738, 64
  %v3741 = vpop.permute.xlu0 %3740
  %v3743 = vmul.f32 %v3725, %v3741
  %v3744 = vld [vmem:[#allocation2 + $0x30] sm:$0xff]
  %3746 = vrot.lane.b32.xlu0 %v3642, 32
  %v3747 = vpop.permute.xlu0 %3746
  %v3748 = vsel %vm71, %v3747, 0
  %3750 = vmatprep.subr.mxu0 0.0
  %3751 = vmatpush1.msra.mxu0 0.0
  %3752 = vmatprep.subr.mxu0 0.0
  %3753 = vmatpush1.msra.mxu0 0.0
  %3754 = vmatprep.subr.mxu0 0.0
  %3755 = vmatpush1.msra.mxu0 0.0
  %3756 = vmatprep.subr.mxu0 0.0
  %3757 = vmatpush1.msra.mxu0 0.0
  %3758 = vmatprep.subr.mxu0 0.0
  %3759 = vmatpush1.msra.mxu0 0.0
  %3760 = vmatprep.subr.mxu0 0.0
  %3761 = vmatpush1.msra.mxu0 0.0
  %3762 = vmatprep.subr.mxu0 0.0
  %3763 = vmatpush1.msra.mxu0 0.0
  %3764 = vmatprep.subr.mxu0 0.0
  %3765 = vmatpush1.msra.mxu0 0.0
  %3766 = vmatprep.subr.mxu0 0.0
  %3767 = vmatpush1.msra.mxu0 0.0
  %3768 = vmatprep.subr.mxu0 0.0
  %3769 = vmatpush1.msra.mxu0 0.0
  %3770 = vmatprep.subr.mxu0 0.0
  %3771 = vmatpush1.msra.mxu0 0.0
  %3772 = vmatprep.subr.mxu0 0.0
  %3773 = vmatpush1.msra.mxu0 0.0
  %3774 = vmatprep.subr.mxu0 0.0
  %3775 = vmatpush1.msra.mxu0 %v2537
  %3776 = vmatprep.subr.mxu0 0.0
  %3777 = vmatpush1.msra.mxu0 %v2536
  %3778 = vmatprep.subr.mxu0 0.0
  %3779 = vmatpush1.msra.mxu0 %v2535
  %3780 = vmatprep.subr.mxu0 0.0
  %3781 = vmatpush1.msra.mxu0 %v2534
  %3782 = vmatprep.subr.mxu0 0.0
  %3783 = vmatpush2.msra.mxu0 0.0
  %3784 = vmatprep.subr.mxu0 0.0
  %3785 = vmatpush2.msra.mxu0 0.0
  %3786 = vmatprep.subr.mxu0 0.0
  %3787 = vmatpush2.msra.mxu0 0.0
  %3788 = vmatprep.subr.mxu0 0.0
  %3789 = vmatpush2.msra.mxu0 0.0
  %3790 = vmatprep.subr.mxu0 0.0
  %3791 = vmatpush2.msra.mxu0 0.0
  %3792 = vmatprep.subr.mxu0 0.0
  %3793 = vmatpush2.msra.mxu0 0.0
  %3794 = vmatprep.subr.mxu0 0.0
  %3795 = vmatpush2.msra.mxu0 0.0
  %3796 = vmatprep.subr.mxu0 0.0
  %3797 = vmatpush2.msra.mxu0 0.0
  %3798 = vmatprep.subr.mxu0 0.0
  %3799 = vmatpush2.msra.mxu0 0.0
  %3800 = vmatprep.subr.mxu0 0.0
  %3801 = vmatpush2.msra.mxu0 0.0
  %3802 = vmatprep.subr.mxu0 0.0
  %3803 = vmatpush2.msra.mxu0 0.0
  %3804 = vmatprep.subr.mxu0 0.0
  %3805 = vmatpush2.msra.mxu0 0.0
  %3806 = vmatprep.subr.mxu0 0.0
  %3807 = vmatpush2.msra.mxu0 0.0
  %3808 = vmatprep.subr.mxu0 0.0
  %3809 = vmatpush2.msra.mxu0 0.0
  %3810 = vmatprep.subr.mxu0 0.0
  %3811 = vmatpush2.msra.mxu0 0.0
  %3812 = vmatprep.subr.mxu0 0.0
  %3813 = vmatpush2.msra.mxu0 0.0
  %3814 = vmatprep.mubr.f32.mxu0 0.0
  %3815 = vmatmul.mubr.f32.gmra.mxu0 %v3748
  %v3816 = vpop.f32.mrf.mxu0
  %v3817 = vadd.f32 0.0, %v3816
  %v3818 = vpop.f32.mrf.mxu0
  %3819 = vdwg.mxu0
  %v3820 = vadd.f32 %v3744, %v3817
  %v3821 = vxor.u32 %v3820, 2147483648
  %v3822 = vmul.f32 %v3821, 1.442695
  %v3823 = vpow.pop %v3822
  %v3824 = vadd.f32 %v3823, 1.0
  %v3825 = vrcp.pop %v3824
  %v3826 = vmul.f32 1.0, %v3825
  %v3827 = vtanh.pop %v3820
  %v3828 = vmul.f32 %v3826, %v3636
  %3830 = vrot.lane.b32.xlu0 %v3827, 64
  %v3831 = vpop.permute.xlu0 %3830
  %v3833 = vmul.f32 %v3826, %v3831
  %3835 = vrot.lane.b32.xlu0 %v3833, 32
  %v3836 = vpop.permute.xlu0 %3835
  %v3838 = vadd.f32 %v3828, %v3836
  %v3839 = vtanh.pop %v3838
  %3841 = vrot.lane.b32.xlu0 %v3839, 64
  %v3842 = vpop.permute.xlu0 %3841
  %v3844 = vmul.f32 %v3826, %v3842
  %v3845 = vld [vmem:[#allocation4 + $0x8] sm:$0xff]
  %3847 = vrot.lane.b32.xlu0 %v3743, 32
  %v3848 = vpop.permute.xlu0 %3847
  %v3849 = vsel %vm71, %v3848, 0
  %3851 = vmatprep.subr.mxu0 0.0
  %3852 = vmatpush1.msra.mxu0 0.0
  %3853 = vmatprep.subr.mxu0 0.0
  %3854 = vmatpush1.msra.mxu0 0.0
  %3855 = vmatprep.subr.mxu0 0.0
  %3856 = vmatpush1.msra.mxu0 0.0
  %3857 = vmatprep.subr.mxu0 0.0
  %3858 = vmatpush1.msra.mxu0 0.0
  %3859 = vmatprep.subr.mxu0 0.0
  %3860 = vmatpush1.msra.mxu0 0.0
  %3861 = vmatprep.subr.mxu0 0.0
  %3862 = vmatpush1.msra.mxu0 0.0
  %3863 = vmatprep.subr.mxu0 0.0
  %3864 = vmatpush1.msra.mxu0 0.0
  %3865 = vmatprep.subr.mxu0 0.0
  %3866 = vmatpush1.msra.mxu0 0.0
  %3867 = vmatprep.subr.mxu0 0.0
  %3868 = vmatpush1.msra.mxu0 0.0
  %3869 = vmatprep.subr.mxu0 0.0
  %3870 = vmatpush1.msra.mxu0 0.0
  %3871 = vmatprep.subr.mxu0 0.0
  %3872 = vmatpush1.msra.mxu0 0.0
  %3873 = vmatprep.subr.mxu0 0.0
  %3874 = vmatpush1.msra.mxu0 0.0
  %3875 = vmatprep.subr.mxu0 0.0
  %3876 = vmatpush1.msra.mxu0 %v2541
  %3877 = vmatprep.subr.mxu0 0.0
  %3878 = vmatpush1.msra.mxu0 %v2540
  %3879 = vmatprep.subr.mxu0 0.0
  %3880 = vmatpush1.msra.mxu0 %v2539
  %3881 = vmatprep.subr.mxu0 0.0
  %3882 = vmatpush1.msra.mxu0 %v2538
  %3883 = vmatprep.subr.mxu0 0.0
  %3884 = vmatpush2.msra.mxu0 0.0
  %3885 = vmatprep.subr.mxu0 0.0
  %3886 = vmatpush2.msra.mxu0 0.0
  %3887 = vmatprep.subr.mxu0 0.0
  %3888 = vmatpush2.msra.mxu0 0.0
  %3889 = vmatprep.subr.mxu0 0.0
  %3890 = vmatpush2.msra.mxu0 0.0
  %3891 = vmatprep.subr.mxu0 0.0
  %3892 = vmatpush2.msra.mxu0 0.0
  %3893 = vmatprep.subr.mxu0 0.0
  %3894 = vmatpush2.msra.mxu0 0.0
  %3895 = vmatprep.subr.mxu0 0.0
  %3896 = vmatpush2.msra.mxu0 0.0
  %3897 = vmatprep.subr.mxu0 0.0
  %3898 = vmatpush2.msra.mxu0 0.0
  %3899 = vmatprep.subr.mxu0 0.0
  %3900 = vmatpush2.msra.mxu0 0.0
  %3901 = vmatprep.subr.mxu0 0.0
  %3902 = vmatpush2.msra.mxu0 0.0
  %3903 = vmatprep.subr.mxu0 0.0
  %3904 = vmatpush2.msra.mxu0 0.0
  %3905 = vmatprep.subr.mxu0 0.0
  %3906 = vmatpush2.msra.mxu0 0.0
  %3907 = vmatprep.subr.mxu0 0.0
  %3908 = vmatpush2.msra.mxu0 0.0
  %3909 = vmatprep.subr.mxu0 0.0
  %3910 = vmatpush2.msra.mxu0 0.0
  %3911 = vmatprep.subr.mxu0 0.0
  %3912 = vmatpush2.msra.mxu0 0.0
  %3913 = vmatprep.subr.mxu0 0.0
  %3914 = vmatpush2.msra.mxu0 0.0
  %3915 = vmatprep.mubr.f32.mxu0 0.0
  %3916 = vmatmul.mubr.f32.gmra.mxu0 %v3849
  %v3917 = vpop.f32.mrf.mxu0
  %v3918 = vadd.f32 0.0, %v3917
  %v3919 = vpop.f32.mrf.mxu0
  %3920 = vdwg.mxu0
  %v3921 = vadd.f32 %v3845, %v3918
  %v3922 = vxor.u32 %v3921, 2147483648
  %v3923 = vmul.f32 %v3922, 1.442695
  %v3924 = vpow.pop %v3923
  %v3925 = vadd.f32 %v3924, 1.0
  %v3926 = vrcp.pop %v3925
  %v3927 = vmul.f32 1.0, %v3926
  %v3928 = vtanh.pop %v3921
  %v3929 = vmul.f32 %v3927, %v3737
  %3931 = vrot.lane.b32.xlu0 %v3928, 64
  %v3932 = vpop.permute.xlu0 %3931
  %v3934 = vmul.f32 %v3927, %v3932
  %3936 = vrot.lane.b32.xlu0 %v3934, 32
  %v3937 = vpop.permute.xlu0 %3936
  %v3939 = vadd.f32 %v3929, %v3937
  %v3940 = vtanh.pop %v3939
  %3942 = vrot.lane.b32.xlu0 %v3940, 64
  %v3943 = vpop.permute.xlu0 %3942
  %v3945 = vmul.f32 %v3927, %v3943
  %v3946 = vld [vmem:[#allocation2 + $0x38] sm:$0xff]
  %3948 = vrot.lane.b32.xlu0 %v3844, 32
  %v3949 = vpop.permute.xlu0 %3948
  %v3950 = vsel %vm71, %v3949, 0
  %3952 = vmatprep.subr.mxu0 0.0
  %3953 = vmatpush1.msra.mxu0 0.0
  %3954 = vmatprep.subr.mxu0 0.0
  %3955 = vmatpush1.msra.mxu0 0.0
  %3956 = vmatprep.subr.mxu0 0.0
  %3957 = vmatpush1.msra.mxu0 0.0
  %3958 = vmatprep.subr.mxu0 0.0
  %3959 = vmatpush1.msra.mxu0 0.0
  %3960 = vmatprep.subr.mxu0 0.0
  %3961 = vmatpush1.msra.mxu0 0.0
  %3962 = vmatprep.subr.mxu0 0.0
  %3963 = vmatpush1.msra.mxu0 0.0
  %3964 = vmatprep.subr.mxu0 0.0
  %3965 = vmatpush1.msra.mxu0 0.0
  %3966 = vmatprep.subr.mxu0 0.0
  %3967 = vmatpush1.msra.mxu0 0.0
  %3968 = vmatprep.subr.mxu0 0.0
  %3969 = vmatpush1.msra.mxu0 0.0
  %3970 = vmatprep.subr.mxu0 0.0
  %3971 = vmatpush1.msra.mxu0 0.0
  %3972 = vmatprep.subr.mxu0 0.0
  %3973 = vmatpush1.msra.mxu0 0.0
  %3974 = vmatprep.subr.mxu0 0.0
  %3975 = vmatpush1.msra.mxu0 0.0
  %3976 = vmatprep.subr.mxu0 0.0
  %3977 = vmatpush1.msra.mxu0 %v2537
  %3978 = vmatprep.subr.mxu0 0.0
  %3979 = vmatpush1.msra.mxu0 %v2536
  %3980 = vmatprep.subr.mxu0 0.0
  %3981 = vmatpush1.msra.mxu0 %v2535
  %3982 = vmatprep.subr.mxu0 0.0
  %3983 = vmatpush1.msra.mxu0 %v2534
  %3984 = vmatprep.subr.mxu0 0.0
  %3985 = vmatpush2.msra.mxu0 0.0
  %3986 = vmatprep.subr.mxu0 0.0
  %3987 = vmatpush2.msra.mxu0 0.0
  %3988 = vmatprep.subr.mxu0 0.0
  %3989 = vmatpush2.msra.mxu0 0.0
  %3990 = vmatprep.subr.mxu0 0.0
  %3991 = vmatpush2.msra.mxu0 0.0
  %3992 = vmatprep.subr.mxu0 0.0
  %3993 = vmatpush2.msra.mxu0 0.0
  %3994 = vmatprep.subr.mxu0 0.0
  %3995 = vmatpush2.msra.mxu0 0.0
  %3996 = vmatprep.subr.mxu0 0.0
  %3997 = vmatpush2.msra.mxu0 0.0
  %3998 = vmatprep.subr.mxu0 0.0
  %3999 = vmatpush2.msra.mxu0 0.0
  %4000 = vmatprep.subr.mxu0 0.0
  %4001 = vmatpush2.msra.mxu0 0.0
  %4002 = vmatprep.subr.mxu0 0.0
  %4003 = vmatpush2.msra.mxu0 0.0
  %4004 = vmatprep.subr.mxu0 0.0
  %4005 = vmatpush2.msra.mxu0 0.0
  %4006 = vmatprep.subr.mxu0 0.0
  %4007 = vmatpush2.msra.mxu0 0.0
  %4008 = vmatprep.subr.mxu0 0.0
  %4009 = vmatpush2.msra.mxu0 0.0
  %4010 = vmatprep.subr.mxu0 0.0
  %4011 = vmatpush2.msra.mxu0 0.0
  %4012 = vmatprep.subr.mxu0 0.0
  %4013 = vmatpush2.msra.mxu0 0.0
  %4014 = vmatprep.subr.mxu0 0.0
  %4015 = vmatpush2.msra.mxu0 0.0
  %4016 = vmatprep.mubr.f32.mxu0 0.0
  %4017 = vmatmul.mubr.f32.gmra.mxu0 %v3950
  %v4018 = vpop.f32.mrf.mxu0
  %v4019 = vadd.f32 0.0, %v4018
  %v4020 = vpop.f32.mrf.mxu0
  %4021 = vdwg.mxu0
  %v4022 = vadd.f32 %v3946, %v4019
  %v4023 = vxor.u32 %v4022, 2147483648
  %v4024 = vmul.f32 %v4023, 1.442695
  %v4025 = vpow.pop %v4024
  %v4026 = vadd.f32 %v4025, 1.0
  %v4027 = vrcp.pop %v4026
  %v4028 = vmul.f32 1.0, %v4027
  %v4029 = vtanh.pop %v4022
  %v4030 = vmul.f32 %v4028, %v3838
  %4032 = vrot.lane.b32.xlu0 %v4029, 64
  %v4033 = vpop.permute.xlu0 %4032
  %v4035 = vmul.f32 %v4028, %v4033
  %4037 = vrot.lane.b32.xlu0 %v4035, 32
  %v4038 = vpop.permute.xlu0 %4037
  %v4040 = vadd.f32 %v4030, %v4038
  %v4041 = vtanh.pop %v4040
  %4043 = vrot.lane.b32.xlu0 %v4041, 64
  %v4044 = vpop.permute.xlu0 %4043
  %v4046 = vmul.f32 %v4028, %v4044
  %v4047 = vld [vmem:[#allocation4] sm:$0xff]
  %4049 = vrot.lane.b32.xlu0 %v3945, 32
  %v4050 = vpop.permute.xlu0 %4049
  %v4051 = vsel %vm71, %v4050, 0
  %4053 = vmatprep.subr.mxu0 0.0
  %4054 = vmatpush1.msra.mxu0 0.0
  %4055 = vmatprep.subr.mxu0 0.0
  %4056 = vmatpush1.msra.mxu0 0.0
  %4057 = vmatprep.subr.mxu0 0.0
  %4058 = vmatpush1.msra.mxu0 0.0
  %4059 = vmatprep.subr.mxu0 0.0
  %4060 = vmatpush1.msra.mxu0 0.0
  %4061 = vmatprep.subr.mxu0 0.0
  %4062 = vmatpush1.msra.mxu0 0.0
  %4063 = vmatprep.subr.mxu0 0.0
  %4064 = vmatpush1.msra.mxu0 0.0
  %4065 = vmatprep.subr.mxu0 0.0
  %4066 = vmatpush1.msra.mxu0 0.0
  %4067 = vmatprep.subr.mxu0 0.0
  %4068 = vmatpush1.msra.mxu0 0.0
  %4069 = vmatprep.subr.mxu0 0.0
  %4070 = vmatpush1.msra.mxu0 0.0
  %4071 = vmatprep.subr.mxu0 0.0
  %4072 = vmatpush1.msra.mxu0 0.0
  %4073 = vmatprep.subr.mxu0 0.0
  %4074 = vmatpush1.msra.mxu0 0.0
  %4075 = vmatprep.subr.mxu0 0.0
  %4076 = vmatpush1.msra.mxu0 0.0
  %4077 = vmatprep.subr.mxu0 0.0
  %4078 = vmatpush1.msra.mxu0 %v2541
  %4079 = vmatprep.subr.mxu0 0.0
  %4080 = vmatpush1.msra.mxu0 %v2540
  %4081 = vmatprep.subr.mxu0 0.0
  %4082 = vmatpush1.msra.mxu0 %v2539
  %4083 = vmatprep.subr.mxu0 0.0
  %4084 = vmatpush1.msra.mxu0 %v2538
  %4085 = vmatprep.subr.mxu0 0.0
  %4086 = vmatpush2.msra.mxu0 0.0
  %4087 = vmatprep.subr.mxu0 0.0
  %4088 = vmatpush2.msra.mxu0 0.0
  %4089 = vmatprep.subr.mxu0 0.0
  %4090 = vmatpush2.msra.mxu0 0.0
  %4091 = vmatprep.subr.mxu0 0.0
  %4092 = vmatpush2.msra.mxu0 0.0
  %4093 = vmatprep.subr.mxu0 0.0
  %4094 = vmatpush2.msra.mxu0 0.0
  %4095 = vmatprep.subr.mxu0 0.0
  %4096 = vmatpush2.msra.mxu0 0.0
  %4097 = vmatprep.subr.mxu0 0.0
  %4098 = vmatpush2.msra.mxu0 0.0
  %4099 = vmatprep.subr.mxu0 0.0
  %4100 = vmatpush2.msra.mxu0 0.0
  %4101 = vmatprep.subr.mxu0 0.0
  %4102 = vmatpush2.msra.mxu0 0.0
  %4103 = vmatprep.subr.mxu0 0.0
  %4104 = vmatpush2.msra.mxu0 0.0
  %4105 = vmatprep.subr.mxu0 0.0
  %4106 = vmatpush2.msra.mxu0 0.0
  %4107 = vmatprep.subr.mxu0 0.0
  %4108 = vmatpush2.msra.mxu0 0.0
  %4109 = vmatprep.subr.mxu0 0.0
  %4110 = vmatpush2.msra.mxu0 0.0
  %4111 = vmatprep.subr.mxu0 0.0
  %4112 = vmatpush2.msra.mxu0 0.0
  %4113 = vmatprep.subr.mxu0 0.0
  %4114 = vmatpush2.msra.mxu0 0.0
  %4115 = vmatprep.subr.mxu0 0.0
  %4116 = vmatpush2.msra.mxu0 0.0
  %4117 = vmatprep.mubr.f32.mxu0 0.0
  %4118 = vmatmul.mubr.f32.gmra.mxu0 %v4051
  %v4119 = vpop.f32.mrf.mxu0
  %v4120 = vadd.f32 0.0, %v4119
  %v4121 = vpop.f32.mrf.mxu0
  %4122 = vdwg.mxu0
  %v4123 = vadd.f32 %v4047, %v4120
  %v4124 = vxor.u32 %v4123, 2147483648
  %v4125 = vmul.f32 %v4124, 1.442695
  %v4126 = vpow.pop %v4125
  %v4127 = vadd.f32 %v4126, 1.0
  %v4128 = vrcp.pop %v4127
  %v4129 = vmul.f32 1.0, %v4128
  %v4130 = vtanh.pop %v4123
  %v4131 = vmul.f32 %v4129, %v3939
  %4133 = vrot.lane.b32.xlu0 %v4130, 64
  %v4134 = vpop.permute.xlu0 %4133
  %v4136 = vmul.f32 %v4129, %v4134
  %4138 = vrot.lane.b32.xlu0 %v4136, 32
  %v4139 = vpop.permute.xlu0 %4138
  %v4141 = vadd.f32 %v4131, %v4139
  %v4142 = vtanh.pop %v4141
  %4144 = vrot.lane.b32.xlu0 %v4142, 64
  %v4145 = vpop.permute.xlu0 %4144
  %v4147 = vmul.f32 %v4129, %v4145
  %v4148 = vld [vmem:[%s13] sm:$0xff]
  %v4149 = vld [vmem:[%s13 + $0x8] sm:$0xff]
  %v4150 = vld [vmem:[%s13 + $0x10] sm:$0xff]
  %v4151 = vld [vmem:[%s13 + $0x18] sm:$0xff]
  %v4152 = vld [vmem:[%s13 + $0x20] sm:$0xff]
  %v4153 = vld [vmem:[%s13 + $0x28] sm:$0xff]
  %v4154 = vld [vmem:[%s13 + $0x30] sm:$0xff]
  %v4155 = vld [vmem:[%s13 + $0x38] sm:$0xff]
  %4157 = vrot.lane.b32.xlu0 %v4147, 32
  %v4158 = vpop.permute.xlu0 %4157
  %v4159 = vsel %vm71, %v4158, 0
  %4161 = vmatprep.subr.mxu0 0.0
  %4162 = vmatpush1.msra.mxu0 0.0
  %4163 = vmatprep.subr.mxu0 0.0
  %4164 = vmatpush1.msra.mxu0 0.0
  %4165 = vmatprep.subr.mxu0 0.0
  %4166 = vmatpush1.msra.mxu0 0.0
  %4167 = vmatprep.subr.mxu0 0.0
  %4168 = vmatpush1.msra.mxu0 0.0
  %4169 = vmatprep.subr.mxu0 0.0
  %4170 = vmatpush1.msra.mxu0 0.0
  %4171 = vmatprep.subr.mxu0 0.0
  %4172 = vmatpush1.msra.mxu0 0.0
  %4173 = vmatprep.subr.mxu0 0.0
  %4174 = vmatpush1.msra.mxu0 0.0
  %4175 = vmatprep.subr.mxu0 0.0
  %4176 = vmatpush1.msra.mxu0 0.0
  %4177 = vmatprep.subr.mxu0 0.0
  %4178 = vmatpush1.msra.mxu0 0.0
  %4179 = vmatprep.subr.mxu0 0.0
  %4180 = vmatpush1.msra.mxu0 0.0
  %4181 = vmatprep.subr.mxu0 0.0
  %4182 = vmatpush1.msra.mxu0 0.0
  %4183 = vmatprep.subr.mxu0 0.0
  %4184 = vmatpush1.msra.mxu0 0.0
  %4185 = vmatprep.subr.mxu0 0.0
  %4186 = vmatpush1.msra.mxu0 %v4155
  %4187 = vmatprep.subr.mxu0 0.0
  %4188 = vmatpush1.msra.mxu0 %v4154
  %4189 = vmatprep.subr.mxu0 0.0
  %4190 = vmatpush1.msra.mxu0 %v4153
  %4191 = vmatprep.subr.mxu0 0.0
  %4192 = vmatpush1.msra.mxu0 %v4152
  %4193 = vmatprep.subr.mxu0 0.0
  %4194 = vmatpush2.msra.mxu0 0.0
  %4195 = vmatprep.subr.mxu0 0.0
  %4196 = vmatpush2.msra.mxu0 0.0
  %4197 = vmatprep.subr.mxu0 0.0
  %4198 = vmatpush2.msra.mxu0 0.0
  %4199 = vmatprep.subr.mxu0 0.0
  %4200 = vmatpush2.msra.mxu0 0.0
  %4201 = vmatprep.subr.mxu0 0.0
  %4202 = vmatpush2.msra.mxu0 0.0
  %4203 = vmatprep.subr.mxu0 0.0
  %4204 = vmatpush2.msra.mxu0 0.0
  %4205 = vmatprep.subr.mxu0 0.0
  %4206 = vmatpush2.msra.mxu0 0.0
  %4207 = vmatprep.subr.mxu0 0.0
  %4208 = vmatpush2.msra.mxu0 0.0
  %4209 = vmatprep.subr.mxu0 0.0
  %4210 = vmatpush2.msra.mxu0 0.0
  %4211 = vmatprep.subr.mxu0 0.0
  %4212 = vmatpush2.msra.mxu0 0.0
  %4213 = vmatprep.subr.mxu0 0.0
  %4214 = vmatpush2.msra.mxu0 0.0
  %4215 = vmatprep.subr.mxu0 0.0
  %4216 = vmatpush2.msra.mxu0 0.0
  %4217 = vmatprep.subr.mxu0 0.0
  %4218 = vmatpush2.msra.mxu0 0.0
  %4219 = vmatprep.subr.mxu0 0.0
  %4220 = vmatpush2.msra.mxu0 0.0
  %4221 = vmatprep.subr.mxu0 0.0
  %4222 = vmatpush2.msra.mxu0 0.0
  %4223 = vmatprep.subr.mxu0 0.0
  %4224 = vmatpush2.msra.mxu0 0.0
  %4225 = vmatprep.mubr.f32.mxu0 0.0
  %4226 = vmatmul.mubr.f32.gmra.mxu0 %v4159
  %v4227 = vpop.f32.mrf.mxu0
  %v4228 = vadd.f32 0.0, %v4227
  %v4229 = vpop.f32.mrf.mxu0
  %4230 = vdwg.mxu0
  %4232 = vrot.lane.b32.xlu0 %v4046, 32
  %v4233 = vpop.permute.xlu0 %4232
  %v4234 = vsel %vm71, %v4233, 0
  %4236 = vmatprep.subr.mxu0 0.0
  %4237 = vmatpush1.msra.mxu0 0.0
  %4238 = vmatprep.subr.mxu0 0.0
  %4239 = vmatpush1.msra.mxu0 0.0
  %4240 = vmatprep.subr.mxu0 0.0
  %4241 = vmatpush1.msra.mxu0 0.0
  %4242 = vmatprep.subr.mxu0 0.0
  %4243 = vmatpush1.msra.mxu0 0.0
  %4244 = vmatprep.subr.mxu0 0.0
  %4245 = vmatpush1.msra.mxu0 0.0
  %4246 = vmatprep.subr.mxu0 0.0
  %4247 = vmatpush1.msra.mxu0 0.0
  %4248 = vmatprep.subr.mxu0 0.0
  %4249 = vmatpush1.msra.mxu0 0.0
  %4250 = vmatprep.subr.mxu0 0.0
  %4251 = vmatpush1.msra.mxu0 0.0
  %4252 = vmatprep.subr.mxu0 0.0
  %4253 = vmatpush1.msra.mxu0 0.0
  %4254 = vmatprep.subr.mxu0 0.0
  %4255 = vmatpush1.msra.mxu0 0.0
  %4256 = vmatprep.subr.mxu0 0.0
  %4257 = vmatpush1.msra.mxu0 0.0
  %4258 = vmatprep.subr.mxu0 0.0
  %4259 = vmatpush1.msra.mxu0 0.0
  %4260 = vmatprep.subr.mxu0 0.0
  %4261 = vmatpush1.msra.mxu0 %v4151
  %4262 = vmatprep.subr.mxu0 0.0
  %4263 = vmatpush1.msra.mxu0 %v4150
  %4264 = vmatprep.subr.mxu0 0.0
  %4265 = vmatpush1.msra.mxu0 %v4149
  %4266 = vmatprep.subr.mxu0 0.0
  %4267 = vmatpush1.msra.mxu0 %v4148
  %4268 = vmatprep.subr.mxu0 0.0
  %4269 = vmatpush2.msra.mxu0 0.0
  %4270 = vmatprep.subr.mxu0 0.0
  %4271 = vmatpush2.msra.mxu0 0.0
  %4272 = vmatprep.subr.mxu0 0.0
  %4273 = vmatpush2.msra.mxu0 0.0
  %4274 = vmatprep.subr.mxu0 0.0
  %4275 = vmatpush2.msra.mxu0 0.0
  %4276 = vmatprep.subr.mxu0 0.0
  %4277 = vmatpush2.msra.mxu0 0.0
  %4278 = vmatprep.subr.mxu0 0.0
  %4279 = vmatpush2.msra.mxu0 0.0
  %4280 = vmatprep.subr.mxu0 0.0
  %4281 = vmatpush2.msra.mxu0 0.0
  %4282 = vmatprep.subr.mxu0 0.0
  %4283 = vmatpush2.msra.mxu0 0.0
  %4284 = vmatprep.subr.mxu0 0.0
  %4285 = vmatpush2.msra.mxu0 0.0
  %4286 = vmatprep.subr.mxu0 0.0
  %4287 = vmatpush2.msra.mxu0 0.0
  %4288 = vmatprep.subr.mxu0 0.0
  %4289 = vmatpush2.msra.mxu0 0.0
  %4290 = vmatprep.subr.mxu0 0.0
  %4291 = vmatpush2.msra.mxu0 0.0
  %4292 = vmatprep.subr.mxu0 0.0
  %4293 = vmatpush2.msra.mxu0 0.0
  %4294 = vmatprep.subr.mxu0 0.0
  %4295 = vmatpush2.msra.mxu0 0.0
  %4296 = vmatprep.subr.mxu0 0.0
  %4297 = vmatpush2.msra.mxu0 0.0
  %4298 = vmatprep.subr.mxu0 0.0
  %4299 = vmatpush2.msra.mxu0 0.0
  %4300 = vmatprep.mubr.f32.mxu0 0.0
  %4301 = vmatmul.mubr.f32.gmra.mxu0 %v4234
  %v4302 = vpop.f32.mrf.mxu0
  %v4303 = vadd.f32 %v4228, %v4302
  %v4304 = vpop.f32.mrf.mxu0
  %4305 = vdwg.mxu0
  %v4306 = vld [vmem:[#allocation6] sm:$0x1]
  %v4308 = vlaneseq
  %v4309 = vshrl.u32 %v4308, 7
  %v4310 = vsub.s32 0, %v4309
  %v4311 = vrot.slane %v4306, %v4310
  %v4313 = vadd.f32 %v4303, %v4311
  %vm4314 = vcmask 7168
  %4315 = vst.msk [vmem:[%s15] sm:$0xff] %vm4314, %v4313
  // Predicated region
  $region62: #{sentiment_rnn_forward.1} parent=0 // pred_check
    _
  $region63: #{sentiment_rnn_forward.1} parent=0 // pred_check_branch
    %4317 = sbr.rel (0) target = $region65
  $region64: #{sentiment_rnn_forward.1} parent=0 // pred_region
    _
  $region65: #{sentiment_rnn_forward.1} parent=0 // pred_fallthru
    _
  // Predicated region
  $region66: #{sentiment_rnn_forward.1} parent=0 // pred_check
    _
  $region67: #{sentiment_rnn_forward.1} parent=0 // pred_check_branch
    %4319 = sbr.rel (0) target = $region69
  $region68: #{sentiment_rnn_forward.1} parent=0 // pred_region
    _
  $region69: #{sentiment_rnn_forward.1} parent=0 // pred_fallthru
    _

</llo_original>
